<compile_context>
chip_gen: v6e
topology: v6e:2x2x1
jax: 0.10.0
libtpu: 0.0.40
codegen_flags: <defaults>
</compile_context>

<pallas_src>
import functools
import numpy as np
import jax
import jax.numpy as jnp
from jax.experimental import pallas as pl
from jax.experimental.pallas import tpu as pltpu


# ----------------------- host-side tree structure ---------------------------
class Node:
    def __init__(self, idx, children=()):
        self.idx = idx
        self.children = list(children)


def build_tree():
    # complete binary tree with 8 leaves, 15 nodes total; idx 0 is the root.
    leaves = [Node(i) for i in range(7, 15)]
    n3 = Node(3, [leaves[0], leaves[1]])
    n4 = Node(4, [leaves[2], leaves[3]])
    n5 = Node(5, [leaves[4], leaves[5]])
    n6 = Node(6, [leaves[6], leaves[7]])
    n1 = Node(1, [n3, n4])
    n2 = Node(2, [n5, n6])
    root = Node(0, [n1, n2])
    return root


def build_kernel_tables(root):
    """Verify heap layout (children of i are 2i+1, 2i+2) and derive the static
    bottom-up level table: tuples of (dest_node_start, node_count)."""
    nodes = {}
    leaf_dfs = []

    def rec(node, depth):
        assert node.idx not in nodes
        nodes[node.idx] = depth
        if not node.children:
            leaf_dfs.append(node.idx)
        else:
            assert len(node.children) == 2
            assert node.children[0].idx == 2 * node.idx + 1
            assert node.children[-1].idx == 2 * node.idx + 2
        for c in node.children:
            rec(c, depth + 1)

    rec(root, 0)
    tree_len = len(nodes)
    assert sorted(nodes) == list(range(tree_len))

    num_leaves = len(leaf_dfs)
    leaf_start = min(leaf_dfs)
    # DFS leaf order must equal the contiguous ascending id range (this is how
    # the torch module assigns lstm rows to leaves).
    assert leaf_dfs == list(range(leaf_start, leaf_start + num_leaves))

    internal_by_depth = {}
    for idx, depth in nodes.items():
        if idx < leaf_start:
            internal_by_depth.setdefault(depth, []).append(idx)

    levels = []
    prev_start, prev_cnt = leaf_start, num_leaves
    for depth in sorted(internal_by_depth, reverse=True):
        ids = sorted(internal_by_depth[depth])
        dest, cnt = ids[0], len(ids)
        assert ids == list(range(dest, dest + cnt))
        # children of [dest, dest+cnt) must be exactly the previous level range
        assert 2 * dest + 1 == prev_start and 2 * cnt == prev_cnt
        levels.append((dest, cnt))
        prev_start, prev_cnt = dest, cnt
    assert prev_start == 0 and prev_cnt == 1

    return dict(tree_len=tree_len, leaf_start=leaf_start,
                num_leaves=num_leaves, levels=tuple(levels))


# ------------------------------- fused kernel --------------------------------
def fused_tree_kernel(emb_ref, w_ih3_ref, b_ih3_ref, w_u_ref, b_u_ref,
                      w_main_ref, b_main_ref, w_er_ref, b_e_ref,
                      unary_ref, edge_ref,
                      *, hidden_dim, num_tags, tile_b, num_leaves, leaf_start,
                      levels):
    H, T = hidden_dim, num_tags
    TT = T * T
    S = num_leaves
    bf16 = jnp.bfloat16
    E = emb_ref.shape[-1]

    # ---- leaf LSTM step (seq-len 1, h0 = c0 = 0 -> forget gate irrelevant) --
    # pruned gate layout [ input | output | cell-candidate ] -> [S*tile_b, 3H]
    x = emb_ref[...].reshape(S * tile_b, E)                         # bf16
    gates = jnp.dot(x, w_ih3_ref[...],
                    preferred_element_type=jnp.float32) + b_ih3_ref[...]
    io = jax.nn.sigmoid(gates[:, :2 * H])                           # one sigmoid
    g = jnp.tanh(gates[:, 2 * H:])
    h_leaf = io[:, H:2 * H] * jnp.tanh(io[:, :H] * g)               # f32 [S*tb, H]
    u_leaf = jnp.dot(h_leaf.astype(bf16), w_u_ref[...],
                     preferred_element_type=jnp.float32) + b_u_ref[...]
    unary_ref[leaf_start:leaf_start + S] = u_leaf.reshape(S, tile_b, T)

    # children of the deepest internal level, node-major [2*cnt, tile_b, H]
    ch = h_leaf.reshape(S, tile_b, H)

    # ---- internal levels, bottom-up (static unrolled; structure is static) --
    for dest, cnt in levels:
        # heap order: (left, right) pairs are adjacent rows of `ch`
        left = jnp.concatenate([ch[2 * i:2 * i + 1] for i in range(cnt)], 0)
        right = jnp.concatenate([ch[2 * i + 1:2 * i + 2] for i in range(cnt)], 0)
        lr = jnp.concatenate([left, right], axis=-1)                # [cnt, tb, 2H]
        lr2 = lr.reshape(cnt * tile_b, 2 * H).astype(bf16)

        # one fused dot: [ h_parent | u_parent | e_left_childpart | e_right_childpart ]
        main = jnp.dot(lr2, w_main_ref[...],
                       preferred_element_type=jnp.float32) + b_main_ref[...]
        h_p = main[:, :H]                                           # f32
        u_p = main[:, H:H + T]
        e_l = main[:, H + T:H + T + TT].reshape(cnt, tile_b, TT)
        e_r = main[:, H + T + TT:].reshape(cnt, tile_b, TT)

        # parent contribution to both children's edges (dependent dot)
        par = jnp.dot(h_p.astype(bf16), w_er_ref[...],
                      preferred_element_type=jnp.float32).reshape(cnt, tile_b, TT)

        # interleave back to natural child order (leading-dim slab concat only)
        parts = []
        for i in range(cnt):
            pe = par[i:i + 1]
            parts.append(e_l[i:i + 1] + pe)
            parts.append(e_r[i:i + 1] + pe)
        e_all = jnp.concatenate(parts, axis=0) + b_e_ref[...]       # [2cnt, tb, TT]

        cs = 2 * dest + 1                                           # child id range
        edge_ref[cs:cs + 2 * cnt] = e_all
        unary_ref[dest:dest + cnt] = u_p.reshape(cnt, tile_b, T)
        ch = h_p.reshape(cnt, tile_b, H)

    # root never enters the torch edge dict -> _get_tensor_from_dict fills ones
    edge_ref[0:1] = jnp.ones((1, tile_b, TT), jnp.float32)


# ------------------------------ wrappers --------------------------------------
def pack_params(params):
    H = params['w_hl_l'].shape[0]
    T = params['b_u'].shape[-1]
    TT = T * T
    z = jnp.zeros((H, TT), jnp.float32)
    # columns: [ hidden (H) | unary (T) | edge child-part for left child (TT)
    #          | edge child-part for right child (TT) ]
    w_main = jnp.concatenate([
        jnp.concatenate([params['w_hl_l'], params['w_hl_r']], axis=0),
        jnp.concatenate([params['w_un_l'], params['w_un_r']], axis=0),
        jnp.concatenate([params['w_e_l'], z], axis=0),
        jnp.concatenate([z, params['w_e_l']], axis=0)], axis=1)     # [2H, H+T+2TT]
    b_main = jnp.concatenate([params['b_hl'], params['b_un'],
                              jnp.zeros((1, 2 * TT), jnp.float32)], axis=1)
    return w_main, b_main


def tree_module_forward_batched(params, inp_batch, tables, tile_b=32):
    """inp_batch: [B, num_leaves] int32 tokens (B independent trees)."""
    B, S = inp_batch.shape
    assert S == tables['num_leaves']
    assert B % tile_b == 0 and tile_b % 8 == 0
    H = params['w_hl_l'].shape[0]
    T = params['b_u'].shape[-1]
    TT = T * T
    E = params['embedding'].shape[-1]
    tree_len = tables['tree_len']

    # embedding gather in plain JAX; node-major layout [S, B, E] for the kernel
    emb = jnp.transpose(params['embedding'][inp_batch], (1, 0, 2)).astype(jnp.bfloat16)
    w_main, b_main = pack_params(params)

    bf = lambda a: a.astype(jnp.bfloat16)    # MXU operands
    f32 = lambda a: a.astype(jnp.float32)    # biases (VPU adds)
    args = (emb,
            bf(params['w_ih3']), f32(params['b_ih3']),
            bf(params['w_u']), f32(params['b_u']),
            bf(w_main), f32(b_main),
            bf(params['w_e_r']), f32(params['b_e']))

    full = lambda a: pl.BlockSpec(a.shape, lambda b: (0,) * a.ndim)
    in_specs = [pl.BlockSpec((S, tile_b, E), lambda b: (0, b, 0))] + \
               [full(a) for a in args[1:]]
    # Outputs are node-major with batch on the (aligned) sublane dim. Truly
    # lane-dense (>=128-lane) outputs would need an in-kernel transpose whose
    # XLU cost exceeds the tiny writeback at T=4; total output is ~1.2 KB/tree.
    out_specs = (pl.BlockSpec((tree_len, tile_b, T), lambda b: (0, b, 0)),
                 pl.BlockSpec((tree_len, tile_b, TT), lambda b: (0, b, 0)))

    kernel = functools.partial(fused_tree_kernel, hidden_dim=H, num_tags=T,
                               tile_b=tile_b, num_leaves=S,
                               leaf_start=tables['leaf_start'],
                               levels=tables['levels'])
    unary_nb, edge_nb = pl.pallas_call(
        kernel,
        grid=(B // tile_b,),
        out_shape=(jax.ShapeDtypeStruct((tree_len, B, T), jnp.float32),
                   jax.ShapeDtypeStruct((tree_len, B, TT), jnp.float32)),
        in_specs=in_specs,
        out_specs=out_specs,
        compiler_params=pltpu.CompilerParams(
            dimension_semantics=("parallel",)),
    )(*args)

    unary = jnp.transpose(unary_nb, (1, 0, 2))                      # [B, N, T]
    edge = jnp.transpose(edge_nb, (1, 0, 2)).reshape(B, tree_len, T, T)
    return unary, edge


def tree_module_forward(params, inp, tables):
    """Single-tree interface matching the original module's forward."""
    inp_b = jnp.tile(inp[None, :], (8, 1))          # pad batch to one min tile
    unary, edge = tree_module_forward_batched(params, inp_b, tables, tile_b=8)
    return unary[0], edge[0]


# -------------------------- params & reference --------------------------------
def init_params(key, vocab, E, H, T):
    ks = jax.random.split(key, 11)
    w = lambda k, shape: jax.random.normal(k, shape, jnp.float32) * 0.1
    p = {}
    p['embedding'] = w(ks[0], (vocab, E))
    # LSTM input->gate weights with the forget gate dropped (c0 = 0 makes it a
    # no-op); column order [i | o | g]. Bias is the combined b_ih + b_hh.
    p['w_ih3'] = w(ks[1], (E, 3 * H))
    p['b_ih3'] = w(ks[2], (1, 3 * H))
    p['w_u'] = w(ks[3], (H, T))
    p['b_u'] = w(ks[4], (1, T))
    w_hl = w(ks[5], (2 * H, H))
    p['w_hl_l'], p['w_hl_r'] = w_hl[:H], w_hl[H:]
    p['b_hl'] = w(ks[6], (1, H))
    w_un = w(ks[7], (2 * H, T))
    p['w_un_l'], p['w_un_r'] = w_un[:H], w_un[H:]
    p['b_un'] = w(ks[8], (1, T))
    w_e = w(ks[9], (2 * H, T * T))
    p['w_e_l'], p['w_e_r'] = w_e[:H], w_e[H:]
    p['b_e'] = w(ks[10], (1, T * T))
    return p


def reference_forward_np(params, inp, root, tree_len):
    p = {k: np.asarray(v, np.float32) for k, v in params.items()}
    emb = p['embedding'][np.asarray(inp)]
    H = p['w_hl_l'].shape[0]
    T = p['b_u'].shape[-1]
    sig = lambda z: 1.0 / (1.0 + np.exp(-z))
    gates = emb @ p['w_ih3'] + p['b_ih3']
    i = sig(gates[:, :H]); o = sig(gates[:, H:2 * H]); g = np.tanh(gates[:, 2 * H:])
    h = o * np.tanh(i * g)
    unary = h @ p['w_u'] + p['b_u']
    lstm_d, unary_d, edge_d = {}, {}, {}
    counter = [0]

    def rec(node):
        if not node.children:
            k = counter[0]; counter[0] += 1
            lstm_d[node.idx] = h[k]; unary_d[node.idx] = unary[k]
            return
        for c in node.children:
            rec(c)
        l = lstm_d[node.children[0].idx]; r = lstm_d[node.children[-1].idx]
        lstm_d[node.idx] = l @ p['w_hl_l'] + r @ p['w_hl_r'] + p['b_hl'][0]
        unary_d[node.idx] = l @ p['w_un_l'] + r @ p['w_un_r'] + p['b_un'][0]

    rec(root)

    def rec_e(node):
        for c in node.children:
            edge_d[c.idx] = (lstm_d[c.idx] @ p['w_e_l']
                             + lstm_d[node.idx] @ p['w_e_r'] + p['b_e'][0])
            rec_e(c)

    rec_e(root)
    un = np.stack([unary_d[n] for n in range(tree_len)], 0)
    ed = np.stack([edge_d[n] if n in edge_d else np.ones((T * T,), np.float32)
                   for n in range(tree_len)], 0).reshape(tree_len, T, T)
    return un.astype(np.float32), ed.astype(np.float32)


# --------------------------------- main ---------------------------------------
if __name__ == "__main__":
    vocab, E, H, T = 20, 16, 32, 4
    root = build_tree()
    tables = build_kernel_tables(root)
    tree_len = tables['tree_len']
    S = tables['num_leaves']              # 8 leaves -> inp length 8
    B, tile_b = 64, 32                    # grid = (2,), leaf-matmul M = 256

    key = jax.random.PRNGKey(0)
    pkey, ikey = jax.random.split(key)
    params = init_params(pkey, vocab, E, H, T)
    inp_batch = jax.random.randint(ikey, (B, S), 0, vocab, dtype=jnp.int32)

    unary, edge = tree_module_forward_batched(params, inp_batch, tables,
                                              tile_b=tile_b)
    jax.block_until_ready((unary, edge))
    assert unary.shape == (B, tree_len, T) and edge.shape == (B, tree_len, T, T)

    # verify every tree against the per-tree reference (original module semantics)
    un_np = np.asarray(unary); ed_np = np.asarray(edge)
    for b in range(B):
        ref_u, ref_e = reference_forward_np(params, np.asarray(inp_batch[b]),
                                            root, tree_len)
        assert np.allclose(un_np[b], ref_u, atol=2e-2, rtol=2e-2)
        assert np.allclose(ed_np[b], ref_e, atol=2e-2, rtol=2e-2)

    # single-tree interface (original forward signature) smoke test
    u1, e1 = tree_module_forward(params, inp_batch[0], tables)
    jax.block_until_ready((u1, e1))
    assert np.allclose(np.asarray(u1), un_np[0], atol=2e-2, rtol=2e-2)
    assert np.allclose(np.asarray(e1), ed_np[0], atol=2e-2, rtol=2e-2)

    print("KERNEL_OK")
</pallas_src>

<mosaic_0001>
module attributes {stable_mosaic.version = 11 : i64} {
  func.func @fused_tree_kernel(%arg0: i32, %arg1: memref<8x32x16xbf16, #tpu.memory_space<vmem>>, %arg2: memref<16x96xbf16, #tpu.memory_space<vmem>>, %arg3: memref<1x96xf32, #tpu.memory_space<vmem>>, %arg4: memref<32x4xbf16, #tpu.memory_space<vmem>>, %arg5: memref<1x4xf32, #tpu.memory_space<vmem>>, %arg6: memref<64x68xbf16, #tpu.memory_space<vmem>>, %arg7: memref<1x68xf32, #tpu.memory_space<vmem>>, %arg8: memref<32x16xbf16, #tpu.memory_space<vmem>>, %arg9: memref<1x16xf32, #tpu.memory_space<vmem>>, %arg10: memref<15x32x4xf32, #tpu.memory_space<vmem>>, %arg11: memref<15x32x16xf32, #tpu.memory_space<vmem>>) attributes {dimension_semantics = [#tpu.dimension_semantics<parallel>], iteration_bounds = array<i64: 2>, scalar_prefetch = 0 : i64, scratch_operands = 0 : i64, tpu.core_type = #tpu.core_type<tc>, window_params = [{transform_indices = @transform_0, window_bounds = array<i64: 8, 32, 16>}, {pipeline_mode = #tpu.pipeline_mode<synchronous>, transform_indices = @transform_1, window_bounds = array<i64: 16, 96>}, {pipeline_mode = #tpu.pipeline_mode<synchronous>, transform_indices = @transform_2, window_bounds = array<i64: 1, 96>}, {pipeline_mode = #tpu.pipeline_mode<synchronous>, transform_indices = @transform_3, window_bounds = array<i64: 32, 4>}, {pipeline_mode = #tpu.pipeline_mode<synchronous>, transform_indices = @transform_4, window_bounds = array<i64: 1, 4>}, {pipeline_mode = #tpu.pipeline_mode<synchronous>, transform_indices = @transform_5, window_bounds = array<i64: 64, 68>}, {pipeline_mode = #tpu.pipeline_mode<synchronous>, transform_indices = @transform_6, window_bounds = array<i64: 1, 68>}, {pipeline_mode = #tpu.pipeline_mode<synchronous>, transform_indices = @transform_7, window_bounds = array<i64: 32, 16>}, {pipeline_mode = #tpu.pipeline_mode<synchronous>, transform_indices = @transform_8, window_bounds = array<i64: 1, 16>}, {transform_indices = @transform_9, window_bounds = array<i64: 15, 32, 4>}, {transform_indices = @transform_10, window_bounds = array<i64: 15, 32, 16>}]} {
    %c0 = arith.constant 0 : index
    %c0_0 = arith.constant 0 : index
    %c0_1 = arith.constant 0 : index
    %0 = vector.load %arg1[%c0, %c0_0, %c0_1] : memref<8x32x16xbf16, #tpu.memory_space<vmem>>, vector<8x32x16xbf16>
    %1 = vector.shape_cast %0 : vector<8x32x16xbf16> to vector<256x16xbf16>
    %c0_2 = arith.constant 0 : index
    %c0_3 = arith.constant 0 : index
    %2 = vector.load %arg2[%c0_2, %c0_3] : memref<16x96xbf16, #tpu.memory_space<vmem>>, vector<16x96xbf16>
    %cst = arith.constant dense<0.000000e+00> : vector<256x96xf32>
    %3 = tpu.matmul %1, %2, %cst {dimension_numbers = #tpu.dot_dimension_numbers<[1], [0], [0], [1], [0, 0, 1, 1], [], []>} : vector<256x16xbf16>, vector<16x96xbf16>, vector<256x96xf32> -> vector<256x96xf32>
    %c0_4 = arith.constant 0 : index
    %c0_5 = arith.constant 0 : index
    %4 = vector.load %arg3[%c0_4, %c0_5] : memref<1x96xf32, #tpu.memory_space<vmem>>, vector<1x96xf32>
    %5 = vector.broadcast %4 : vector<1x96xf32> to vector<256x96xf32>
    %6 = arith.addf %3, %5 : vector<256x96xf32>
    %7 = vector.extract_strided_slice %6 {offsets = [0, 0], sizes = [256, 64], strides = [1, 1]} : vector<256x96xf32> to vector<256x64xf32>
    %8 = arith.negf %7 : vector<256x64xf32>
    %9 = math.exp %8 : vector<256x64xf32>
    %cst_6 = arith.constant 1.000000e+00 : f32
    %10 = vector.broadcast %cst_6 : f32 to vector<256x64xf32>
    %11 = arith.addf %10, %9 : vector<256x64xf32>
    %12 = arith.divf %10, %11 : vector<256x64xf32>
    %13 = vector.extract_strided_slice %6 {offsets = [0, 64], sizes = [256, 32], strides = [1, 1]} : vector<256x96xf32> to vector<256x32xf32>
    %14 = math.tanh %13 : vector<256x32xf32>
    %15 = vector.extract_strided_slice %12 {offsets = [0, 32], sizes = [256, 32], strides = [1, 1]} : vector<256x64xf32> to vector<256x32xf32>
    %16 = vector.extract_strided_slice %12 {offsets = [0, 0], sizes = [256, 32], strides = [1, 1]} : vector<256x64xf32> to vector<256x32xf32>
    %17 = arith.mulf %16, %14 : vector<256x32xf32>
    %18 = math.tanh %17 : vector<256x32xf32>
    %19 = arith.mulf %15, %18 : vector<256x32xf32>
    %20 = arith.truncf %19 : vector<256x32xf32> to vector<256x32xbf16>
    %c0_7 = arith.constant 0 : index
    %c0_8 = arith.constant 0 : index
    %21 = vector.load %arg4[%c0_7, %c0_8] : memref<32x4xbf16, #tpu.memory_space<vmem>>, vector<32x4xbf16>
    %cst_9 = arith.constant dense<0.000000e+00> : vector<256x4xf32>
    %22 = tpu.matmul %20, %21, %cst_9 {dimension_numbers = #tpu.dot_dimension_numbers<[1], [0], [0], [1], [0, 0, 1, 1], [], []>} : vector<256x32xbf16>, vector<32x4xbf16>, vector<256x4xf32> -> vector<256x4xf32>
    %c0_10 = arith.constant 0 : index
    %c0_11 = arith.constant 0 : index
    %23 = vector.load %arg5[%c0_10, %c0_11] : memref<1x4xf32, #tpu.memory_space<vmem>>, vector<1x4xf32>
    %24 = vector.broadcast %23 : vector<1x4xf32> to vector<256x4xf32>
    %25 = arith.addf %22, %24 : vector<256x4xf32>
    %26 = vector.shape_cast %25 : vector<256x4xf32> to vector<8x32x4xf32>
    %c7 = arith.constant 7 : index
    %c0_12 = arith.constant 0 : index
    %c0_13 = arith.constant 0 : index
    %27 = vector.load %arg10[%c7, %c0_12, %c0_13] : memref<15x32x4xf32, #tpu.memory_space<vmem>>, vector<8x32x4xf32>
    tpu.vector_store %arg10[%c7, %c0_12, %c0_13], %26 {strides = array<i32>} : memref<15x32x4xf32, #tpu.memory_space<vmem>>, vector<8x32x4xf32>,
    %28 = vector.shape_cast %19 : vector<256x32xf32> to vector<8x32x32xf32>
    %29 = vector.extract_strided_slice %28 {offsets = [0, 0, 0], sizes = [1, 32, 32], strides = [1, 1, 1]} : vector<8x32x32xf32> to vector<1x32x32xf32>
    %30 = vector.extract_strided_slice %28 {offsets = [2, 0, 0], sizes = [1, 32, 32], strides = [1, 1, 1]} : vector<8x32x32xf32> to vector<1x32x32xf32>
    %31 = vector.extract_strided_slice %28 {offsets = [4, 0, 0], sizes = [1, 32, 32], strides = [1, 1, 1]} : vector<8x32x32xf32> to vector<1x32x32xf32>
    %32 = vector.extract_strided_slice %28 {offsets = [6, 0, 0], sizes = [1, 32, 32], strides = [1, 1, 1]} : vector<8x32x32xf32> to vector<1x32x32xf32>
    %33 = tpu.concatenate %29, %30, %31, %32 in 0 : vector<1x32x32xf32>, vector<1x32x32xf32>, vector<1x32x32xf32>, vector<1x32x32xf32> -> vector<4x32x32xf32>
    %34 = vector.extract_strided_slice %28 {offsets = [1, 0, 0], sizes = [1, 32, 32], strides = [1, 1, 1]} : vector<8x32x32xf32> to vector<1x32x32xf32>
    %35 = vector.extract_strided_slice %28 {offsets = [3, 0, 0], sizes = [1, 32, 32], strides = [1, 1, 1]} : vector<8x32x32xf32> to vector<1x32x32xf32>
    %36 = vector.extract_strided_slice %28 {offsets = [5, 0, 0], sizes = [1, 32, 32], strides = [1, 1, 1]} : vector<8x32x32xf32> to vector<1x32x32xf32>
    %37 = vector.extract_strided_slice %28 {offsets = [7, 0, 0], sizes = [1, 32, 32], strides = [1, 1, 1]} : vector<8x32x32xf32> to vector<1x32x32xf32>
    %38 = tpu.concatenate %34, %35, %36, %37 in 0 : vector<1x32x32xf32>, vector<1x32x32xf32>, vector<1x32x32xf32>, vector<1x32x32xf32> -> vector<4x32x32xf32>
    %39 = tpu.concatenate %33, %38 in 2 : vector<4x32x32xf32>, vector<4x32x32xf32> -> vector<4x32x64xf32>
    %40 = vector.shape_cast %39 : vector<4x32x64xf32> to vector<128x64xf32>
    %41 = arith.truncf %40 : vector<128x64xf32> to vector<128x64xbf16>
    %c0_14 = arith.constant 0 : index
    %c0_15 = arith.constant 0 : index
    %42 = vector.load %arg6[%c0_14, %c0_15] : memref<64x68xbf16, #tpu.memory_space<vmem>>, vector<64x68xbf16>
    %cst_16 = arith.constant dense<0.000000e+00> : vector<128x68xf32>
    %43 = tpu.matmul %41, %42, %cst_16 {dimension_numbers = #tpu.dot_dimension_numbers<[1], [0], [0], [1], [0, 0, 1, 1], [], []>} : vector<128x64xbf16>, vector<64x68xbf16>, vector<128x68xf32> -> vector<128x68xf32>
    %c0_17 = arith.constant 0 : index
    %c0_18 = arith.constant 0 : index
    %44 = vector.load %arg7[%c0_17, %c0_18] : memref<1x68xf32, #tpu.memory_space<vmem>>, vector<1x68xf32>
    %45 = vector.broadcast %44 : vector<1x68xf32> to vector<128x68xf32>
    %46 = arith.addf %43, %45 : vector<128x68xf32>
    %47 = vector.extract_strided_slice %46 {offsets = [0, 0], sizes = [128, 32], strides = [1, 1]} : vector<128x68xf32> to vector<128x32xf32>
    %48 = vector.extract_strided_slice %46 {offsets = [0, 32], sizes = [128, 4], strides = [1, 1]} : vector<128x68xf32> to vector<128x4xf32>
    %49 = vector.extract_strided_slice %46 {offsets = [0, 36], sizes = [128, 16], strides = [1, 1]} : vector<128x68xf32> to vector<128x16xf32>
    %50 = vector.shape_cast %49 : vector<128x16xf32> to vector<4x32x16xf32>
    %51 = vector.extract_strided_slice %46 {offsets = [0, 52], sizes = [128, 16], strides = [1, 1]} : vector<128x68xf32> to vector<128x16xf32>
    %52 = vector.shape_cast %51 : vector<128x16xf32> to vector<4x32x16xf32>
    %53 = arith.truncf %47 : vector<128x32xf32> to vector<128x32xbf16>
    %c0_19 = arith.constant 0 : index
    %c0_20 = arith.constant 0 : index
    %54 = vector.load %arg8[%c0_19, %c0_20] : memref<32x16xbf16, #tpu.memory_space<vmem>>, vector<32x16xbf16>
    %cst_21 = arith.constant dense<0.000000e+00> : vector<128x16xf32>
    %55 = tpu.matmul %53, %54, %cst_21 {dimension_numbers = #tpu.dot_dimension_numbers<[1], [0], [0], [1], [0, 0, 1, 1], [], []>} : vector<128x32xbf16>, vector<32x16xbf16>, vector<128x16xf32> -> vector<128x16xf32>
    %56 = vector.shape_cast %55 : vector<128x16xf32> to vector<4x32x16xf32>
    %57 = vector.extract_strided_slice %56 {offsets = [0, 0, 0], sizes = [1, 32, 16], strides = [1, 1, 1]} : vector<4x32x16xf32> to vector<1x32x16xf32>
    %58 = vector.extract_strided_slice %50 {offsets = [0, 0, 0], sizes = [1, 32, 16], strides = [1, 1, 1]} : vector<4x32x16xf32> to vector<1x32x16xf32>
    %59 = arith.addf %58, %57 : vector<1x32x16xf32>
    %60 = vector.extract_strided_slice %52 {offsets = [0, 0, 0], sizes = [1, 32, 16], strides = [1, 1, 1]} : vector<4x32x16xf32> to vector<1x32x16xf32>
    %61 = arith.addf %60, %57 : vector<1x32x16xf32>
    %62 = vector.extract_strided_slice %56 {offsets = [1, 0, 0], sizes = [1, 32, 16], strides = [1, 1, 1]} : vector<4x32x16xf32> to vector<1x32x16xf32>
    %63 = vector.extract_strided_slice %50 {offsets = [1, 0, 0], sizes = [1, 32, 16], strides = [1, 1, 1]} : vector<4x32x16xf32> to vector<1x32x16xf32>
    %64 = arith.addf %63, %62 : vector<1x32x16xf32>
    %65 = vector.extract_strided_slice %52 {offsets = [1, 0, 0], sizes = [1, 32, 16], strides = [1, 1, 1]} : vector<4x32x16xf32> to vector<1x32x16xf32>
    %66 = arith.addf %65, %62 : vector<1x32x16xf32>
    %67 = vector.extract_strided_slice %56 {offsets = [2, 0, 0], sizes = [1, 32, 16], strides = [1, 1, 1]} : vector<4x32x16xf32> to vector<1x32x16xf32>
    %68 = vector.extract_strided_slice %50 {offsets = [2, 0, 0], sizes = [1, 32, 16], strides = [1, 1, 1]} : vector<4x32x16xf32> to vector<1x32x16xf32>
    %69 = arith.addf %68, %67 : vector<1x32x16xf32>
    %70 = vector.extract_strided_slice %52 {offsets = [2, 0, 0], sizes = [1, 32, 16], strides = [1, 1, 1]} : vector<4x32x16xf32> to vector<1x32x16xf32>
    %71 = arith.addf %70, %67 : vector<1x32x16xf32>
    %72 = vector.extract_strided_slice %56 {offsets = [3, 0, 0], sizes = [1, 32, 16], strides = [1, 1, 1]} : vector<4x32x16xf32> to vector<1x32x16xf32>
    %73 = vector.extract_strided_slice %50 {offsets = [3, 0, 0], sizes = [1, 32, 16], strides = [1, 1, 1]} : vector<4x32x16xf32> to vector<1x32x16xf32>
    %74 = arith.addf %73, %72 : vector<1x32x16xf32>
    %75 = vector.extract_strided_slice %52 {offsets = [3, 0, 0], sizes = [1, 32, 16], strides = [1, 1, 1]} : vector<4x32x16xf32> to vector<1x32x16xf32>
    %76 = arith.addf %75, %72 : vector<1x32x16xf32>
    %77 = tpu.concatenate %59, %61, %64, %66, %69, %71, %74, %76 in 0 : vector<1x32x16xf32>, vector<1x32x16xf32>, vector<1x32x16xf32>, vector<1x32x16xf32>, vector<1x32x16xf32>, vector<1x32x16xf32>, vector<1x32x16xf32>, vector<1x32x16xf32> -> vector<8x32x16xf32>
    %c0_22 = arith.constant 0 : index
    %c0_23 = arith.constant 0 : index
    %78 = vector.load %arg9[%c0_22, %c0_23] : memref<1x16xf32, #tpu.memory_space<vmem>>, vector<1x16xf32>
    %79 = vector.shape_cast %78 : vector<1x16xf32> to vector<1x1x16xf32>
    %80 = vector.broadcast %79 : vector<1x1x16xf32> to vector<8x32x16xf32>
    %81 = arith.addf %77, %80 : vector<8x32x16xf32>
    %c7_24 = arith.constant 7 : index
    %c0_25 = arith.constant 0 : index
    %c0_26 = arith.constant 0 : index
    %82 = vector.load %arg11[%c7_24, %c0_25, %c0_26] : memref<15x32x16xf32, #tpu.memory_space<vmem>>, vector<8x32x16xf32>
    tpu.vector_store %arg11[%c7_24, %c0_25, %c0_26], %81 {strides = array<i32>} : memref<15x32x16xf32, #tpu.memory_space<vmem>>, vector<8x32x16xf32>,
    %83 = vector.shape_cast %48 : vector<128x4xf32> to vector<4x32x4xf32>
    %c3 = arith.constant 3 : index
    %c0_27 = arith.constant 0 : index
    %c0_28 = arith.constant 0 : index
    %84 = vector.load %arg10[%c3, %c0_27, %c0_28] : memref<15x32x4xf32, #tpu.memory_space<vmem>>, vector<4x32x4xf32>
    tpu.vector_store %arg10[%c3, %c0_27, %c0_28], %83 {strides = array<i32>} : memref<15x32x4xf32, #tpu.memory_space<vmem>>, vector<4x32x4xf32>,
    %85 = vector.shape_cast %47 : vector<128x32xf32> to vector<4x32x32xf32>
    %86 = vector.extract_strided_slice %85 {offsets = [0, 0, 0], sizes = [1, 32, 32], strides = [1, 1, 1]} : vector<4x32x32xf32> to vector<1x32x32xf32>
    %87 = vector.extract_strided_slice %85 {offsets = [2, 0, 0], sizes = [1, 32, 32], strides = [1, 1, 1]} : vector<4x32x32xf32> to vector<1x32x32xf32>
    %88 = tpu.concatenate %86, %87 in 0 : vector<1x32x32xf32>, vector<1x32x32xf32> -> vector<2x32x32xf32>
    %89 = vector.extract_strided_slice %85 {offsets = [1, 0, 0], sizes = [1, 32, 32], strides = [1, 1, 1]} : vector<4x32x32xf32> to vector<1x32x32xf32>
    %90 = vector.extract_strided_slice %85 {offsets = [3, 0, 0], sizes = [1, 32, 32], strides = [1, 1, 1]} : vector<4x32x32xf32> to vector<1x32x32xf32>
    %91 = tpu.concatenate %89, %90 in 0 : vector<1x32x32xf32>, vector<1x32x32xf32> -> vector<2x32x32xf32>
    %92 = tpu.concatenate %88, %91 in 2 : vector<2x32x32xf32>, vector<2x32x32xf32> -> vector<2x32x64xf32>
    %93 = vector.shape_cast %92 : vector<2x32x64xf32> to vector<64x64xf32>
    %94 = arith.truncf %93 : vector<64x64xf32> to vector<64x64xbf16>
    %c0_29 = arith.constant 0 : index
    %c0_30 = arith.constant 0 : index
    %95 = vector.load %arg6[%c0_29, %c0_30] : memref<64x68xbf16, #tpu.memory_space<vmem>>, vector<64x68xbf16>
    %cst_31 = arith.constant dense<0.000000e+00> : vector<64x68xf32>
    %96 = tpu.matmul %94, %95, %cst_31 {dimension_numbers = #tpu.dot_dimension_numbers<[1], [0], [0], [1], [0, 0, 1, 1], [], []>} : vector<64x64xbf16>, vector<64x68xbf16>, vector<64x68xf32> -> vector<64x68xf32>
    %c0_32 = arith.constant 0 : index
    %c0_33 = arith.constant 0 : index
    %97 = vector.load %arg7[%c0_32, %c0_33] : memref<1x68xf32, #tpu.memory_space<vmem>>, vector<1x68xf32>
    %98 = vector.broadcast %97 : vector<1x68xf32> to vector<64x68xf32>
    %99 = arith.addf %96, %98 : vector<64x68xf32>
    %100 = vector.extract_strided_slice %99 {offsets = [0, 0], sizes = [64, 32], strides = [1, 1]} : vector<64x68xf32> to vector<64x32xf32>
    %101 = vector.extract_strided_slice %99 {offsets = [0, 32], sizes = [64, 4], strides = [1, 1]} : vector<64x68xf32> to vector<64x4xf32>
    %102 = vector.extract_strided_slice %99 {offsets = [0, 36], sizes = [64, 16], strides = [1, 1]} : vector<64x68xf32> to vector<64x16xf32>
    %103 = vector.shape_cast %102 : vector<64x16xf32> to vector<2x32x16xf32>
    %104 = vector.extract_strided_slice %99 {offsets = [0, 52], sizes = [64, 16], strides = [1, 1]} : vector<64x68xf32> to vector<64x16xf32>
    %105 = vector.shape_cast %104 : vector<64x16xf32> to vector<2x32x16xf32>
    %106 = arith.truncf %100 : vector<64x32xf32> to vector<64x32xbf16>
    %c0_34 = arith.constant 0 : index
    %c0_35 = arith.constant 0 : index
    %107 = vector.load %arg8[%c0_34, %c0_35] : memref<32x16xbf16, #tpu.memory_space<vmem>>, vector<32x16xbf16>
    %cst_36 = arith.constant dense<0.000000e+00> : vector<64x16xf32>
    %108 = tpu.matmul %106, %107, %cst_36 {dimension_numbers = #tpu.dot_dimension_numbers<[1], [0], [0], [1], [0, 0, 1, 1], [], []>} : vector<64x32xbf16>, vector<32x16xbf16>, vector<64x16xf32> -> vector<64x16xf32>
    %109 = vector.shape_cast %108 : vector<64x16xf32> to vector<2x32x16xf32>
    %110 = vector.extract_strided_slice %109 {offsets = [0, 0, 0], sizes = [1, 32, 16], strides = [1, 1, 1]} : vector<2x32x16xf32> to vector<1x32x16xf32>
    %111 = vector.extract_strided_slice %103 {offsets = [0, 0, 0], sizes = [1, 32, 16], strides = [1, 1, 1]} : vector<2x32x16xf32> to vector<1x32x16xf32>
    %112 = arith.addf %111, %110 : vector<1x32x16xf32>
    %113 = vector.extract_strided_slice %105 {offsets = [0, 0, 0], sizes = [1, 32, 16], strides = [1, 1, 1]} : vector<2x32x16xf32> to vector<1x32x16xf32>
    %114 = arith.addf %113, %110 : vector<1x32x16xf32>
    %115 = vector.extract_strided_slice %109 {offsets = [1, 0, 0], sizes = [1, 32, 16], strides = [1, 1, 1]} : vector<2x32x16xf32> to vector<1x32x16xf32>
    %116 = vector.extract_strided_slice %103 {offsets = [1, 0, 0], sizes = [1, 32, 16], strides = [1, 1, 1]} : vector<2x32x16xf32> to vector<1x32x16xf32>
    %117 = arith.addf %116, %115 : vector<1x32x16xf32>
    %118 = vector.extract_strided_slice %105 {offsets = [1, 0, 0], sizes = [1, 32, 16], strides = [1, 1, 1]} : vector<2x32x16xf32> to vector<1x32x16xf32>
    %119 = arith.addf %118, %115 : vector<1x32x16xf32>
    %120 = tpu.concatenate %112, %114, %117, %119 in 0 : vector<1x32x16xf32>, vector<1x32x16xf32>, vector<1x32x16xf32>, vector<1x32x16xf32> -> vector<4x32x16xf32>
    %c0_37 = arith.constant 0 : index
    %c0_38 = arith.constant 0 : index
    %121 = vector.load %arg9[%c0_37, %c0_38] : memref<1x16xf32, #tpu.memory_space<vmem>>, vector<1x16xf32>
    %122 = vector.shape_cast %121 : vector<1x16xf32> to vector<1x1x16xf32>
    %123 = vector.broadcast %122 : vector<1x1x16xf32> to vector<4x32x16xf32>
    %124 = arith.addf %120, %123 : vector<4x32x16xf32>
    %c3_39 = arith.constant 3 : index
    %c0_40 = arith.constant 0 : index
    %c0_41 = arith.constant 0 : index
    %125 = vector.load %arg11[%c3_39, %c0_40, %c0_41] : memref<15x32x16xf32, #tpu.memory_space<vmem>>, vector<4x32x16xf32>
    tpu.vector_store %arg11[%c3_39, %c0_40, %c0_41], %124 {strides = array<i32>} : memref<15x32x16xf32, #tpu.memory_space<vmem>>, vector<4x32x16xf32>,
    %126 = vector.shape_cast %101 : vector<64x4xf32> to vector<2x32x4xf32>
    %c1 = arith.constant 1 : index
    %c0_42 = arith.constant 0 : index
    %c0_43 = arith.constant 0 : index
    %127 = vector.load %arg10[%c1, %c0_42, %c0_43] : memref<15x32x4xf32, #tpu.memory_space<vmem>>, vector<2x32x4xf32>
    tpu.vector_store %arg10[%c1, %c0_42, %c0_43], %126 {strides = array<i32>} : memref<15x32x4xf32, #tpu.memory_space<vmem>>, vector<2x32x4xf32>,
    %128 = vector.shape_cast %100 : vector<64x32xf32> to vector<2x32x32xf32>
    %129 = vector.extract_strided_slice %128 {offsets = [0, 0, 0], sizes = [1, 32, 32], strides = [1, 1, 1]} : vector<2x32x32xf32> to vector<1x32x32xf32>
    %130 = vector.extract_strided_slice %128 {offsets = [1, 0, 0], sizes = [1, 32, 32], strides = [1, 1, 1]} : vector<2x32x32xf32> to vector<1x32x32xf32>
    %131 = tpu.concatenate %129, %130 in 2 : vector<1x32x32xf32>, vector<1x32x32xf32> -> vector<1x32x64xf32>
    %132 = vector.shape_cast %131 : vector<1x32x64xf32> to vector<32x64xf32>
    %133 = arith.truncf %132 : vector<32x64xf32> to vector<32x64xbf16>
    %c0_44 = arith.constant 0 : index
    %c0_45 = arith.constant 0 : index
    %134 = vector.load %arg6[%c0_44, %c0_45] : memref<64x68xbf16, #tpu.memory_space<vmem>>, vector<64x68xbf16>
    %cst_46 = arith.constant dense<0.000000e+00> : vector<32x68xf32>
    %135 = tpu.matmul %133, %134, %cst_46 {dimension_numbers = #tpu.dot_dimension_numbers<[1], [0], [0], [1], [0, 0, 1, 1], [], []>} : vector<32x64xbf16>, vector<64x68xbf16>, vector<32x68xf32> -> vector<32x68xf32>
    %c0_47 = arith.constant 0 : index
    %c0_48 = arith.constant 0 : index
    %136 = vector.load %arg7[%c0_47, %c0_48] : memref<1x68xf32, #tpu.memory_space<vmem>>, vector<1x68xf32>
    %137 = vector.broadcast %136 : vector<1x68xf32> to vector<32x68xf32>
    %138 = arith.addf %135, %137 : vector<32x68xf32>
    %139 = vector.extract_strided_slice %138 {offsets = [0, 0], sizes = [32, 32], strides = [1, 1]} : vector<32x68xf32> to vector<32x32xf32>
    %140 = vector.extract_strided_slice %138 {offsets = [0, 32], sizes = [32, 4], strides = [1, 1]} : vector<32x68xf32> to vector<32x4xf32>
    %141 = vector.extract_strided_slice %138 {offsets = [0, 36], sizes = [32, 16], strides = [1, 1]} : vector<32x68xf32> to vector<32x16xf32>
    %142 = vector.shape_cast %141 : vector<32x16xf32> to vector<1x32x16xf32>
    %143 = vector.extract_strided_slice %138 {offsets = [0, 52], sizes = [32, 16], strides = [1, 1]} : vector<32x68xf32> to vector<32x16xf32>
    %144 = vector.shape_cast %143 : vector<32x16xf32> to vector<1x32x16xf32>
    %145 = arith.truncf %139 : vector<32x32xf32> to vector<32x32xbf16>
    %c0_49 = arith.constant 0 : index
    %c0_50 = arith.constant 0 : index
    %146 = vector.load %arg8[%c0_49, %c0_50] : memref<32x16xbf16, #tpu.memory_space<vmem>>, vector<32x16xbf16>
    %cst_51 = arith.constant dense<0.000000e+00> : vector<32x16xf32>
    %147 = tpu.matmul %145, %146, %cst_51 {dimension_numbers = #tpu.dot_dimension_numbers<[1], [0], [0], [1], [0, 0, 1, 1], [], []>} : vector<32x32xbf16>, vector<32x16xbf16>, vector<32x16xf32> -> vector<32x16xf32>
    %148 = vector.shape_cast %147 : vector<32x16xf32> to vector<1x32x16xf32>
    %149 = arith.addf %142, %148 : vector<1x32x16xf32>
    %150 = arith.addf %144, %148 : vector<1x32x16xf32>
    %151 = tpu.concatenate %149, %150 in 0 : vector<1x32x16xf32>, vector<1x32x16xf32> -> vector<2x32x16xf32>
    %c0_52 = arith.constant 0 : index
    %c0_53 = arith.constant 0 : index
    %152 = vector.load %arg9[%c0_52, %c0_53] : memref<1x16xf32, #tpu.memory_space<vmem>>, vector<1x16xf32>
    %153 = vector.shape_cast %152 : vector<1x16xf32> to vector<1x1x16xf32>
    %154 = vector.broadcast %153 : vector<1x1x16xf32> to vector<2x32x16xf32>
    %155 = arith.addf %151, %154 : vector<2x32x16xf32>
    %c1_54 = arith.constant 1 : index
    %c0_55 = arith.constant 0 : index
    %c0_56 = arith.constant 0 : index
    %156 = vector.load %arg11[%c1_54, %c0_55, %c0_56] : memref<15x32x16xf32, #tpu.memory_space<vmem>>, vector<2x32x16xf32>
    tpu.vector_store %arg11[%c1_54, %c0_55, %c0_56], %155 {strides = array<i32>} : memref<15x32x16xf32, #tpu.memory_space<vmem>>, vector<2x32x16xf32>,
    %157 = vector.shape_cast %140 : vector<32x4xf32> to vector<1x32x4xf32>
    %c0_57 = arith.constant 0 : index
    %c0_58 = arith.constant 0 : index
    %c0_59 = arith.constant 0 : index
    %158 = vector.load %arg10[%c0_57, %c0_58, %c0_59] : memref<15x32x4xf32, #tpu.memory_space<vmem>>, vector<1x32x4xf32>
    tpu.vector_store %arg10[%c0_57, %c0_58, %c0_59], %157 {strides = array<i32>} : memref<15x32x4xf32, #tpu.memory_space<vmem>>, vector<1x32x4xf32>,
    %cst_60 = arith.constant 1.000000e+00 : f32
    %159 = vector.broadcast %cst_60 : f32 to vector<1x32x16xf32>
    %c0_61 = arith.constant 0 : index
    %c0_62 = arith.constant 0 : index
    %c0_63 = arith.constant 0 : index
    %160 = vector.load %arg11[%c0_61, %c0_62, %c0_63] : memref<15x32x16xf32, #tpu.memory_space<vmem>>, vector<1x32x16xf32>
    tpu.vector_store %arg11[%c0_61, %c0_62, %c0_63], %159 {strides = array<i32>} : memref<15x32x16xf32, #tpu.memory_space<vmem>>, vector<1x32x16xf32>,
    return
  }
  func.func @transform_0(%arg0: i32) -> (i32, i32, i32) {
    %c0_i32 = arith.constant 0 : i32
    %c0_i32_0 = arith.constant 0 : i32
    %c0_i32_1 = arith.constant 0 : i32
    return %c0_i32, %arg0, %c0_i32_0 : i32, i32, i32
  }
  func.func @transform_1(%arg0: i32) -> (i32, i32) {
    %c0_i32 = arith.constant 0 : i32
    %c0_i32_0 = arith.constant 0 : i32
    %c0_i32_1 = arith.constant 0 : i32
    return %c0_i32, %c0_i32_0 : i32, i32
  }
  func.func @transform_2(%arg0: i32) -> (i32, i32) {
    %c0_i32 = arith.constant 0 : i32
    %c0_i32_0 = arith.constant 0 : i32
    %c0_i32_1 = arith.constant 0 : i32
    return %c0_i32, %c0_i32_0 : i32, i32
  }
  func.func @transform_3(%arg0: i32) -> (i32, i32) {
    %c0_i32 = arith.constant 0 : i32
    %c0_i32_0 = arith.constant 0 : i32
    %c0_i32_1 = arith.constant 0 : i32
    return %c0_i32, %c0_i32_0 : i32, i32
  }
  func.func @transform_4(%arg0: i32) -> (i32, i32) {
    %c0_i32 = arith.constant 0 : i32
    %c0_i32_0 = arith.constant 0 : i32
    %c0_i32_1 = arith.constant 0 : i32
    return %c0_i32, %c0_i32_0 : i32, i32
  }
  func.func @transform_5(%arg0: i32) -> (i32, i32) {
    %c0_i32 = arith.constant 0 : i32
    %c0_i32_0 = arith.constant 0 : i32
    %c0_i32_1 = arith.constant 0 : i32
    return %c0_i32, %c0_i32_0 : i32, i32
  }
  func.func @transform_6(%arg0: i32) -> (i32, i32) {
    %c0_i32 = arith.constant 0 : i32
    %c0_i32_0 = arith.constant 0 : i32
    %c0_i32_1 = arith.constant 0 : i32
    return %c0_i32, %c0_i32_0 : i32, i32
  }
  func.func @transform_7(%arg0: i32) -> (i32, i32) {
    %c0_i32 = arith.constant 0 : i32
    %c0_i32_0 = arith.constant 0 : i32
    %c0_i32_1 = arith.constant 0 : i32
    return %c0_i32, %c0_i32_0 : i32, i32
  }
  func.func @transform_8(%arg0: i32) -> (i32, i32) {
    %c0_i32 = arith.constant 0 : i32
    %c0_i32_0 = arith.constant 0 : i32
    %c0_i32_1 = arith.constant 0 : i32
    return %c0_i32, %c0_i32_0 : i32, i32
  }
  func.func @transform_9(%arg0: i32) -> (i32, i32, i32) {
    %c0_i32 = arith.constant 0 : i32
    %c0_i32_0 = arith.constant 0 : i32
    %c0_i32_1 = arith.constant 0 : i32
    return %c0_i32, %arg0, %c0_i32_0 : i32, i32, i32
  }
  func.func @transform_10(%arg0: i32) -> (i32, i32, i32) {
    %c0_i32 = arith.constant 0 : i32
    %c0_i32_0 = arith.constant 0 : i32
    %c0_i32_1 = arith.constant 0 : i32
    return %c0_i32, %arg0, %c0_i32_0 : i32, i32, i32
  }
}

</mosaic_0001>

<llo_original>
// kernel: tpu_custom_call.1
$region0: #{tpu_custom_call.1}
  #allocation0 [shape = 'u32[]', space=smem, size = 0x4, offset = 0x4, fixed_abs, tag = 'smem constant byte address 0x4 - core index']
  #allocation1 [shape = 'u32[144,128]{1,0:T(1,128)}', space=vmem, size = 0x12000, scoped, tag = 'internal scratch']
  %s0 = inlined_call_operand.vmem [shape: bf16[8,64,16], index: 0, kind: input, shape index: {}]
  %s1 = inlined_call_operand.vmem [shape: bf16[16,96], index: 1, kind: input, shape index: {}]
  %s2 = inlined_call_operand.vmem [shape: f32[1,96], index: 2, kind: input, shape index: {}]
  %s3 = inlined_call_operand.vmem [shape: bf16[32,4], index: 3, kind: input, shape index: {}]
  %s4 = inlined_call_operand.vmem [shape: f32[1,4], index: 4, kind: input, shape index: {}]
  %s5 = inlined_call_operand.vmem [shape: bf16[64,68], index: 5, kind: input, shape index: {}]
  %s6 = inlined_call_operand.vmem [shape: f32[1,68], index: 6, kind: input, shape index: {}]
  %s7 = inlined_call_operand.vmem [shape: bf16[32,16], index: 7, kind: input, shape index: {}]
  %s8 = inlined_call_operand.vmem [shape: f32[1,16], index: 8, kind: input, shape index: {}]
  %s9 = inlined_call_operand.vmem [shape: f32[15,64,4], index: 9, kind: output, shape index: {0}]
  %s10 = inlined_call_operand.vmem [shape: f32[15,64,16], index: 10, kind: output, shape index: {1}]
  %11 = xla_tuple %s9, %s10
  %s12 = sld [smem:[#allocation0]]
  $region186: #{tpu_custom_call.1} parent=0
    _
  %s14 = ssub.s32 1, %s12
  %s15 = scalar_select 0, %s14, %s12
  $region1: #{tpu_custom_call.1} parent=0
    #allocation2 [shape = 'u8[131072]{0}', space=vmem, size = 0x20000, scoped, tag = 'input window, operand 0']
    #allocation3 [shape = 'u8[491520]{0}', space=vmem, size = 0x78000, scoped, tag = 'output window, operand 0']
    #allocation4 [shape = 'u8[491520]{0}', space=vmem, size = 0x78000, scoped, tag = 'output window, operand 1']
    loop: start=0, step=1, limit=4
    $region2: #{tpu_custom_call.1} parent=1 // loop_pre_header
      _
    $region3: #{tpu_custom_call.1} parent=1 // loop_header
      %s17 = sphi 0, %s21
      %p18 = scmp.ge.s32.totalorder %s17, 4
      %s27 = sphi 0, %s29
      %s30 = sphi 0, %s27
      %s31 = sphi 0, %s30
      %s47 = sphi 0, %s31
      %s51 = sphi 0, %s51
      %s53 = sphi 0, %s51
      %s54 = sphi 0, %s53
      %s68 = sphi 0, %s54
      %s72 = sphi 0, %s72
      %s74 = sphi 0, %s72
      %s75 = sphi 0, %s74
      %s89 = sphi 0, %s75
      %s93 = sphi 0, %s93
      %s95 = sphi 0, %s93
      %s96 = sphi 0, %s95
      %s110 = sphi 0, %s96
      %s114 = sphi 0, %s114
      %s116 = sphi 0, %s114
      %s117 = sphi 0, %s116
      %s131 = sphi 0, %s117
      %s135 = sphi 0, %s135
      %s137 = sphi 0, %s135
      %s138 = sphi 0, %s137
      %s152 = sphi 0, %s138
      %s156 = sphi 0, %s156
      %s158 = sphi 0, %s156
      %s159 = sphi 0, %s158
      %s173 = sphi 0, %s159
      %s177 = sphi 0, %s177
      %s179 = sphi 0, %s177
      %s180 = sphi 0, %s179
      %s194 = sphi 0, %s180
      %s198 = sphi 0, %s198
      %s200 = sphi 0, %s198
      %s201 = sphi 0, %s200
      %s215 = sphi 0, %s201
      %s221 = sphi 0, %s223
      %s224 = sphi 0, %s221
      %s225 = sphi 0, %s224
      %s241 = sphi 0, %s225
      %s247 = sphi 0, %s249
      %s250 = sphi 0, %s247
      %s251 = sphi 0, %s250
      %s267 = sphi 0, %s251
    $region4: #{tpu_custom_call.1} parent=1 // loop_header_branch
      %20 = sbr.rel (%p18) target = $region8
    $region5: #{tpu_custom_call.1} parent=1 // loop_body
      %s22 = ssub.s32 %s17, 1
      %s23 = ssub.s32 %s17, 2
      %s24 = sadd.s32 %s17, 1
      %s25 = ssub.s32 %s17, %s24
      %p26 = scmp.eq.s32.totalorder %s25, 0
      %s28 = sadd.s32 %s27, 1
      %s29 = scalar_select %p26, %s27, %s28
      %p32 = pneg %p26
      %p33 = scmp.eq.s32.totalorder %s17, 1
      %p34 = por %p32, %p33
      %p35 = scmp.ne.s32.totalorder %s27, %s30
      %p36 = scmp.eq.s32.totalorder %s17, 0
      %p37 = por %p35, %p36
      %p38 = scmp.ne.s32.totalorder %s27, %s30
      %p39 = scmp.eq.s32.totalorder %s22, 1
      %p40 = por %p38, %p39
      %p41 = scmp.ne.s32.totalorder %s30, %s31
      %p42 = scmp.eq.s32.totalorder %s22, 0
      %p43 = por %p41, %p42
      %p44 = scmp.ne.s32.totalorder %s30, %s31
      %p45 = scmp.eq.s32.totalorder %s23, 1
      %p46 = por %p44, %p45
      %p48 = scmp.ne.s32.totalorder %s31, %s47
      %p49 = scmp.eq.s32.totalorder %s23, 0
      %p50 = por %p48, %p49
      %s52 = sadd.s32 %s51, 1
      %p55 = scmp.eq.s32.totalorder %s17, 1
      %p56 = scmp.ne.s32.totalorder %s51, %s53
      %p57 = scmp.eq.s32.totalorder %s17, 0
      %p58 = por %p56, %p57
      %p59 = scmp.ne.s32.totalorder %s51, %s53
      %p60 = scmp.eq.s32.totalorder %s22, 1
      %p61 = por %p59, %p60
      %p62 = scmp.ne.s32.totalorder %s53, %s54
      %p63 = scmp.eq.s32.totalorder %s22, 0
      %p64 = por %p62, %p63
      %p65 = scmp.ne.s32.totalorder %s53, %s54
      %p66 = scmp.eq.s32.totalorder %s23, 1
      %p67 = por %p65, %p66
      %p69 = scmp.ne.s32.totalorder %s54, %s68
      %p70 = scmp.eq.s32.totalorder %s23, 0
      %p71 = por %p69, %p70
      %s73 = sadd.s32 %s72, 1
      %p76 = scmp.eq.s32.totalorder %s17, 1
      %p77 = scmp.ne.s32.totalorder %s72, %s74
      %p78 = scmp.eq.s32.totalorder %s17, 0
      %p79 = por %p77, %p78
      %p80 = scmp.ne.s32.totalorder %s72, %s74
      %p81 = scmp.eq.s32.totalorder %s22, 1
      %p82 = por %p80, %p81
      %p83 = scmp.ne.s32.totalorder %s74, %s75
      %p84 = scmp.eq.s32.totalorder %s22, 0
      %p85 = por %p83, %p84
      %p86 = scmp.ne.s32.totalorder %s74, %s75
      %p87 = scmp.eq.s32.totalorder %s23, 1
      %p88 = por %p86, %p87
      %p90 = scmp.ne.s32.totalorder %s75, %s89
      %p91 = scmp.eq.s32.totalorder %s23, 0
      %p92 = por %p90, %p91
      %s94 = sadd.s32 %s93, 1
      %p97 = scmp.eq.s32.totalorder %s17, 1
      %p98 = scmp.ne.s32.totalorder %s93, %s95
      %p99 = scmp.eq.s32.totalorder %s17, 0
      %p100 = por %p98, %p99
      %p101 = scmp.ne.s32.totalorder %s93, %s95
      %p102 = scmp.eq.s32.totalorder %s22, 1
      %p103 = por %p101, %p102
      %p104 = scmp.ne.s32.totalorder %s95, %s96
      %p105 = scmp.eq.s32.totalorder %s22, 0
      %p106 = por %p104, %p105
      %p107 = scmp.ne.s32.totalorder %s95, %s96
      %p108 = scmp.eq.s32.totalorder %s23, 1
      %p109 = por %p107, %p108
      %p111 = scmp.ne.s32.totalorder %s96, %s110
      %p112 = scmp.eq.s32.totalorder %s23, 0
      %p113 = por %p111, %p112
      %s115 = sadd.s32 %s114, 1
      %p118 = scmp.eq.s32.totalorder %s17, 1
      %p119 = scmp.ne.s32.totalorder %s114, %s116
      %p120 = scmp.eq.s32.totalorder %s17, 0
      %p121 = por %p119, %p120
      %p122 = scmp.ne.s32.totalorder %s114, %s116
      %p123 = scmp.eq.s32.totalorder %s22, 1
      %p124 = por %p122, %p123
      %p125 = scmp.ne.s32.totalorder %s116, %s117
      %p126 = scmp.eq.s32.totalorder %s22, 0
      %p127 = por %p125, %p126
      %p128 = scmp.ne.s32.totalorder %s116, %s117
      %p129 = scmp.eq.s32.totalorder %s23, 1
      %p130 = por %p128, %p129
      %p132 = scmp.ne.s32.totalorder %s117, %s131
      %p133 = scmp.eq.s32.totalorder %s23, 0
      %p134 = por %p132, %p133
      %s136 = sadd.s32 %s135, 1
      %p139 = scmp.eq.s32.totalorder %s17, 1
      %p140 = scmp.ne.s32.totalorder %s135, %s137
      %p141 = scmp.eq.s32.totalorder %s17, 0
      %p142 = por %p140, %p141
      %p143 = scmp.ne.s32.totalorder %s135, %s137
      %p144 = scmp.eq.s32.totalorder %s22, 1
      %p145 = por %p143, %p144
      %p146 = scmp.ne.s32.totalorder %s137, %s138
      %p147 = scmp.eq.s32.totalorder %s22, 0
      %p148 = por %p146, %p147
      %p149 = scmp.ne.s32.totalorder %s137, %s138
      %p150 = scmp.eq.s32.totalorder %s23, 1
      %p151 = por %p149, %p150
      %p153 = scmp.ne.s32.totalorder %s138, %s152
      %p154 = scmp.eq.s32.totalorder %s23, 0
      %p155 = por %p153, %p154
      %s157 = sadd.s32 %s156, 1
      %p160 = scmp.eq.s32.totalorder %s17, 1
      %p161 = scmp.ne.s32.totalorder %s156, %s158
      %p162 = scmp.eq.s32.totalorder %s17, 0
      %p163 = por %p161, %p162
      %p164 = scmp.ne.s32.totalorder %s156, %s158
      %p165 = scmp.eq.s32.totalorder %s22, 1
      %p166 = por %p164, %p165
      %p167 = scmp.ne.s32.totalorder %s158, %s159
      %p168 = scmp.eq.s32.totalorder %s22, 0
      %p169 = por %p167, %p168
      %p170 = scmp.ne.s32.totalorder %s158, %s159
      %p171 = scmp.eq.s32.totalorder %s23, 1
      %p172 = por %p170, %p171
      %p174 = scmp.ne.s32.totalorder %s159, %s173
      %p175 = scmp.eq.s32.totalorder %s23, 0
      %p176 = por %p174, %p175
      %s178 = sadd.s32 %s177, 1
      %p181 = scmp.eq.s32.totalorder %s17, 1
      %p182 = scmp.ne.s32.totalorder %s177, %s179
      %p183 = scmp.eq.s32.totalorder %s17, 0
      %p184 = por %p182, %p183
      %p185 = scmp.ne.s32.totalorder %s177, %s179
      %p186 = scmp.eq.s32.totalorder %s22, 1
      %p187 = por %p185, %p186
      %p188 = scmp.ne.s32.totalorder %s179, %s180
      %p189 = scmp.eq.s32.totalorder %s22, 0
      %p190 = por %p188, %p189
      %p191 = scmp.ne.s32.totalorder %s179, %s180
      %p192 = scmp.eq.s32.totalorder %s23, 1
      %p193 = por %p191, %p192
      %p195 = scmp.ne.s32.totalorder %s180, %s194
      %p196 = scmp.eq.s32.totalorder %s23, 0
      %p197 = por %p195, %p196
      %s199 = sadd.s32 %s198, 1
      %p202 = scmp.eq.s32.totalorder %s17, 1
      %p203 = scmp.ne.s32.totalorder %s198, %s200
      %p204 = scmp.eq.s32.totalorder %s17, 0
      %p205 = por %p203, %p204
      %p206 = scmp.ne.s32.totalorder %s198, %s200
      %p207 = scmp.eq.s32.totalorder %s22, 1
      %p208 = por %p206, %p207
      %p209 = scmp.ne.s32.totalorder %s200, %s201
      %p210 = scmp.eq.s32.totalorder %s22, 0
      %p211 = por %p209, %p210
      %p212 = scmp.ne.s32.totalorder %s200, %s201
      %p213 = scmp.eq.s32.totalorder %s23, 1
      %p214 = por %p212, %p213
      %p216 = scmp.ne.s32.totalorder %s201, %s215
      %p217 = scmp.eq.s32.totalorder %s23, 0
      %p218 = por %p216, %p217
      %s219 = ssub.s32 %s17, %s24
      %p220 = scmp.eq.s32.totalorder %s219, 0
      %s222 = sadd.s32 %s221, 1
      %s223 = scalar_select %p220, %s221, %s222
      %p226 = pneg %p220
      %p227 = scmp.eq.s32.totalorder %s17, 1
      %p228 = por %p226, %p227
      %p229 = scmp.ne.s32.totalorder %s221, %s224
      %p230 = scmp.eq.s32.totalorder %s17, 0
      %p231 = por %p229, %p230
      %p232 = scmp.ne.s32.totalorder %s221, %s224
      %p233 = scmp.eq.s32.totalorder %s22, 1
      %p234 = por %p232, %p233
      %p235 = scmp.ne.s32.totalorder %s224, %s225
      %p236 = scmp.eq.s32.totalorder %s22, 0
      %p237 = por %p235, %p236
      %p238 = scmp.ne.s32.totalorder %s224, %s225
      %p239 = scmp.eq.s32.totalorder %s23, 1
      %p240 = por %p238, %p239
      %p242 = scmp.ne.s32.totalorder %s225, %s241
      %p243 = scmp.eq.s32.totalorder %s23, 0
      %p244 = por %p242, %p243
      %s245 = ssub.s32 %s17, %s24
      %p246 = scmp.eq.s32.totalorder %s245, 0
      %s248 = sadd.s32 %s247, 1
      %s249 = scalar_select %p246, %s247, %s248
      %p252 = pneg %p246
      %p253 = scmp.eq.s32.totalorder %s17, 1
      %p254 = por %p252, %p253
      %p255 = scmp.ne.s32.totalorder %s247, %s250
      %p256 = scmp.eq.s32.totalorder %s17, 0
      %p257 = por %p255, %p256
      %p258 = scmp.ne.s32.totalorder %s247, %s250
      %p259 = scmp.eq.s32.totalorder %s22, 1
      %p260 = por %p258, %p259
      %p261 = scmp.ne.s32.totalorder %s250, %s251
      %p262 = scmp.eq.s32.totalorder %s22, 0
      %p263 = por %p261, %p262
      %p264 = scmp.ne.s32.totalorder %s250, %s251
      %p265 = scmp.eq.s32.totalorder %s23, 1
      %p266 = por %p264, %p265
      %p268 = scmp.ne.s32.totalorder %s251, %s267
      %p269 = scmp.eq.s32.totalorder %s23, 0
      %p270 = por %p268, %p269
      %p271 = scmp.le.s32.totalorder 1, %s17
      %p272 = scmp.lt.s32.totalorder %s17, 3
      %p273 = pnand %p271, %p272
      %p274 = pneg %p273
      // Predicated region
      $region9: #{tpu_custom_call.1} parent=5 // pred_check
        _
      $region10: #{tpu_custom_call.1} parent=5 // pred_check_branch
        %276 = sbr.rel (%p273) target = $region12
      $region11: #{tpu_custom_call.1} parent=5 // pred_region
        %s277 = ssub.s32 %s17, 1
        // Predicated region
        $region13: #{tpu_custom_call.1} parent=11 // pred_check
          %p278 = pneg %p64
        $region14: #{tpu_custom_call.1} parent=11 // pred_check_branch
          %280 = sbr.rel (%p278) target = $region16
        $region15: #{tpu_custom_call.1} parent=11 // pred_region
          _
        $region16: #{tpu_custom_call.1} parent=11 // pred_fallthru
          _
        // Predicated region
        $region17: #{tpu_custom_call.1} parent=11 // pred_check
          %p281 = pneg %p85
        $region18: #{tpu_custom_call.1} parent=11 // pred_check_branch
          %283 = sbr.rel (%p281) target = $region20
        $region19: #{tpu_custom_call.1} parent=11 // pred_region
          _
        $region20: #{tpu_custom_call.1} parent=11 // pred_fallthru
          _
        // Predicated region
        $region21: #{tpu_custom_call.1} parent=11 // pred_check
          %p284 = pneg %p106
        $region22: #{tpu_custom_call.1} parent=11 // pred_check_branch
          %286 = sbr.rel (%p284) target = $region24
        $region23: #{tpu_custom_call.1} parent=11 // pred_region
          _
        $region24: #{tpu_custom_call.1} parent=11 // pred_fallthru
          _
        // Predicated region
        $region25: #{tpu_custom_call.1} parent=11 // pred_check
          %p287 = pneg %p127
        $region26: #{tpu_custom_call.1} parent=11 // pred_check_branch
          %289 = sbr.rel (%p287) target = $region28
        $region27: #{tpu_custom_call.1} parent=11 // pred_region
          _
        $region28: #{tpu_custom_call.1} parent=11 // pred_fallthru
          _
        // Predicated region
        $region29: #{tpu_custom_call.1} parent=11 // pred_check
          %p290 = pneg %p148
        $region30: #{tpu_custom_call.1} parent=11 // pred_check_branch
          %292 = sbr.rel (%p290) target = $region32
        $region31: #{tpu_custom_call.1} parent=11 // pred_region
          _
        $region32: #{tpu_custom_call.1} parent=11 // pred_fallthru
          _
        // Predicated region
        $region33: #{tpu_custom_call.1} parent=11 // pred_check
          %p293 = pneg %p169
        $region34: #{tpu_custom_call.1} parent=11 // pred_check_branch
          %295 = sbr.rel (%p293) target = $region36
        $region35: #{tpu_custom_call.1} parent=11 // pred_region
          _
        $region36: #{tpu_custom_call.1} parent=11 // pred_fallthru
          _
        // Predicated region
        $region37: #{tpu_custom_call.1} parent=11 // pred_check
          %p296 = pneg %p190
        $region38: #{tpu_custom_call.1} parent=11 // pred_check_branch
          %298 = sbr.rel (%p296) target = $region40
        $region39: #{tpu_custom_call.1} parent=11 // pred_region
          _
        $region40: #{tpu_custom_call.1} parent=11 // pred_fallthru
          _
        // Predicated region
        $region41: #{tpu_custom_call.1} parent=11 // pred_check
          %p299 = pneg %p211
        $region42: #{tpu_custom_call.1} parent=11 // pred_check_branch
          %301 = sbr.rel (%p299) target = $region44
        $region43: #{tpu_custom_call.1} parent=11 // pred_region
          _
        $region44: #{tpu_custom_call.1} parent=11 // pred_fallthru
          _
      $region12: #{tpu_custom_call.1} parent=5 // pred_fallthru
        _
      %p302 = scmp.lt.s32.totalorder %s17, 2
      // Predicated region
      $region45: #{tpu_custom_call.1} parent=5 // pred_check
        %p303 = pneg %p302
      $region46: #{tpu_custom_call.1} parent=5 // pred_check_branch
        %305 = sbr.rel (%p303) target = $region48
      $region47: #{tpu_custom_call.1} parent=5 // pred_region
        // Predicated region
        $region49: #{tpu_custom_call.1} parent=47 // pred_check
          %p306 = pneg %p37
        $region50: #{tpu_custom_call.1} parent=47 // pred_check_branch
          %308 = sbr.rel (%p306) target = $region52
        $region51: #{tpu_custom_call.1} parent=47 // pred_region
          %s309 = sand.u32 %s27, 1
          %s310 = sand.u32 %s27, 1
          %s311 = smul.addr %s310, 128
          %s312 = scalar_lea.vmem [#allocation2], %s311
          %s313 = smul.u32 4, %s17
          %s314 = smul.addr %s313, 4
          %s315 = scalar_lea.vmem %s0, %s314
          // Predicated region
          $region53: #{tpu_custom_call.1} parent=51 // pred_check
            _
          $region54: #{tpu_custom_call.1} parent=51 // pred_check_branch
            %317 = sbr.rel (0) target = $region56
          $region55: #{tpu_custom_call.1} parent=51 // pred_region
            // Predicated region
            $region57: #{tpu_custom_call.1} parent=55 // pred_check
              _
            $region58: #{tpu_custom_call.1} parent=55 // pred_check_branch
              %319 = sbr.rel target = $region60
            $region59: #{tpu_custom_call.1} parent=55 // pred_region
              // Predicated region
              $region72: #{tpu_custom_call.1} parent=59 // pred_check
                _
              $region73: #{tpu_custom_call.1} parent=59 // pred_check_branch
                %397 = sbr.rel (0) target = $region75
              $region74: #{tpu_custom_call.1} parent=59 // pred_region
                loop: start=0, step=1, limit=1
                $region76: #{tpu_custom_call.1} parent=74 // loop_pre_header
                  _
                $region77: #{tpu_custom_call.1} parent=74 // loop_header
                  %s399 = sphi 0, %s403
                  %p400 = scmp.ge.s32.totalorder %s399, 1
                  %s404 = sphi %s315, %s315
                  %s405 = sphi %s312, %s312
                $region78: #{tpu_custom_call.1} parent=74 // loop_header_branch
                  %402 = sbr.rel (%p400) target = $region82
                $region79: #{tpu_custom_call.1} parent=74 // loop_body
                  _
                $region80: #{tpu_custom_call.1} parent=74 // loop_footer
                  %s403 = sadd.s32 1, %s399
                $region81: #{tpu_custom_call.1} parent=74 // loop_footer_branch
                  %398 = sbr.rel target = $region77
                $region82: #{tpu_custom_call.1} parent=74 // loop_exit
                  _
                %s407 = ssub.s32 16, 1
                loop: start=0, step=1, limit=1
                $region83: #{tpu_custom_call.1} parent=74 // loop_pre_header
                  _
                $region84: #{tpu_custom_call.1} parent=74 // loop_header
                  %s409 = sphi 0, %s413
                  %p410 = scmp.ge.s32.totalorder %s409, 1
                  %s414 = sphi %s315, %s315
                  %s415 = sphi %s312, %s312
                $region85: #{tpu_custom_call.1} parent=74 // loop_header_branch
                  %412 = sbr.rel (%p410) target = $region89
                $region86: #{tpu_custom_call.1} parent=74 // loop_body
                  %v416 = vld [vmem:[%s414] sm:%s407]
                  %417 = vst [vmem:[%s415] sm:%s407] %v416
                  %v418 = vld [vmem:[%s414 + $0x4] sm:%s407]
                  %419 = vst [vmem:[%s415 + $0x4] sm:%s407] %v418
                  %v420 = vld [vmem:[%s414 + $0x8] sm:%s407]
                  %421 = vst [vmem:[%s415 + $0x8] sm:%s407] %v420
                  %v422 = vld [vmem:[%s414 + $0xc] sm:%s407]
                  %423 = vst [vmem:[%s415 + $0xc] sm:%s407] %v422
                  %v424 = vld [vmem:[%s414 + $0x20] sm:%s407]
                  %425 = vst [vmem:[%s415 + $0x10] sm:%s407] %v424
                  %v426 = vld [vmem:[%s414 + $0x24] sm:%s407]
                  %427 = vst [vmem:[%s415 + $0x14] sm:%s407] %v426
                  %v428 = vld [vmem:[%s414 + $0x28] sm:%s407]
                  %429 = vst [vmem:[%s415 + $0x18] sm:%s407] %v428
                  %v430 = vld [vmem:[%s414 + $0x2c] sm:%s407]
                  %431 = vst [vmem:[%s415 + $0x1c] sm:%s407] %v430
                  %v432 = vld [vmem:[%s414 + $0x40] sm:%s407]
                  %433 = vst [vmem:[%s415 + $0x20] sm:%s407] %v432
                  %v434 = vld [vmem:[%s414 + $0x44] sm:%s407]
                  %435 = vst [vmem:[%s415 + $0x24] sm:%s407] %v434
                  %v436 = vld [vmem:[%s414 + $0x48] sm:%s407]
                  %437 = vst [vmem:[%s415 + $0x28] sm:%s407] %v436
                  %v438 = vld [vmem:[%s414 + $0x4c] sm:%s407]
                  %439 = vst [vmem:[%s415 + $0x2c] sm:%s407] %v438
                  %v440 = vld [vmem:[%s414 + $0x60] sm:%s407]
                  %441 = vst [vmem:[%s415 + $0x30] sm:%s407] %v440
                  %v442 = vld [vmem:[%s414 + $0x64] sm:%s407]
                  %443 = vst [vmem:[%s415 + $0x34] sm:%s407] %v442
                  %v444 = vld [vmem:[%s414 + $0x68] sm:%s407]
                  %445 = vst [vmem:[%s415 + $0x38] sm:%s407] %v444
                  %v446 = vld [vmem:[%s414 + $0x6c] sm:%s407]
                  %447 = vst [vmem:[%s415 + $0x3c] sm:%s407] %v446
                  %v448 = vld [vmem:[%s414 + $0x80] sm:%s407]
                  %449 = vst [vmem:[%s415 + $0x40] sm:%s407] %v448
                  %v450 = vld [vmem:[%s414 + $0x84] sm:%s407]
                  %451 = vst [vmem:[%s415 + $0x44] sm:%s407] %v450
                  %v452 = vld [vmem:[%s414 + $0x88] sm:%s407]
                  %453 = vst [vmem:[%s415 + $0x48] sm:%s407] %v452
                  %v454 = vld [vmem:[%s414 + $0x8c] sm:%s407]
                  %455 = vst [vmem:[%s415 + $0x4c] sm:%s407] %v454
                  %v456 = vld [vmem:[%s414 + $0xa0] sm:%s407]
                  %457 = vst [vmem:[%s415 + $0x50] sm:%s407] %v456
                  %v458 = vld [vmem:[%s414 + $0xa4] sm:%s407]
                  %459 = vst [vmem:[%s415 + $0x54] sm:%s407] %v458
                  %v460 = vld [vmem:[%s414 + $0xa8] sm:%s407]
                  %461 = vst [vmem:[%s415 + $0x58] sm:%s407] %v460
                  %v462 = vld [vmem:[%s414 + $0xac] sm:%s407]
                  %463 = vst [vmem:[%s415 + $0x5c] sm:%s407] %v462
                  %v464 = vld [vmem:[%s414 + $0xc0] sm:%s407]
                  %465 = vst [vmem:[%s415 + $0x60] sm:%s407] %v464
                  %v466 = vld [vmem:[%s414 + $0xc4] sm:%s407]
                  %467 = vst [vmem:[%s415 + $0x64] sm:%s407] %v466
                  %v468 = vld [vmem:[%s414 + $0xc8] sm:%s407]
                  %469 = vst [vmem:[%s415 + $0x68] sm:%s407] %v468
                  %v470 = vld [vmem:[%s414 + $0xcc] sm:%s407]
                  %471 = vst [vmem:[%s415 + $0x6c] sm:%s407] %v470
                  %v472 = vld [vmem:[%s414 + $0xe0] sm:%s407]
                  %473 = vst [vmem:[%s415 + $0x70] sm:%s407] %v472
                  %v474 = vld [vmem:[%s414 + $0xe4] sm:%s407]
                  %475 = vst [vmem:[%s415 + $0x74] sm:%s407] %v474
                  %v476 = vld [vmem:[%s414 + $0xe8] sm:%s407]
                  %477 = vst [vmem:[%s415 + $0x78] sm:%s407] %v476
                  %v478 = vld [vmem:[%s414 + $0xec] sm:%s407]
                  %479 = vst [vmem:[%s415 + $0x7c] sm:%s407] %v478
                $region87: #{tpu_custom_call.1} parent=74 // loop_footer
                  %s413 = sadd.s32 1, %s409
                $region88: #{tpu_custom_call.1} parent=74 // loop_footer_branch
                  %408 = sbr.rel target = $region84
                $region89: #{tpu_custom_call.1} parent=74 // loop_exit
                  _
              $region75: #{tpu_custom_call.1} parent=59 // pred_fallthru
                _
            $region60: #{tpu_custom_call.1} parent=55 // pred_fallthru
              _
            // Predicated region
            $region61: #{tpu_custom_call.1} parent=55 // pred_check
              _
            $region62: #{tpu_custom_call.1} parent=55 // pred_check_branch
              %321 = sbr.rel (0) target = $region64
            $region63: #{tpu_custom_call.1} parent=55 // pred_region
              %s323 = ssub.s32 16, 1
              loop: start=0, step=1, limit=1
              $region65: #{tpu_custom_call.1} parent=63 // loop_pre_header
                _
              $region66: #{tpu_custom_call.1} parent=63 // loop_header
                %s325 = sphi 0, %s329
                %p326 = scmp.ge.s32.totalorder %s325, 1
                %s330 = sphi %s315, %s315
                %s331 = sphi %s312, %s312
              $region67: #{tpu_custom_call.1} parent=63 // loop_header_branch
                %328 = sbr.rel (%p326) target = $region71
              $region68: #{tpu_custom_call.1} parent=63 // loop_body
                %v332 = vld [vmem:[%s330] sm:%s323]
                %333 = vst [vmem:[%s331] sm:%s323] %v332
                %v334 = vld [vmem:[%s330 + $0x4] sm:%s323]
                %335 = vst [vmem:[%s331 + $0x4] sm:%s323] %v334
                %v336 = vld [vmem:[%s330 + $0x8] sm:%s323]
                %337 = vst [vmem:[%s331 + $0x8] sm:%s323] %v336
                %v338 = vld [vmem:[%s330 + $0xc] sm:%s323]
                %339 = vst [vmem:[%s331 + $0xc] sm:%s323] %v338
                %v340 = vld [vmem:[%s330 + $0x20] sm:%s323]
                %341 = vst [vmem:[%s331 + $0x10] sm:%s323] %v340
                %v342 = vld [vmem:[%s330 + $0x24] sm:%s323]
                %343 = vst [vmem:[%s331 + $0x14] sm:%s323] %v342
                %v344 = vld [vmem:[%s330 + $0x28] sm:%s323]
                %345 = vst [vmem:[%s331 + $0x18] sm:%s323] %v344
                %v346 = vld [vmem:[%s330 + $0x2c] sm:%s323]
                %347 = vst [vmem:[%s331 + $0x1c] sm:%s323] %v346
                %v348 = vld [vmem:[%s330 + $0x40] sm:%s323]
                %349 = vst [vmem:[%s331 + $0x20] sm:%s323] %v348
                %v350 = vld [vmem:[%s330 + $0x44] sm:%s323]
                %351 = vst [vmem:[%s331 + $0x24] sm:%s323] %v350
                %v352 = vld [vmem:[%s330 + $0x48] sm:%s323]
                %353 = vst [vmem:[%s331 + $0x28] sm:%s323] %v352
                %v354 = vld [vmem:[%s330 + $0x4c] sm:%s323]
                %355 = vst [vmem:[%s331 + $0x2c] sm:%s323] %v354
                %v356 = vld [vmem:[%s330 + $0x60] sm:%s323]
                %357 = vst [vmem:[%s331 + $0x30] sm:%s323] %v356
                %v358 = vld [vmem:[%s330 + $0x64] sm:%s323]
                %359 = vst [vmem:[%s331 + $0x34] sm:%s323] %v358
                %v360 = vld [vmem:[%s330 + $0x68] sm:%s323]
                %361 = vst [vmem:[%s331 + $0x38] sm:%s323] %v360
                %v362 = vld [vmem:[%s330 + $0x6c] sm:%s323]
                %363 = vst [vmem:[%s331 + $0x3c] sm:%s323] %v362
                %v364 = vld [vmem:[%s330 + $0x80] sm:%s323]
                %365 = vst [vmem:[%s331 + $0x40] sm:%s323] %v364
                %v366 = vld [vmem:[%s330 + $0x84] sm:%s323]
                %367 = vst [vmem:[%s331 + $0x44] sm:%s323] %v366
                %v368 = vld [vmem:[%s330 + $0x88] sm:%s323]
                %369 = vst [vmem:[%s331 + $0x48] sm:%s323] %v368
                %v370 = vld [vmem:[%s330 + $0x8c] sm:%s323]
                %371 = vst [vmem:[%s331 + $0x4c] sm:%s323] %v370
                %v372 = vld [vmem:[%s330 + $0xa0] sm:%s323]
                %373 = vst [vmem:[%s331 + $0x50] sm:%s323] %v372
                %v374 = vld [vmem:[%s330 + $0xa4] sm:%s323]
                %375 = vst [vmem:[%s331 + $0x54] sm:%s323] %v374
                %v376 = vld [vmem:[%s330 + $0xa8] sm:%s323]
                %377 = vst [vmem:[%s331 + $0x58] sm:%s323] %v376
                %v378 = vld [vmem:[%s330 + $0xac] sm:%s323]
                %379 = vst [vmem:[%s331 + $0x5c] sm:%s323] %v378
                %v380 = vld [vmem:[%s330 + $0xc0] sm:%s323]
                %381 = vst [vmem:[%s331 + $0x60] sm:%s323] %v380
                %v382 = vld [vmem:[%s330 + $0xc4] sm:%s323]
                %383 = vst [vmem:[%s331 + $0x64] sm:%s323] %v382
                %v384 = vld [vmem:[%s330 + $0xc8] sm:%s323]
                %385 = vst [vmem:[%s331 + $0x68] sm:%s323] %v384
                %v386 = vld [vmem:[%s330 + $0xcc] sm:%s323]
                %387 = vst [vmem:[%s331 + $0x6c] sm:%s323] %v386
                %v388 = vld [vmem:[%s330 + $0xe0] sm:%s323]
                %389 = vst [vmem:[%s331 + $0x70] sm:%s323] %v388
                %v390 = vld [vmem:[%s330 + $0xe4] sm:%s323]
                %391 = vst [vmem:[%s331 + $0x74] sm:%s323] %v390
                %v392 = vld [vmem:[%s330 + $0xe8] sm:%s323]
                %393 = vst [vmem:[%s331 + $0x78] sm:%s323] %v392
                %v394 = vld [vmem:[%s330 + $0xec] sm:%s323]
                %395 = vst [vmem:[%s331 + $0x7c] sm:%s323] %v394
              $region69: #{tpu_custom_call.1} parent=63 // loop_footer
                %s329 = sadd.s32 1, %s325
              $region70: #{tpu_custom_call.1} parent=63 // loop_footer_branch
                %324 = sbr.rel target = $region66
              $region71: #{tpu_custom_call.1} parent=63 // loop_exit
                _
            $region64: #{tpu_custom_call.1} parent=55 // pred_fallthru
              _
          $region56: #{tpu_custom_call.1} parent=51 // pred_fallthru
            _
          %480 = vnop
        $region52: #{tpu_custom_call.1} parent=47 // pred_fallthru
          _
      $region48: #{tpu_custom_call.1} parent=5 // pred_fallthru
        _
      %p481 = scmp.le.s32.totalorder 1, %s17
      %p482 = scmp.lt.s32.totalorder %s17, 3
      %p483 = pnand %p481, %p482
      %p484 = pneg %p483
      // Predicated region
      $region90: #{tpu_custom_call.1} parent=5 // pred_check
        _
      $region91: #{tpu_custom_call.1} parent=5 // pred_check_branch
        %486 = sbr.rel (%p483) target = $region93
      $region92: #{tpu_custom_call.1} parent=5 // pred_region
        %s487 = ssub.s32 %s17, 1
        %s488 = sand.u32 %s30, 1
        %s489 = sand.u32 %s30, 1
        %s490 = smul.addr %s489, 128
        %s491 = scalar_lea.vmem [#allocation2], %s490
        // Predicated region
        $region94: #{tpu_custom_call.1} parent=92 // pred_check
          %p492 = pneg %p43
        $region95: #{tpu_custom_call.1} parent=92 // pred_check_branch
          %494 = sbr.rel (%p492) target = $region97
        $region96: #{tpu_custom_call.1} parent=92 // pred_region
          _
        $region97: #{tpu_custom_call.1} parent=92 // pred_fallthru
          _
        %s495 = sand.u32 %s30, 1
        %s496 = sand.u32 %s30, 1
        %s497 = smul.addr %s496, 128
        %s498 = scalar_lea.vmem [#allocation2], %s497
        %p499 = pneg %p43
        %p500 = pneg %p40
        %p501 = pneg %p64
        %p502 = pneg %p61
        %p503 = pneg %p85
        %p504 = pneg %p82
        %p505 = pneg %p106
        %p506 = pneg %p103
        %p507 = pneg %p127
        %p508 = pneg %p124
        %p509 = pneg %p148
        %p510 = pneg %p145
        %p511 = pneg %p169
        %p512 = pneg %p166
        %p513 = pneg %p190
        %p514 = pneg %p187
        %p515 = pneg %p211
        %p516 = pneg %p208
        %p517 = pneg %p237
        %p518 = pneg %p234
        %s519 = sand.u32 %s224, 1
        %s520 = sand.u32 %s224, 1
        %s521 = smul.addr %s520, 480
        %s522 = scalar_lea.vmem [#allocation3], %s521
        %p523 = pneg %p263
        %p524 = pneg %p260
        %s525 = sand.u32 %s250, 1
        %s526 = sand.u32 %s250, 1
        %s527 = smul.addr %s526, 480
        %s528 = scalar_lea.vmem [#allocation4], %s527
        %s529 = smul.u32 4, %s22
        %s530 = smul.u32 4, %s22
        %s531 = smul.u32 4, %s22
        %v533 = vld [vmem:[%s491] sm:$0xf]
        %v534 = vld [vmem:[%s491 + $0x4] sm:$0xf]
        %v535 = vld [vmem:[%s491 + $0x8] sm:$0xf]
        %v536 = vld [vmem:[%s491 + $0xc] sm:$0xf]
        %v537 = vld [vmem:[%s491 + $0x10] sm:$0xf]
        %v538 = vld [vmem:[%s491 + $0x14] sm:$0xf]
        %v539 = vld [vmem:[%s491 + $0x18] sm:$0xf]
        %v540 = vld [vmem:[%s491 + $0x1c] sm:$0xf]
        %v541 = vld [vmem:[%s491 + $0x20] sm:$0xf]
        %v542 = vld [vmem:[%s491 + $0x24] sm:$0xf]
        %v543 = vld [vmem:[%s491 + $0x28] sm:$0xf]
        %v544 = vld [vmem:[%s491 + $0x2c] sm:$0xf]
        %v545 = vld [vmem:[%s491 + $0x30] sm:$0xf]
        %v546 = vld [vmem:[%s491 + $0x34] sm:$0xf]
        %v547 = vld [vmem:[%s491 + $0x38] sm:$0xf]
        %v548 = vld [vmem:[%s491 + $0x3c] sm:$0xf]
        %v549 = vld [vmem:[%s491 + $0x40] sm:$0xf]
        %v550 = vld [vmem:[%s491 + $0x44] sm:$0xf]
        %v551 = vld [vmem:[%s491 + $0x48] sm:$0xf]
        %v552 = vld [vmem:[%s491 + $0x4c] sm:$0xf]
        %v553 = vld [vmem:[%s491 + $0x50] sm:$0xf]
        %v554 = vld [vmem:[%s491 + $0x54] sm:$0xf]
        %v555 = vld [vmem:[%s491 + $0x58] sm:$0xf]
        %v556 = vld [vmem:[%s491 + $0x5c] sm:$0xf]
        %v557 = vld [vmem:[%s491 + $0x60] sm:$0xf]
        %v558 = vld [vmem:[%s491 + $0x64] sm:$0xf]
        %v559 = vld [vmem:[%s491 + $0x68] sm:$0xf]
        %v560 = vld [vmem:[%s491 + $0x6c] sm:$0xf]
        %v561 = vld [vmem:[%s491 + $0x70] sm:$0xf]
        %v562 = vld [vmem:[%s491 + $0x74] sm:$0xf]
        %v563 = vld [vmem:[%s491 + $0x78] sm:$0xf]
        %v564 = vld [vmem:[%s491 + $0x7c] sm:$0xf]
        %v565 = vld [vmem:[%s1] sm:$0xf]
        %v566 = vld [vmem:[%s1 + $0x4] sm:$0xf]
        %v567 = vld [vmem:[%s2] sm:$0x1]
        %v569 = vlaneseq
        %v570 = vshrl.u32 %v569, 7
        %v571 = vsub.s32 0, %v570
        %v572 = vrot.slane %v567, %v571
        %v606 = vunpack.c.l.b16 %v533
        %v607 = vunpack.c.l.b16 %v534
        %v608 = vunpack.c.l.b16 %v535
        %v609 = vunpack.c.l.b16 %v536
        %v610 = vunpack.c.l.b16 %v537
        %v611 = vunpack.c.l.b16 %v538
        %v612 = vunpack.c.l.b16 %v539
        %v613 = vunpack.c.l.b16 %v540
        %v614 = vunpack.c.l.b16 %v541
        %v615 = vunpack.c.l.b16 %v542
        %v616 = vunpack.c.l.b16 %v543
        %v617 = vunpack.c.l.b16 %v544
        %v618 = vunpack.c.l.b16 %v545
        %v619 = vunpack.c.l.b16 %v546
        %v620 = vunpack.c.l.b16 %v547
        %v621 = vunpack.c.l.b16 %v548
        %v622 = vunpack.c.l.b16 %v549
        %v623 = vunpack.c.l.b16 %v550
        %v624 = vunpack.c.l.b16 %v551
        %v625 = vunpack.c.l.b16 %v552
        %v626 = vunpack.c.l.b16 %v553
        %v627 = vunpack.c.l.b16 %v554
        %v628 = vunpack.c.l.b16 %v555
        %v629 = vunpack.c.l.b16 %v556
        %v630 = vunpack.c.l.b16 %v557
        %v631 = vunpack.c.l.b16 %v558
        %v632 = vunpack.c.l.b16 %v559
        %v633 = vunpack.c.l.b16 %v560
        %v634 = vunpack.c.l.b16 %v561
        %v635 = vunpack.c.l.b16 %v562
        %v636 = vunpack.c.l.b16 %v563
        %v637 = vunpack.c.l.b16 %v564
        %v638 = vpack.c.b16 %v607, %v606
        %v639 = vpack.c.b16 %v609, %v608
        %v640 = vpack.c.b16 %v611, %v610
        %v641 = vpack.c.b16 %v613, %v612
        %v642 = vpack.c.b16 %v615, %v614
        %v643 = vpack.c.b16 %v617, %v616
        %v644 = vpack.c.b16 %v619, %v618
        %v645 = vpack.c.b16 %v621, %v620
        %v646 = vpack.c.b16 %v623, %v622
        %v647 = vpack.c.b16 %v625, %v624
        %v648 = vpack.c.b16 %v627, %v626
        %v649 = vpack.c.b16 %v629, %v628
        %v650 = vpack.c.b16 %v631, %v630
        %v651 = vpack.c.b16 %v633, %v632
        %v652 = vpack.c.b16 %v635, %v634
        %v653 = vpack.c.b16 %v637, %v636
        %v656 = vunpack.c.l.b16 %v565
        %v657 = vunpack.c.l.b16 %v566
        %v658 = vpack.c.b16 %v657, %v656
        %vm660 = vcmask 130048
        %v662 = vsel %vm660, %v638, 0
        %v665 = vsel %vm660, %v639, 0
        %v668 = vsel %vm660, %v640, 0
        %v671 = vsel %vm660, %v641, 0
        %v674 = vsel %vm660, %v642, 0
        %v677 = vsel %vm660, %v643, 0
        %v680 = vsel %vm660, %v644, 0
        %v683 = vsel %vm660, %v645, 0
        %v686 = vsel %vm660, %v646, 0
        %v689 = vsel %vm660, %v647, 0
        %v692 = vsel %vm660, %v648, 0
        %v695 = vsel %vm660, %v649, 0
        %v698 = vsel %vm660, %v650, 0
        %v701 = vsel %vm660, %v651, 0
        %v704 = vsel %vm660, %v652, 0
        %v707 = vsel %vm660, %v653, 0
        %709 = vmatprep.subr.bf16.mxu0 0
        %710 = vmatpush1.bf16.msra.mxu0 0
        %711 = vmatprep.subr.bf16.mxu0 0
        %712 = vmatpush1.bf16.msra.mxu0 0
        %713 = vmatprep.subr.bf16.mxu0 0
        %714 = vmatpush1.bf16.msra.mxu0 0
        %715 = vmatprep.subr.bf16.mxu0 0
        %716 = vmatpush1.bf16.msra.mxu0 0
        %717 = vmatprep.subr.bf16.mxu0 0
        %718 = vmatpush1.bf16.msra.mxu0 0
        %719 = vmatprep.subr.bf16.mxu0 0
        %720 = vmatpush1.bf16.msra.mxu0 0
        %721 = vmatprep.subr.bf16.mxu0 0
        %722 = vmatpush1.bf16.msra.mxu0 0
        %723 = vmatprep.subr.bf16.mxu0 0
        %724 = vmatpush1.bf16.msra.mxu0 %v658
        %725 = vmatprep.subr.bf16.mxu0 0
        %726 = vmatpush2.bf16.msra.mxu0 0
        %727 = vmatprep.subr.bf16.mxu0 0
        %728 = vmatpush2.bf16.msra.mxu0 0
        %729 = vmatprep.subr.bf16.mxu0 0
        %730 = vmatpush2.bf16.msra.mxu0 0
        %731 = vmatprep.subr.bf16.mxu0 0
        %732 = vmatpush2.bf16.msra.mxu0 0
        %733 = vmatprep.subr.bf16.mxu0 0
        %734 = vmatpush2.bf16.msra.mxu0 0
        %735 = vmatprep.subr.bf16.mxu0 0
        %736 = vmatpush2.bf16.msra.mxu0 0
        %737 = vmatprep.subr.bf16.mxu0 0
        %738 = vmatpush2.bf16.msra.mxu0 0
        %739 = vmatprep.subr.bf16.mxu0 0
        %740 = vmatpush2.bf16.msra.mxu0 0
        %741 = vmatprep.mubr.bf16.mxu0 0
        %742 = vmatmul.mubr.bf16.gmra.mxu0 %v662
        %v743 = vpop.f32.mrf.mxu0
        %v744 = vadd.f32 %v572, %v743
        %v745 = vpop.f32.mrf.mxu0
        %v746 = vpop.f32.mrf.mxu0
        %v747 = vadd.f32 %v572, %v746
        %v748 = vpop.f32.mrf.mxu0
        %749 = vmatprep.mubr.bf16.mxu0 0
        %750 = vmatmul.mubr.bf16.gmra.mxu0 %v665
        %v751 = vpop.f32.mrf.mxu0
        %v752 = vadd.f32 %v572, %v751
        %v753 = vpop.f32.mrf.mxu0
        %v754 = vpop.f32.mrf.mxu0
        %v755 = vadd.f32 %v572, %v754
        %v756 = vpop.f32.mrf.mxu0
        %757 = vmatprep.mubr.bf16.mxu0 0
        %758 = vmatmul.mubr.bf16.gmra.mxu0 %v668
        %v759 = vpop.f32.mrf.mxu0
        %v760 = vadd.f32 %v572, %v759
        %v761 = vpop.f32.mrf.mxu0
        %v762 = vpop.f32.mrf.mxu0
        %v763 = vadd.f32 %v572, %v762
        %v764 = vpop.f32.mrf.mxu0
        %765 = vmatprep.mubr.bf16.mxu0 0
        %766 = vmatmul.mubr.bf16.gmra.mxu0 %v671
        %v767 = vpop.f32.mrf.mxu0
        %v768 = vadd.f32 %v572, %v767
        %v769 = vpop.f32.mrf.mxu0
        %v770 = vpop.f32.mrf.mxu0
        %v771 = vadd.f32 %v572, %v770
        %v772 = vpop.f32.mrf.mxu0
        %773 = vmatprep.mubr.bf16.mxu0 0
        %774 = vmatmul.mubr.bf16.gmra.mxu0 %v674
        %v775 = vpop.f32.mrf.mxu0
        %v776 = vadd.f32 %v572, %v775
        %v777 = vpop.f32.mrf.mxu0
        %v778 = vpop.f32.mrf.mxu0
        %v779 = vadd.f32 %v572, %v778
        %v780 = vpop.f32.mrf.mxu0
        %781 = vmatprep.mubr.bf16.mxu0 0
        %782 = vmatmul.mubr.bf16.gmra.mxu0 %v677
        %v783 = vpop.f32.mrf.mxu0
        %v784 = vadd.f32 %v572, %v783
        %v785 = vpop.f32.mrf.mxu0
        %v786 = vpop.f32.mrf.mxu0
        %v787 = vadd.f32 %v572, %v786
        %v788 = vpop.f32.mrf.mxu0
        %789 = vmatprep.mubr.bf16.mxu0 0
        %790 = vmatmul.mubr.bf16.gmra.mxu0 %v680
        %v791 = vpop.f32.mrf.mxu0
        %v792 = vadd.f32 %v572, %v791
        %v793 = vpop.f32.mrf.mxu0
        %v794 = vpop.f32.mrf.mxu0
        %v795 = vadd.f32 %v572, %v794
        %v796 = vpop.f32.mrf.mxu0
        %797 = vmatprep.mubr.bf16.mxu0 0
        %798 = vmatmul.mubr.bf16.gmra.mxu0 %v683
        %v799 = vpop.f32.mrf.mxu0
        %v800 = vadd.f32 %v572, %v799
        %v801 = vpop.f32.mrf.mxu0
        %v802 = vpop.f32.mrf.mxu0
        %v803 = vadd.f32 %v572, %v802
        %v804 = vpop.f32.mrf.mxu0
        %805 = vmatprep.mubr.bf16.mxu0 0
        %806 = vmatmul.mubr.bf16.gmra.mxu0 %v686
        %v807 = vpop.f32.mrf.mxu0
        %v808 = vadd.f32 %v572, %v807
        %v809 = vpop.f32.mrf.mxu0
        %v810 = vpop.f32.mrf.mxu0
        %v811 = vadd.f32 %v572, %v810
        %v812 = vpop.f32.mrf.mxu0
        %813 = vmatprep.mubr.bf16.mxu0 0
        %814 = vmatmul.mubr.bf16.gmra.mxu0 %v689
        %v815 = vpop.f32.mrf.mxu0
        %v816 = vadd.f32 %v572, %v815
        %v817 = vpop.f32.mrf.mxu0
        %v818 = vpop.f32.mrf.mxu0
        %v819 = vadd.f32 %v572, %v818
        %v820 = vpop.f32.mrf.mxu0
        %821 = vmatprep.mubr.bf16.mxu0 0
        %822 = vmatmul.mubr.bf16.gmra.mxu0 %v692
        %v823 = vpop.f32.mrf.mxu0
        %v824 = vadd.f32 %v572, %v823
        %v825 = vpop.f32.mrf.mxu0
        %v826 = vpop.f32.mrf.mxu0
        %v827 = vadd.f32 %v572, %v826
        %v828 = vpop.f32.mrf.mxu0
        %829 = vmatprep.mubr.bf16.mxu0 0
        %830 = vmatmul.mubr.bf16.gmra.mxu0 %v695
        %v831 = vpop.f32.mrf.mxu0
        %v832 = vadd.f32 %v572, %v831
        %v833 = vpop.f32.mrf.mxu0
        %v834 = vpop.f32.mrf.mxu0
        %v835 = vadd.f32 %v572, %v834
        %v836 = vpop.f32.mrf.mxu0
        %837 = vmatprep.mubr.bf16.mxu0 0
        %838 = vmatmul.mubr.bf16.gmra.mxu0 %v698
        %v839 = vpop.f32.mrf.mxu0
        %v840 = vadd.f32 %v572, %v839
        %v841 = vpop.f32.mrf.mxu0
        %v842 = vpop.f32.mrf.mxu0
        %v843 = vadd.f32 %v572, %v842
        %v844 = vpop.f32.mrf.mxu0
        %845 = vmatprep.mubr.bf16.mxu0 0
        %846 = vmatmul.mubr.bf16.gmra.mxu0 %v701
        %v847 = vpop.f32.mrf.mxu0
        %v848 = vadd.f32 %v572, %v847
        %v849 = vpop.f32.mrf.mxu0
        %v850 = vpop.f32.mrf.mxu0
        %v851 = vadd.f32 %v572, %v850
        %v852 = vpop.f32.mrf.mxu0
        %853 = vmatprep.mubr.bf16.mxu0 0
        %854 = vmatmul.mubr.bf16.gmra.mxu0 %v704
        %v855 = vpop.f32.mrf.mxu0
        %v856 = vadd.f32 %v572, %v855
        %v857 = vpop.f32.mrf.mxu0
        %v858 = vpop.f32.mrf.mxu0
        %v859 = vadd.f32 %v572, %v858
        %v860 = vpop.f32.mrf.mxu0
        %861 = vmatprep.mubr.bf16.mxu0 0
        %862 = vmatmul.mubr.bf16.gmra.mxu0 %v707
        %v863 = vpop.f32.mrf.mxu0
        %v864 = vadd.f32 %v572, %v863
        %v865 = vpop.f32.mrf.mxu0
        %v866 = vpop.f32.mrf.mxu0
        %v867 = vadd.f32 %v572, %v866
        %v868 = vpop.f32.mrf.mxu0
        %869 = vdwg.mxu0
        %v870 = vxor.u32 %v744, 2147483648
        %v871 = vxor.u32 %v747, 2147483648
        %v872 = vxor.u32 %v752, 2147483648
        %v873 = vxor.u32 %v755, 2147483648
        %v874 = vxor.u32 %v760, 2147483648
        %v875 = vxor.u32 %v763, 2147483648
        %v876 = vxor.u32 %v768, 2147483648
        %v877 = vxor.u32 %v771, 2147483648
        %v878 = vxor.u32 %v776, 2147483648
        %v879 = vxor.u32 %v779, 2147483648
        %v880 = vxor.u32 %v784, 2147483648
        %v881 = vxor.u32 %v787, 2147483648
        %v882 = vxor.u32 %v792, 2147483648
        %v883 = vxor.u32 %v795, 2147483648
        %v884 = vxor.u32 %v800, 2147483648
        %v885 = vxor.u32 %v803, 2147483648
        %v886 = vxor.u32 %v808, 2147483648
        %v887 = vxor.u32 %v811, 2147483648
        %v888 = vxor.u32 %v816, 2147483648
        %v889 = vxor.u32 %v819, 2147483648
        %v890 = vxor.u32 %v824, 2147483648
        %v891 = vxor.u32 %v827, 2147483648
        %v892 = vxor.u32 %v832, 2147483648
        %v893 = vxor.u32 %v835, 2147483648
        %v894 = vxor.u32 %v840, 2147483648
        %v895 = vxor.u32 %v843, 2147483648
        %v896 = vxor.u32 %v848, 2147483648
        %v897 = vxor.u32 %v851, 2147483648
        %v898 = vxor.u32 %v856, 2147483648
        %v899 = vxor.u32 %v859, 2147483648
        %v900 = vxor.u32 %v864, 2147483648
        %v901 = vxor.u32 %v867, 2147483648
        %v902 = vmul.f32 %v870, 1.442695
        %v903 = vpow.pop %v902
        %v904 = vmul.f32 %v871, 1.442695
        %v905 = vpow.pop %v904
        %v906 = vmul.f32 %v872, 1.442695
        %v907 = vpow.pop %v906
        %v908 = vmul.f32 %v873, 1.442695
        %v909 = vpow.pop %v908
        %v910 = vmul.f32 %v874, 1.442695
        %v911 = vpow.pop %v910
        %v912 = vmul.f32 %v875, 1.442695
        %v913 = vpow.pop %v912
        %v914 = vmul.f32 %v876, 1.442695
        %v915 = vpow.pop %v914
        %v916 = vmul.f32 %v877, 1.442695
        %v917 = vpow.pop %v916
        %v918 = vmul.f32 %v878, 1.442695
        %v919 = vpow.pop %v918
        %v920 = vmul.f32 %v879, 1.442695
        %v921 = vpow.pop %v920
        %v922 = vmul.f32 %v880, 1.442695
        %v923 = vpow.pop %v922
        %v924 = vmul.f32 %v881, 1.442695
        %v925 = vpow.pop %v924
        %v926 = vmul.f32 %v882, 1.442695
        %v927 = vpow.pop %v926
        %v928 = vmul.f32 %v883, 1.442695
        %v929 = vpow.pop %v928
        %v930 = vmul.f32 %v884, 1.442695
        %v931 = vpow.pop %v930
        %v932 = vmul.f32 %v885, 1.442695
        %v933 = vpow.pop %v932
        %v934 = vmul.f32 %v886, 1.442695
        %v935 = vpow.pop %v934
        %v936 = vmul.f32 %v887, 1.442695
        %v937 = vpow.pop %v936
        %v938 = vmul.f32 %v888, 1.442695
        %v939 = vpow.pop %v938
        %v940 = vmul.f32 %v889, 1.442695
        %v941 = vpow.pop %v940
        %v942 = vmul.f32 %v890, 1.442695
        %v943 = vpow.pop %v942
        %v944 = vmul.f32 %v891, 1.442695
        %v945 = vpow.pop %v944
        %v946 = vmul.f32 %v892, 1.442695
        %v947 = vpow.pop %v946
        %v948 = vmul.f32 %v893, 1.442695
        %v949 = vpow.pop %v948
        %v950 = vmul.f32 %v894, 1.442695
        %v951 = vpow.pop %v950
        %v952 = vmul.f32 %v895, 1.442695
        %v953 = vpow.pop %v952
        %v954 = vmul.f32 %v896, 1.442695
        %v955 = vpow.pop %v954
        %v956 = vmul.f32 %v897, 1.442695
        %v957 = vpow.pop %v956
        %v958 = vmul.f32 %v898, 1.442695
        %v959 = vpow.pop %v958
        %v960 = vmul.f32 %v899, 1.442695
        %v961 = vpow.pop %v960
        %v962 = vmul.f32 %v900, 1.442695
        %v963 = vpow.pop %v962
        %v964 = vmul.f32 %v901, 1.442695
        %v965 = vpow.pop %v964
        %v966 = vadd.f32 %v903, 1.0
        %v967 = vadd.f32 %v905, 1.0
        %v968 = vadd.f32 %v907, 1.0
        %v969 = vadd.f32 %v909, 1.0
        %v970 = vadd.f32 %v911, 1.0
        %v971 = vadd.f32 %v913, 1.0
        %v972 = vadd.f32 %v915, 1.0
        %v973 = vadd.f32 %v917, 1.0
        %v974 = vadd.f32 %v919, 1.0
        %v975 = vadd.f32 %v921, 1.0
        %v976 = vadd.f32 %v923, 1.0
        %v977 = vadd.f32 %v925, 1.0
        %v978 = vadd.f32 %v927, 1.0
        %v979 = vadd.f32 %v929, 1.0
        %v980 = vadd.f32 %v931, 1.0
        %v981 = vadd.f32 %v933, 1.0
        %v982 = vadd.f32 %v935, 1.0
        %v983 = vadd.f32 %v937, 1.0
        %v984 = vadd.f32 %v939, 1.0
        %v985 = vadd.f32 %v941, 1.0
        %v986 = vadd.f32 %v943, 1.0
        %v987 = vadd.f32 %v945, 1.0
        %v988 = vadd.f32 %v947, 1.0
        %v989 = vadd.f32 %v949, 1.0
        %v990 = vadd.f32 %v951, 1.0
        %v991 = vadd.f32 %v953, 1.0
        %v992 = vadd.f32 %v955, 1.0
        %v993 = vadd.f32 %v957, 1.0
        %v994 = vadd.f32 %v959, 1.0
        %v995 = vadd.f32 %v961, 1.0
        %v996 = vadd.f32 %v963, 1.0
        %v997 = vadd.f32 %v965, 1.0
        %v998 = vrcp.pop %v966
        %v999 = vmul.f32 1.0, %v998
        %v1000 = vrcp.pop %v967
        %v1001 = vmul.f32 1.0, %v1000
        %v1002 = vrcp.pop %v968
        %v1003 = vmul.f32 1.0, %v1002
        %v1004 = vrcp.pop %v969
        %v1005 = vmul.f32 1.0, %v1004
        %v1006 = vrcp.pop %v970
        %v1007 = vmul.f32 1.0, %v1006
        %v1008 = vrcp.pop %v971
        %v1009 = vmul.f32 1.0, %v1008
        %v1010 = vrcp.pop %v972
        %v1011 = vmul.f32 1.0, %v1010
        %v1012 = vrcp.pop %v973
        %v1013 = vmul.f32 1.0, %v1012
        %v1014 = vrcp.pop %v974
        %v1015 = vmul.f32 1.0, %v1014
        %v1016 = vrcp.pop %v975
        %v1017 = vmul.f32 1.0, %v1016
        %v1018 = vrcp.pop %v976
        %v1019 = vmul.f32 1.0, %v1018
        %v1020 = vrcp.pop %v977
        %v1021 = vmul.f32 1.0, %v1020
        %v1022 = vrcp.pop %v978
        %v1023 = vmul.f32 1.0, %v1022
        %v1024 = vrcp.pop %v979
        %v1025 = vmul.f32 1.0, %v1024
        %v1026 = vrcp.pop %v980
        %v1027 = vmul.f32 1.0, %v1026
        %v1028 = vrcp.pop %v981
        %v1029 = vmul.f32 1.0, %v1028
        %v1030 = vrcp.pop %v982
        %v1031 = vmul.f32 1.0, %v1030
        %v1032 = vrcp.pop %v983
        %v1033 = vmul.f32 1.0, %v1032
        %v1034 = vrcp.pop %v984
        %v1035 = vmul.f32 1.0, %v1034
        %v1036 = vrcp.pop %v985
        %v1037 = vmul.f32 1.0, %v1036
        %v1038 = vrcp.pop %v986
        %v1039 = vmul.f32 1.0, %v1038
        %v1040 = vrcp.pop %v987
        %v1041 = vmul.f32 1.0, %v1040
        %v1042 = vrcp.pop %v988
        %v1043 = vmul.f32 1.0, %v1042
        %v1044 = vrcp.pop %v989
        %v1045 = vmul.f32 1.0, %v1044
        %v1046 = vrcp.pop %v990
        %v1047 = vmul.f32 1.0, %v1046
        %v1048 = vrcp.pop %v991
        %v1049 = vmul.f32 1.0, %v1048
        %v1050 = vrcp.pop %v992
        %v1051 = vmul.f32 1.0, %v1050
        %v1052 = vrcp.pop %v993
        %v1053 = vmul.f32 1.0, %v1052
        %v1054 = vrcp.pop %v994
        %v1055 = vmul.f32 1.0, %v1054
        %v1056 = vrcp.pop %v995
        %v1057 = vmul.f32 1.0, %v1056
        %v1058 = vrcp.pop %v996
        %v1059 = vmul.f32 1.0, %v1058
        %v1060 = vrcp.pop %v997
        %v1061 = vmul.f32 1.0, %v1060
        %v1062 = vtanh.pop %v744
        %v1063 = vtanh.pop %v747
        %v1064 = vtanh.pop %v752
        %v1065 = vtanh.pop %v755
        %v1066 = vtanh.pop %v760
        %v1067 = vtanh.pop %v763
        %v1068 = vtanh.pop %v768
        %v1069 = vtanh.pop %v771
        %v1070 = vtanh.pop %v776
        %v1071 = vtanh.pop %v779
        %v1072 = vtanh.pop %v784
        %v1073 = vtanh.pop %v787
        %v1074 = vtanh.pop %v792
        %v1075 = vtanh.pop %v795
        %v1076 = vtanh.pop %v800
        %v1077 = vtanh.pop %v803
        %v1078 = vtanh.pop %v808
        %v1079 = vtanh.pop %v811
        %v1080 = vtanh.pop %v816
        %v1081 = vtanh.pop %v819
        %v1082 = vtanh.pop %v824
        %v1083 = vtanh.pop %v827
        %v1084 = vtanh.pop %v832
        %v1085 = vtanh.pop %v835
        %v1086 = vtanh.pop %v840
        %v1087 = vtanh.pop %v843
        %v1088 = vtanh.pop %v848
        %v1089 = vtanh.pop %v851
        %v1090 = vtanh.pop %v856
        %v1091 = vtanh.pop %v859
        %v1092 = vtanh.pop %v864
        %v1093 = vtanh.pop %v867
        %1126 = vrot.lane.b32.xlu0 %v1062, 64
        %v1127 = vpop.permute.xlu0 %1126
        %1128 = vrot.lane.b32.xlu0 %v1063, 64
        %v1129 = vpop.permute.xlu0 %1128
        %1130 = vrot.lane.b32.xlu0 %v1064, 64
        %v1131 = vpop.permute.xlu0 %1130
        %1132 = vrot.lane.b32.xlu0 %v1065, 64
        %v1133 = vpop.permute.xlu0 %1132
        %1134 = vrot.lane.b32.xlu0 %v1066, 64
        %v1135 = vpop.permute.xlu0 %1134
        %1136 = vrot.lane.b32.xlu0 %v1067, 64
        %v1137 = vpop.permute.xlu0 %1136
        %1138 = vrot.lane.b32.xlu0 %v1068, 64
        %v1139 = vpop.permute.xlu0 %1138
        %1140 = vrot.lane.b32.xlu0 %v1069, 64
        %v1141 = vpop.permute.xlu0 %1140
        %1142 = vrot.lane.b32.xlu0 %v1070, 64
        %v1143 = vpop.permute.xlu0 %1142
        %1144 = vrot.lane.b32.xlu0 %v1071, 64
        %v1145 = vpop.permute.xlu0 %1144
        %1146 = vrot.lane.b32.xlu0 %v1072, 64
        %v1147 = vpop.permute.xlu0 %1146
        %1148 = vrot.lane.b32.xlu0 %v1073, 64
        %v1149 = vpop.permute.xlu0 %1148
        %1150 = vrot.lane.b32.xlu0 %v1074, 64
        %v1151 = vpop.permute.xlu0 %1150
        %1152 = vrot.lane.b32.xlu0 %v1075, 64
        %v1153 = vpop.permute.xlu0 %1152
        %1154 = vrot.lane.b32.xlu0 %v1076, 64
        %v1155 = vpop.permute.xlu0 %1154
        %1156 = vrot.lane.b32.xlu0 %v1077, 64
        %v1157 = vpop.permute.xlu0 %1156
        %1158 = vrot.lane.b32.xlu0 %v1078, 64
        %v1159 = vpop.permute.xlu0 %1158
        %1160 = vrot.lane.b32.xlu0 %v1079, 64
        %v1161 = vpop.permute.xlu0 %1160
        %1162 = vrot.lane.b32.xlu0 %v1080, 64
        %v1163 = vpop.permute.xlu0 %1162
        %1164 = vrot.lane.b32.xlu0 %v1081, 64
        %v1165 = vpop.permute.xlu0 %1164
        %1166 = vrot.lane.b32.xlu0 %v1082, 64
        %v1167 = vpop.permute.xlu0 %1166
        %1168 = vrot.lane.b32.xlu0 %v1083, 64
        %v1169 = vpop.permute.xlu0 %1168
        %1170 = vrot.lane.b32.xlu0 %v1084, 64
        %v1171 = vpop.permute.xlu0 %1170
        %1172 = vrot.lane.b32.xlu0 %v1085, 64
        %v1173 = vpop.permute.xlu0 %1172
        %1174 = vrot.lane.b32.xlu0 %v1086, 64
        %v1175 = vpop.permute.xlu0 %1174
        %1176 = vrot.lane.b32.xlu0 %v1087, 64
        %v1177 = vpop.permute.xlu0 %1176
        %1178 = vrot.lane.b32.xlu0 %v1088, 64
        %v1179 = vpop.permute.xlu0 %1178
        %1180 = vrot.lane.b32.xlu0 %v1089, 64
        %v1181 = vpop.permute.xlu0 %1180
        %1182 = vrot.lane.b32.xlu0 %v1090, 64
        %v1183 = vpop.permute.xlu0 %1182
        %1184 = vrot.lane.b32.xlu0 %v1091, 64
        %v1185 = vpop.permute.xlu0 %1184
        %1186 = vrot.lane.b32.xlu0 %v1092, 64
        %v1187 = vpop.permute.xlu0 %1186
        %1188 = vrot.lane.b32.xlu0 %v1093, 64
        %v1189 = vpop.permute.xlu0 %1188
        %v1222 = vmul.f32 %v999, %v1127
        %v1223 = vmul.f32 %v1001, %v1129
        %v1224 = vmul.f32 %v1003, %v1131
        %v1225 = vmul.f32 %v1005, %v1133
        %v1226 = vmul.f32 %v1007, %v1135
        %v1227 = vmul.f32 %v1009, %v1137
        %v1228 = vmul.f32 %v1011, %v1139
        %v1229 = vmul.f32 %v1013, %v1141
        %v1230 = vmul.f32 %v1015, %v1143
        %v1231 = vmul.f32 %v1017, %v1145
        %v1232 = vmul.f32 %v1019, %v1147
        %v1233 = vmul.f32 %v1021, %v1149
        %v1234 = vmul.f32 %v1023, %v1151
        %v1235 = vmul.f32 %v1025, %v1153
        %v1236 = vmul.f32 %v1027, %v1155
        %v1237 = vmul.f32 %v1029, %v1157
        %v1238 = vmul.f32 %v1031, %v1159
        %v1239 = vmul.f32 %v1033, %v1161
        %v1240 = vmul.f32 %v1035, %v1163
        %v1241 = vmul.f32 %v1037, %v1165
        %v1242 = vmul.f32 %v1039, %v1167
        %v1243 = vmul.f32 %v1041, %v1169
        %v1244 = vmul.f32 %v1043, %v1171
        %v1245 = vmul.f32 %v1045, %v1173
        %v1246 = vmul.f32 %v1047, %v1175
        %v1247 = vmul.f32 %v1049, %v1177
        %v1248 = vmul.f32 %v1051, %v1179
        %v1249 = vmul.f32 %v1053, %v1181
        %v1250 = vmul.f32 %v1055, %v1183
        %v1251 = vmul.f32 %v1057, %v1185
        %v1252 = vmul.f32 %v1059, %v1187
        %v1253 = vmul.f32 %v1061, %v1189
        %v1254 = vtanh.pop %v1222
        %v1255 = vtanh.pop %v1223
        %v1256 = vtanh.pop %v1224
        %v1257 = vtanh.pop %v1225
        %v1258 = vtanh.pop %v1226
        %v1259 = vtanh.pop %v1227
        %v1260 = vtanh.pop %v1228
        %v1261 = vtanh.pop %v1229
        %v1262 = vtanh.pop %v1230
        %v1263 = vtanh.pop %v1231
        %v1264 = vtanh.pop %v1232
        %v1265 = vtanh.pop %v1233
        %v1266 = vtanh.pop %v1234
        %v1267 = vtanh.pop %v1235
        %v1268 = vtanh.pop %v1236
        %v1269 = vtanh.pop %v1237
        %v1270 = vtanh.pop %v1238
        %v1271 = vtanh.pop %v1239
        %v1272 = vtanh.pop %v1240
        %v1273 = vtanh.pop %v1241
        %v1274 = vtanh.pop %v1242
        %v1275 = vtanh.pop %v1243
        %v1276 = vtanh.pop %v1244
        %v1277 = vtanh.pop %v1245
        %v1278 = vtanh.pop %v1246
        %v1279 = vtanh.pop %v1247
        %v1280 = vtanh.pop %v1248
        %v1281 = vtanh.pop %v1249
        %v1282 = vtanh.pop %v1250
        %v1283 = vtanh.pop %v1251
        %v1284 = vtanh.pop %v1252
        %v1285 = vtanh.pop %v1253
        %1318 = vrot.lane.b32.xlu0 %v1254, 32
        %v1319 = vpop.permute.xlu0 %1318
        %1320 = vrot.lane.b32.xlu0 %v1255, 32
        %v1321 = vpop.permute.xlu0 %1320
        %1322 = vrot.lane.b32.xlu0 %v1256, 32
        %v1323 = vpop.permute.xlu0 %1322
        %1324 = vrot.lane.b32.xlu0 %v1257, 32
        %v1325 = vpop.permute.xlu0 %1324
        %1326 = vrot.lane.b32.xlu0 %v1258, 32
        %v1327 = vpop.permute.xlu0 %1326
        %1328 = vrot.lane.b32.xlu0 %v1259, 32
        %v1329 = vpop.permute.xlu0 %1328
        %1330 = vrot.lane.b32.xlu0 %v1260, 32
        %v1331 = vpop.permute.xlu0 %1330
        %1332 = vrot.lane.b32.xlu0 %v1261, 32
        %v1333 = vpop.permute.xlu0 %1332
        %1334 = vrot.lane.b32.xlu0 %v1262, 32
        %v1335 = vpop.permute.xlu0 %1334
        %1336 = vrot.lane.b32.xlu0 %v1263, 32
        %v1337 = vpop.permute.xlu0 %1336
        %1338 = vrot.lane.b32.xlu0 %v1264, 32
        %v1339 = vpop.permute.xlu0 %1338
        %1340 = vrot.lane.b32.xlu0 %v1265, 32
        %v1341 = vpop.permute.xlu0 %1340
        %1342 = vrot.lane.b32.xlu0 %v1266, 32
        %v1343 = vpop.permute.xlu0 %1342
        %1344 = vrot.lane.b32.xlu0 %v1267, 32
        %v1345 = vpop.permute.xlu0 %1344
        %1346 = vrot.lane.b32.xlu0 %v1268, 32
        %v1347 = vpop.permute.xlu0 %1346
        %1348 = vrot.lane.b32.xlu0 %v1269, 32
        %v1349 = vpop.permute.xlu0 %1348
        %1350 = vrot.lane.b32.xlu0 %v1270, 32
        %v1351 = vpop.permute.xlu0 %1350
        %1352 = vrot.lane.b32.xlu0 %v1271, 32
        %v1353 = vpop.permute.xlu0 %1352
        %1354 = vrot.lane.b32.xlu0 %v1272, 32
        %v1355 = vpop.permute.xlu0 %1354
        %1356 = vrot.lane.b32.xlu0 %v1273, 32
        %v1357 = vpop.permute.xlu0 %1356
        %1358 = vrot.lane.b32.xlu0 %v1274, 32
        %v1359 = vpop.permute.xlu0 %1358
        %1360 = vrot.lane.b32.xlu0 %v1275, 32
        %v1361 = vpop.permute.xlu0 %1360
        %1362 = vrot.lane.b32.xlu0 %v1276, 32
        %v1363 = vpop.permute.xlu0 %1362
        %1364 = vrot.lane.b32.xlu0 %v1277, 32
        %v1365 = vpop.permute.xlu0 %1364
        %1366 = vrot.lane.b32.xlu0 %v1278, 32
        %v1367 = vpop.permute.xlu0 %1366
        %1368 = vrot.lane.b32.xlu0 %v1279, 32
        %v1369 = vpop.permute.xlu0 %1368
        %1370 = vrot.lane.b32.xlu0 %v1280, 32
        %v1371 = vpop.permute.xlu0 %1370
        %1372 = vrot.lane.b32.xlu0 %v1281, 32
        %v1373 = vpop.permute.xlu0 %1372
        %1374 = vrot.lane.b32.xlu0 %v1282, 32
        %v1375 = vpop.permute.xlu0 %1374
        %1376 = vrot.lane.b32.xlu0 %v1283, 32
        %v1377 = vpop.permute.xlu0 %1376
        %1378 = vrot.lane.b32.xlu0 %v1284, 32
        %v1379 = vpop.permute.xlu0 %1378
        %1380 = vrot.lane.b32.xlu0 %v1285, 32
        %v1381 = vpop.permute.xlu0 %1380
        %v1414 = vmul.f32 %v999, %v1319
        %v1415 = vmul.f32 %v1001, %v1321
        %v1416 = vmul.f32 %v1003, %v1323
        %v1417 = vmul.f32 %v1005, %v1325
        %v1418 = vmul.f32 %v1007, %v1327
        %v1419 = vmul.f32 %v1009, %v1329
        %v1420 = vmul.f32 %v1011, %v1331
        %v1421 = vmul.f32 %v1013, %v1333
        %v1422 = vmul.f32 %v1015, %v1335
        %v1423 = vmul.f32 %v1017, %v1337
        %v1424 = vmul.f32 %v1019, %v1339
        %v1425 = vmul.f32 %v1021, %v1341
        %v1426 = vmul.f32 %v1023, %v1343
        %v1427 = vmul.f32 %v1025, %v1345
        %v1428 = vmul.f32 %v1027, %v1347
        %v1429 = vmul.f32 %v1029, %v1349
        %v1430 = vmul.f32 %v1031, %v1351
        %v1431 = vmul.f32 %v1033, %v1353
        %v1432 = vmul.f32 %v1035, %v1355
        %v1433 = vmul.f32 %v1037, %v1357
        %v1434 = vmul.f32 %v1039, %v1359
        %v1435 = vmul.f32 %v1041, %v1361
        %v1436 = vmul.f32 %v1043, %v1363
        %v1437 = vmul.f32 %v1045, %v1365
        %v1438 = vmul.f32 %v1047, %v1367
        %v1439 = vmul.f32 %v1049, %v1369
        %v1440 = vmul.f32 %v1051, %v1371
        %v1441 = vmul.f32 %v1053, %v1373
        %v1442 = vmul.f32 %v1055, %v1375
        %v1443 = vmul.f32 %v1057, %v1377
        %v1444 = vmul.f32 %v1059, %v1379
        %v1445 = vmul.f32 %v1061, %v1381
        %v1446 = vpack.c.bf16 %v1415, %v1414
        %v1447 = vpack.c.bf16 %v1417, %v1416
        %v1448 = vpack.c.bf16 %v1419, %v1418
        %v1449 = vpack.c.bf16 %v1421, %v1420
        %v1450 = vpack.c.bf16 %v1423, %v1422
        %v1451 = vpack.c.bf16 %v1425, %v1424
        %v1452 = vpack.c.bf16 %v1427, %v1426
        %v1453 = vpack.c.bf16 %v1429, %v1428
        %v1454 = vpack.c.bf16 %v1431, %v1430
        %v1455 = vpack.c.bf16 %v1433, %v1432
        %v1456 = vpack.c.bf16 %v1435, %v1434
        %v1457 = vpack.c.bf16 %v1437, %v1436
        %v1458 = vpack.c.bf16 %v1439, %v1438
        %v1459 = vpack.c.bf16 %v1441, %v1440
        %v1460 = vpack.c.bf16 %v1443, %v1442
        %v1461 = vpack.c.bf16 %v1445, %v1444
        %v1462 = vld [vmem:[%s3] sm:$0xf]
        %v1463 = vld [vmem:[%s3 + $0x4] sm:$0xf]
        %v1464 = vld [vmem:[%s3 + $0x8] sm:$0xf]
        %v1465 = vld [vmem:[%s3 + $0xc] sm:$0xf]
        %v1466 = vld [vmem:[%s4] sm:$0x1]
        %v1468 = vlaneseq
        %v1469 = vshrl.u32 %v1468, 7
        %v1470 = vsub.s32 0, %v1469
        %v1471 = vrot.slane %v1466, %v1470
        %1489 = vrot.lane.b32.xlu0 %v1446, 96
        %v1490 = vpop.permute.xlu0 %1489
        %1491 = vrot.lane.b32.xlu0 %v1447, 96
        %v1492 = vpop.permute.xlu0 %1491
        %1493 = vrot.lane.b32.xlu0 %v1448, 96
        %v1494 = vpop.permute.xlu0 %1493
        %1495 = vrot.lane.b32.xlu0 %v1449, 96
        %v1496 = vpop.permute.xlu0 %1495
        %1497 = vrot.lane.b32.xlu0 %v1450, 96
        %v1498 = vpop.permute.xlu0 %1497
        %1499 = vrot.lane.b32.xlu0 %v1451, 96
        %v1500 = vpop.permute.xlu0 %1499
        %1501 = vrot.lane.b32.xlu0 %v1452, 96
        %v1502 = vpop.permute.xlu0 %1501
        %1503 = vrot.lane.b32.xlu0 %v1453, 96
        %v1504 = vpop.permute.xlu0 %1503
        %1505 = vrot.lane.b32.xlu0 %v1454, 96
        %v1506 = vpop.permute.xlu0 %1505
        %1507 = vrot.lane.b32.xlu0 %v1455, 96
        %v1508 = vpop.permute.xlu0 %1507
        %1509 = vrot.lane.b32.xlu0 %v1456, 96
        %v1510 = vpop.permute.xlu0 %1509
        %1511 = vrot.lane.b32.xlu0 %v1457, 96
        %v1512 = vpop.permute.xlu0 %1511
        %1513 = vrot.lane.b32.xlu0 %v1458, 96
        %v1514 = vpop.permute.xlu0 %1513
        %1515 = vrot.lane.b32.xlu0 %v1459, 96
        %v1516 = vpop.permute.xlu0 %1515
        %1517 = vrot.lane.b32.xlu0 %v1460, 96
        %v1518 = vpop.permute.xlu0 %1517
        %1519 = vrot.lane.b32.xlu0 %v1461, 96
        %v1520 = vpop.permute.xlu0 %1519
        %v1525 = vunpack.c.l.b16 %v1462
        %v1526 = vunpack.c.l.b16 %v1463
        %v1527 = vunpack.c.l.b16 %v1464
        %v1528 = vunpack.c.l.b16 %v1465
        %v1529 = vpack.c.b16 %v1526, %v1525
        %v1530 = vpack.c.b16 %v1528, %v1527
        %vm1533 = vcmask 261120
        %v1535 = vsel %vm1533, %v1490, 0
        %v1538 = vsel %vm1533, %v1492, 0
        %v1541 = vsel %vm1533, %v1494, 0
        %v1544 = vsel %vm1533, %v1496, 0
        %v1547 = vsel %vm1533, %v1498, 0
        %v1550 = vsel %vm1533, %v1500, 0
        %v1553 = vsel %vm1533, %v1502, 0
        %v1556 = vsel %vm1533, %v1504, 0
        %v1559 = vsel %vm1533, %v1506, 0
        %v1562 = vsel %vm1533, %v1508, 0
        %v1565 = vsel %vm1533, %v1510, 0
        %v1568 = vsel %vm1533, %v1512, 0
        %v1571 = vsel %vm1533, %v1514, 0
        %v1574 = vsel %vm1533, %v1516, 0
        %v1577 = vsel %vm1533, %v1518, 0
        %v1580 = vsel %vm1533, %v1520, 0
        %1582 = vmatprep.subr.bf16.mxu0 0
        %1583 = vmatpush1.bf16.msra.mxu0 0
        %1584 = vmatprep.subr.bf16.mxu0 0
        %1585 = vmatpush1.bf16.msra.mxu0 0
        %1586 = vmatprep.subr.bf16.mxu0 0
        %1587 = vmatpush1.bf16.msra.mxu0 0
        %1588 = vmatprep.subr.bf16.mxu0 0
        %1589 = vmatpush1.bf16.msra.mxu0 0
        %1590 = vmatprep.subr.bf16.mxu0 0
        %1591 = vmatpush1.bf16.msra.mxu0 0
        %1592 = vmatprep.subr.bf16.mxu0 0
        %1593 = vmatpush1.bf16.msra.mxu0 0
        %1594 = vmatprep.subr.bf16.mxu0 0
        %1595 = vmatpush1.bf16.msra.mxu0 %v1530
        %1596 = vmatprep.subr.bf16.mxu0 0
        %1597 = vmatpush1.bf16.msra.mxu0 %v1529
        %1598 = vmatprep.subr.bf16.mxu0 0
        %1599 = vmatpush2.bf16.msra.mxu0 0
        %1600 = vmatprep.subr.bf16.mxu0 0
        %1601 = vmatpush2.bf16.msra.mxu0 0
        %1602 = vmatprep.subr.bf16.mxu0 0
        %1603 = vmatpush2.bf16.msra.mxu0 0
        %1604 = vmatprep.subr.bf16.mxu0 0
        %1605 = vmatpush2.bf16.msra.mxu0 0
        %1606 = vmatprep.subr.bf16.mxu0 0
        %1607 = vmatpush2.bf16.msra.mxu0 0
        %1608 = vmatprep.subr.bf16.mxu0 0
        %1609 = vmatpush2.bf16.msra.mxu0 0
        %1610 = vmatprep.subr.bf16.mxu0 0
        %1611 = vmatpush2.bf16.msra.mxu0 0
        %1612 = vmatprep.subr.bf16.mxu0 0
        %1613 = vmatpush2.bf16.msra.mxu0 0
        %1614 = vmatprep.mubr.bf16.mxu0 0
        %1615 = vmatmul.mubr.bf16.gmra.mxu0 %v1535
        %v1616 = vpop.f32.mrf.mxu0
        %v1617 = vadd.f32 %v1471, %v1616
        %v1618 = vpop.f32.mrf.mxu0
        %v1619 = vpop.f32.mrf.mxu0
        %v1620 = vadd.f32 %v1471, %v1619
        %v1621 = vpop.f32.mrf.mxu0
        %1622 = vmatprep.mubr.bf16.mxu0 0
        %1623 = vmatmul.mubr.bf16.gmra.mxu0 %v1538
        %v1624 = vpop.f32.mrf.mxu0
        %v1625 = vadd.f32 %v1471, %v1624
        %v1626 = vpop.f32.mrf.mxu0
        %v1627 = vpop.f32.mrf.mxu0
        %v1628 = vadd.f32 %v1471, %v1627
        %v1629 = vpop.f32.mrf.mxu0
        %1630 = vmatprep.mubr.bf16.mxu0 0
        %1631 = vmatmul.mubr.bf16.gmra.mxu0 %v1541
        %v1632 = vpop.f32.mrf.mxu0
        %v1633 = vadd.f32 %v1471, %v1632
        %v1634 = vpop.f32.mrf.mxu0
        %v1635 = vpop.f32.mrf.mxu0
        %v1636 = vadd.f32 %v1471, %v1635
        %v1637 = vpop.f32.mrf.mxu0
        %1638 = vmatprep.mubr.bf16.mxu0 0
        %1639 = vmatmul.mubr.bf16.gmra.mxu0 %v1544
        %v1640 = vpop.f32.mrf.mxu0
        %v1641 = vadd.f32 %v1471, %v1640
        %v1642 = vpop.f32.mrf.mxu0
        %v1643 = vpop.f32.mrf.mxu0
        %v1644 = vadd.f32 %v1471, %v1643
        %v1645 = vpop.f32.mrf.mxu0
        %1646 = vmatprep.mubr.bf16.mxu0 0
        %1647 = vmatmul.mubr.bf16.gmra.mxu0 %v1547
        %v1648 = vpop.f32.mrf.mxu0
        %v1649 = vadd.f32 %v1471, %v1648
        %v1650 = vpop.f32.mrf.mxu0
        %v1651 = vpop.f32.mrf.mxu0
        %v1652 = vadd.f32 %v1471, %v1651
        %v1653 = vpop.f32.mrf.mxu0
        %1654 = vmatprep.mubr.bf16.mxu0 0
        %1655 = vmatmul.mubr.bf16.gmra.mxu0 %v1550
        %v1656 = vpop.f32.mrf.mxu0
        %v1657 = vadd.f32 %v1471, %v1656
        %v1658 = vpop.f32.mrf.mxu0
        %v1659 = vpop.f32.mrf.mxu0
        %v1660 = vadd.f32 %v1471, %v1659
        %v1661 = vpop.f32.mrf.mxu0
        %1662 = vmatprep.mubr.bf16.mxu0 0
        %1663 = vmatmul.mubr.bf16.gmra.mxu0 %v1553
        %v1664 = vpop.f32.mrf.mxu0
        %v1665 = vadd.f32 %v1471, %v1664
        %v1666 = vpop.f32.mrf.mxu0
        %v1667 = vpop.f32.mrf.mxu0
        %v1668 = vadd.f32 %v1471, %v1667
        %v1669 = vpop.f32.mrf.mxu0
        %1670 = vmatprep.mubr.bf16.mxu0 0
        %1671 = vmatmul.mubr.bf16.gmra.mxu0 %v1556
        %v1672 = vpop.f32.mrf.mxu0
        %v1673 = vadd.f32 %v1471, %v1672
        %v1674 = vpop.f32.mrf.mxu0
        %v1675 = vpop.f32.mrf.mxu0
        %v1676 = vadd.f32 %v1471, %v1675
        %v1677 = vpop.f32.mrf.mxu0
        %1678 = vmatprep.mubr.bf16.mxu0 0
        %1679 = vmatmul.mubr.bf16.gmra.mxu0 %v1559
        %v1680 = vpop.f32.mrf.mxu0
        %v1681 = vadd.f32 %v1471, %v1680
        %v1682 = vpop.f32.mrf.mxu0
        %v1683 = vpop.f32.mrf.mxu0
        %v1684 = vadd.f32 %v1471, %v1683
        %v1685 = vpop.f32.mrf.mxu0
        %1686 = vmatprep.mubr.bf16.mxu0 0
        %1687 = vmatmul.mubr.bf16.gmra.mxu0 %v1562
        %v1688 = vpop.f32.mrf.mxu0
        %v1689 = vadd.f32 %v1471, %v1688
        %v1690 = vpop.f32.mrf.mxu0
        %v1691 = vpop.f32.mrf.mxu0
        %v1692 = vadd.f32 %v1471, %v1691
        %v1693 = vpop.f32.mrf.mxu0
        %1694 = vmatprep.mubr.bf16.mxu0 0
        %1695 = vmatmul.mubr.bf16.gmra.mxu0 %v1565
        %v1696 = vpop.f32.mrf.mxu0
        %v1697 = vadd.f32 %v1471, %v1696
        %v1698 = vpop.f32.mrf.mxu0
        %v1699 = vpop.f32.mrf.mxu0
        %v1700 = vadd.f32 %v1471, %v1699
        %v1701 = vpop.f32.mrf.mxu0
        %1702 = vmatprep.mubr.bf16.mxu0 0
        %1703 = vmatmul.mubr.bf16.gmra.mxu0 %v1568
        %v1704 = vpop.f32.mrf.mxu0
        %v1705 = vadd.f32 %v1471, %v1704
        %v1706 = vpop.f32.mrf.mxu0
        %v1707 = vpop.f32.mrf.mxu0
        %v1708 = vadd.f32 %v1471, %v1707
        %v1709 = vpop.f32.mrf.mxu0
        %1710 = vmatprep.mubr.bf16.mxu0 0
        %1711 = vmatmul.mubr.bf16.gmra.mxu0 %v1571
        %v1712 = vpop.f32.mrf.mxu0
        %v1713 = vadd.f32 %v1471, %v1712
        %v1714 = vpop.f32.mrf.mxu0
        %v1715 = vpop.f32.mrf.mxu0
        %v1716 = vadd.f32 %v1471, %v1715
        %v1717 = vpop.f32.mrf.mxu0
        %1718 = vmatprep.mubr.bf16.mxu0 0
        %1719 = vmatmul.mubr.bf16.gmra.mxu0 %v1574
        %v1720 = vpop.f32.mrf.mxu0
        %v1721 = vadd.f32 %v1471, %v1720
        %v1722 = vpop.f32.mrf.mxu0
        %v1723 = vpop.f32.mrf.mxu0
        %v1724 = vadd.f32 %v1471, %v1723
        %v1725 = vpop.f32.mrf.mxu0
        %1726 = vmatprep.mubr.bf16.mxu0 0
        %1727 = vmatmul.mubr.bf16.gmra.mxu0 %v1577
        %v1728 = vpop.f32.mrf.mxu0
        %v1729 = vadd.f32 %v1471, %v1728
        %v1730 = vpop.f32.mrf.mxu0
        %v1731 = vpop.f32.mrf.mxu0
        %v1732 = vadd.f32 %v1471, %v1731
        %v1733 = vpop.f32.mrf.mxu0
        %1734 = vmatprep.mubr.bf16.mxu0 0
        %1735 = vmatmul.mubr.bf16.gmra.mxu0 %v1580
        %v1736 = vpop.f32.mrf.mxu0
        %v1737 = vadd.f32 %v1471, %v1736
        %v1738 = vpop.f32.mrf.mxu0
        %v1739 = vpop.f32.mrf.mxu0
        %v1740 = vadd.f32 %v1471, %v1739
        %v1741 = vpop.f32.mrf.mxu0
        %1742 = vdwg.mxu0
        %s1743 = scalar_lea.vmem %s522, 224 [#allocation3]
        %vm1744 = vcmask 31744
        %1745 = vst.msk [vmem:[%s1743] sm:$0xff] %vm1744, %v1617
        %1746 = vst.msk [vmem:[%s1743 + $0x8] sm:$0xff] %vm1744, %v1620
        %1747 = vst.msk [vmem:[%s1743 + $0x10] sm:$0xff] %vm1744, %v1625
        %1748 = vst.msk [vmem:[%s1743 + $0x18] sm:$0xff] %vm1744, %v1628
        %1749 = vst.msk [vmem:[%s1743 + $0x20] sm:$0xff] %vm1744, %v1633
        %1750 = vst.msk [vmem:[%s1743 + $0x28] sm:$0xff] %vm1744, %v1636
        %1751 = vst.msk [vmem:[%s1743 + $0x30] sm:$0xff] %vm1744, %v1641
        %1752 = vst.msk [vmem:[%s1743 + $0x38] sm:$0xff] %vm1744, %v1644
        %1753 = vst.msk [vmem:[%s1743 + $0x40] sm:$0xff] %vm1744, %v1649
        %1754 = vst.msk [vmem:[%s1743 + $0x48] sm:$0xff] %vm1744, %v1652
        %1755 = vst.msk [vmem:[%s1743 + $0x50] sm:$0xff] %vm1744, %v1657
        %1756 = vst.msk [vmem:[%s1743 + $0x58] sm:$0xff] %vm1744, %v1660
        %1757 = vst.msk [vmem:[%s1743 + $0x60] sm:$0xff] %vm1744, %v1665
        %1758 = vst.msk [vmem:[%s1743 + $0x68] sm:$0xff] %vm1744, %v1668
        %1759 = vst.msk [vmem:[%s1743 + $0x70] sm:$0xff] %vm1744, %v1673
        %1760 = vst.msk [vmem:[%s1743 + $0x78] sm:$0xff] %vm1744, %v1676
        %1761 = vst.msk [vmem:[%s1743 + $0x80] sm:$0xff] %vm1744, %v1681
        %1762 = vst.msk [vmem:[%s1743 + $0x88] sm:$0xff] %vm1744, %v1684
        %1763 = vst.msk [vmem:[%s1743 + $0x90] sm:$0xff] %vm1744, %v1689
        %1764 = vst.msk [vmem:[%s1743 + $0x98] sm:$0xff] %vm1744, %v1692
        %1765 = vst.msk [vmem:[%s1743 + $0xa0] sm:$0xff] %vm1744, %v1697
        %1766 = vst.msk [vmem:[%s1743 + $0xa8] sm:$0xff] %vm1744, %v1700
        %1767 = vst.msk [vmem:[%s1743 + $0xb0] sm:$0xff] %vm1744, %v1705
        %1768 = vst.msk [vmem:[%s1743 + $0xb8] sm:$0xff] %vm1744, %v1708
        %1769 = vst.msk [vmem:[%s1743 + $0xc0] sm:$0xff] %vm1744, %v1713
        %1770 = vst.msk [vmem:[%s1743 + $0xc8] sm:$0xff] %vm1744, %v1716
        %1771 = vst.msk [vmem:[%s1743 + $0xd0] sm:$0xff] %vm1744, %v1721
        %1772 = vst.msk [vmem:[%s1743 + $0xd8] sm:$0xff] %vm1744, %v1724
        %1773 = vst.msk [vmem:[%s1743 + $0xe0] sm:$0xff] %vm1744, %v1729
        %1774 = vst.msk [vmem:[%s1743 + $0xe8] sm:$0xff] %vm1744, %v1732
        %1775 = vst.msk [vmem:[%s1743 + $0xf0] sm:$0xff] %vm1744, %v1737
        %1776 = vst.msk [vmem:[%s1743 + $0xf8] sm:$0xff] %vm1744, %v1740
        %1793 = vrot.lane.b32.xlu0 %v1414, 96
        %v1794 = vpop.permute.xlu0 %1793
        %1795 = vrot.lane.b32.xlu0 %v1415, 96
        %v1796 = vpop.permute.xlu0 %1795
        %1797 = vrot.lane.b32.xlu0 %v1416, 96
        %v1798 = vpop.permute.xlu0 %1797
        %1799 = vrot.lane.b32.xlu0 %v1417, 96
        %v1800 = vpop.permute.xlu0 %1799
        %1801 = vrot.lane.b32.xlu0 %v1422, 96
        %v1802 = vpop.permute.xlu0 %1801
        %1803 = vrot.lane.b32.xlu0 %v1423, 96
        %v1804 = vpop.permute.xlu0 %1803
        %1805 = vrot.lane.b32.xlu0 %v1424, 96
        %v1806 = vpop.permute.xlu0 %1805
        %1807 = vrot.lane.b32.xlu0 %v1425, 96
        %v1808 = vpop.permute.xlu0 %1807
        %1809 = vrot.lane.b32.xlu0 %v1430, 96
        %v1810 = vpop.permute.xlu0 %1809
        %1811 = vrot.lane.b32.xlu0 %v1431, 96
        %v1812 = vpop.permute.xlu0 %1811
        %1813 = vrot.lane.b32.xlu0 %v1432, 96
        %v1814 = vpop.permute.xlu0 %1813
        %1815 = vrot.lane.b32.xlu0 %v1433, 96
        %v1816 = vpop.permute.xlu0 %1815
        %1817 = vrot.lane.b32.xlu0 %v1438, 96
        %v1818 = vpop.permute.xlu0 %1817
        %1819 = vrot.lane.b32.xlu0 %v1439, 96
        %v1820 = vpop.permute.xlu0 %1819
        %1821 = vrot.lane.b32.xlu0 %v1440, 96
        %v1822 = vpop.permute.xlu0 %1821
        %1823 = vrot.lane.b32.xlu0 %v1441, 96
        %v1824 = vpop.permute.xlu0 %1823
        %v1841 = vsel %vm1533, %v1794, %v1418
        %v1842 = vsel %vm1533, %v1796, %v1419
        %v1843 = vsel %vm1533, %v1798, %v1420
        %v1844 = vsel %vm1533, %v1800, %v1421
        %v1845 = vsel %vm1533, %v1802, %v1426
        %v1846 = vsel %vm1533, %v1804, %v1427
        %v1847 = vsel %vm1533, %v1806, %v1428
        %v1848 = vsel %vm1533, %v1808, %v1429
        %v1849 = vsel %vm1533, %v1810, %v1434
        %v1850 = vsel %vm1533, %v1812, %v1435
        %v1851 = vsel %vm1533, %v1814, %v1436
        %v1852 = vsel %vm1533, %v1816, %v1437
        %v1853 = vsel %vm1533, %v1818, %v1442
        %v1854 = vsel %vm1533, %v1820, %v1443
        %v1855 = vsel %vm1533, %v1822, %v1444
        %v1856 = vsel %vm1533, %v1824, %v1445
        %v1857 = vpack.c.bf16 %v1842, %v1841
        %v1858 = vpack.c.bf16 %v1844, %v1843
        %v1859 = vpack.c.bf16 %v1846, %v1845
        %v1860 = vpack.c.bf16 %v1848, %v1847
        %v1861 = vpack.c.bf16 %v1850, %v1849
        %v1862 = vpack.c.bf16 %v1852, %v1851
        %v1863 = vpack.c.bf16 %v1854, %v1853
        %v1864 = vpack.c.bf16 %v1856, %v1855
        %v1865 = vld [vmem:[%s5] sm:$0xf]
        %v1866 = vld [vmem:[%s5 + $0x4] sm:$0xf]
        %v1867 = vld [vmem:[%s5 + $0x8] sm:$0xf]
        %v1868 = vld [vmem:[%s5 + $0xc] sm:$0xf]
        %v1869 = vld [vmem:[%s5 + $0x10] sm:$0xf]
        %v1870 = vld [vmem:[%s5 + $0x14] sm:$0xf]
        %v1871 = vld [vmem:[%s5 + $0x18] sm:$0xf]
        %v1872 = vld [vmem:[%s5 + $0x1c] sm:$0xf]
        %v1873 = vld [vmem:[%s6] sm:$0x1]
        %v1875 = vlaneseq
        %v1876 = vshrl.u32 %v1875, 7
        %v1877 = vsub.s32 0, %v1876
        %v1878 = vrot.slane %v1873, %v1877
        %v1888 = vunpack.c.l.b16 %v1865
        %v1889 = vunpack.c.l.b16 %v1866
        %v1890 = vunpack.c.l.b16 %v1867
        %v1891 = vunpack.c.l.b16 %v1868
        %v1892 = vunpack.c.l.b16 %v1869
        %v1893 = vunpack.c.l.b16 %v1870
        %v1894 = vunpack.c.l.b16 %v1871
        %v1895 = vunpack.c.l.b16 %v1872
        %v1896 = vpack.c.b16 %v1889, %v1888
        %v1897 = vpack.c.b16 %v1891, %v1890
        %v1898 = vpack.c.b16 %v1893, %v1892
        %v1899 = vpack.c.b16 %v1895, %v1894
        %vm1904 = vcmask 523264
        %v1906 = vsel %vm1904, %v1857, 0
        %v1909 = vsel %vm1904, %v1858, 0
        %v1912 = vsel %vm1904, %v1859, 0
        %v1915 = vsel %vm1904, %v1860, 0
        %v1918 = vsel %vm1904, %v1861, 0
        %v1921 = vsel %vm1904, %v1862, 0
        %v1924 = vsel %vm1904, %v1863, 0
        %v1927 = vsel %vm1904, %v1864, 0
        %1929 = vmatprep.subr.bf16.mxu0 0
        %1930 = vmatpush1.bf16.msra.mxu0 0
        %1931 = vmatprep.subr.bf16.mxu0 0
        %1932 = vmatpush1.bf16.msra.mxu0 0
        %1933 = vmatprep.subr.bf16.mxu0 0
        %1934 = vmatpush1.bf16.msra.mxu0 0
        %1935 = vmatprep.subr.bf16.mxu0 0
        %1936 = vmatpush1.bf16.msra.mxu0 0
        %1937 = vmatprep.subr.bf16.mxu0 0
        %1938 = vmatpush1.bf16.msra.mxu0 %v1899
        %1939 = vmatprep.subr.bf16.mxu0 0
        %1940 = vmatpush1.bf16.msra.mxu0 %v1898
        %1941 = vmatprep.subr.bf16.mxu0 0
        %1942 = vmatpush1.bf16.msra.mxu0 %v1897
        %1943 = vmatprep.subr.bf16.mxu0 0
        %1944 = vmatpush1.bf16.msra.mxu0 %v1896
        %1945 = vmatprep.subr.bf16.mxu0 0
        %1946 = vmatpush2.bf16.msra.mxu0 0
        %1947 = vmatprep.subr.bf16.mxu0 0
        %1948 = vmatpush2.bf16.msra.mxu0 0
        %1949 = vmatprep.subr.bf16.mxu0 0
        %1950 = vmatpush2.bf16.msra.mxu0 0
        %1951 = vmatprep.subr.bf16.mxu0 0
        %1952 = vmatpush2.bf16.msra.mxu0 0
        %1953 = vmatprep.subr.bf16.mxu0 0
        %1954 = vmatpush2.bf16.msra.mxu0 0
        %1955 = vmatprep.subr.bf16.mxu0 0
        %1956 = vmatpush2.bf16.msra.mxu0 0
        %1957 = vmatprep.subr.bf16.mxu0 0
        %1958 = vmatpush2.bf16.msra.mxu0 0
        %1959 = vmatprep.subr.bf16.mxu0 0
        %1960 = vmatpush2.bf16.msra.mxu0 0
        %1961 = vmatprep.mubr.bf16.mxu0 0
        %1962 = vmatmul.mubr.bf16.gmra.mxu0 %v1906
        %v1963 = vpop.f32.mrf.mxu0
        %v1964 = vadd.f32 %v1878, %v1963
        %v1965 = vpop.f32.mrf.mxu0
        %v1966 = vpop.f32.mrf.mxu0
        %v1967 = vadd.f32 %v1878, %v1966
        %v1968 = vpop.f32.mrf.mxu0
        %1969 = vmatprep.mubr.bf16.mxu0 0
        %1970 = vmatmul.mubr.bf16.gmra.mxu0 %v1909
        %v1971 = vpop.f32.mrf.mxu0
        %v1972 = vadd.f32 %v1878, %v1971
        %v1973 = vpop.f32.mrf.mxu0
        %v1974 = vpop.f32.mrf.mxu0
        %v1975 = vadd.f32 %v1878, %v1974
        %v1976 = vpop.f32.mrf.mxu0
        %1977 = vmatprep.mubr.bf16.mxu0 0
        %1978 = vmatmul.mubr.bf16.gmra.mxu0 %v1912
        %v1979 = vpop.f32.mrf.mxu0
        %v1980 = vadd.f32 %v1878, %v1979
        %v1981 = vpop.f32.mrf.mxu0
        %v1982 = vpop.f32.mrf.mxu0
        %v1983 = vadd.f32 %v1878, %v1982
        %v1984 = vpop.f32.mrf.mxu0
        %1985 = vmatprep.mubr.bf16.mxu0 0
        %1986 = vmatmul.mubr.bf16.gmra.mxu0 %v1915
        %v1987 = vpop.f32.mrf.mxu0
        %v1988 = vadd.f32 %v1878, %v1987
        %v1989 = vpop.f32.mrf.mxu0
        %v1990 = vpop.f32.mrf.mxu0
        %v1991 = vadd.f32 %v1878, %v1990
        %v1992 = vpop.f32.mrf.mxu0
        %1993 = vmatprep.mubr.bf16.mxu0 0
        %1994 = vmatmul.mubr.bf16.gmra.mxu0 %v1918
        %v1995 = vpop.f32.mrf.mxu0
        %v1996 = vadd.f32 %v1878, %v1995
        %v1997 = vpop.f32.mrf.mxu0
        %v1998 = vpop.f32.mrf.mxu0
        %v1999 = vadd.f32 %v1878, %v1998
        %v2000 = vpop.f32.mrf.mxu0
        %2001 = vmatprep.mubr.bf16.mxu0 0
        %2002 = vmatmul.mubr.bf16.gmra.mxu0 %v1921
        %v2003 = vpop.f32.mrf.mxu0
        %v2004 = vadd.f32 %v1878, %v2003
        %v2005 = vpop.f32.mrf.mxu0
        %v2006 = vpop.f32.mrf.mxu0
        %v2007 = vadd.f32 %v1878, %v2006
        %v2008 = vpop.f32.mrf.mxu0
        %2009 = vmatprep.mubr.bf16.mxu0 0
        %2010 = vmatmul.mubr.bf16.gmra.mxu0 %v1924
        %v2011 = vpop.f32.mrf.mxu0
        %v2012 = vadd.f32 %v1878, %v2011
        %v2013 = vpop.f32.mrf.mxu0
        %v2014 = vpop.f32.mrf.mxu0
        %v2015 = vadd.f32 %v1878, %v2014
        %v2016 = vpop.f32.mrf.mxu0
        %2017 = vmatprep.mubr.bf16.mxu0 0
        %2018 = vmatmul.mubr.bf16.gmra.mxu0 %v1927
        %v2019 = vpop.f32.mrf.mxu0
        %v2020 = vadd.f32 %v1878, %v2019
        %v2021 = vpop.f32.mrf.mxu0
        %v2022 = vpop.f32.mrf.mxu0
        %v2023 = vadd.f32 %v1878, %v2022
        %v2024 = vpop.f32.mrf.mxu0
        %2025 = vdwg.mxu0
        %v2026 = vpack.c.bf16 %v1967, %v1964
        %v2027 = vpack.c.bf16 %v1975, %v1972
        %v2028 = vpack.c.bf16 %v1983, %v1980
        %v2029 = vpack.c.bf16 %v1991, %v1988
        %v2030 = vpack.c.bf16 %v1999, %v1996
        %v2031 = vpack.c.bf16 %v2007, %v2004
        %v2032 = vpack.c.bf16 %v2015, %v2012
        %v2033 = vpack.c.bf16 %v2023, %v2020
        %v2034 = vld [vmem:[%s7] sm:$0xf]
        %v2035 = vld [vmem:[%s7 + $0x4] sm:$0xf]
        %v2036 = vld [vmem:[%s7 + $0x8] sm:$0xf]
        %v2037 = vld [vmem:[%s7 + $0xc] sm:$0xf]
        %v2042 = vunpack.c.l.b16 %v2034
        %v2043 = vunpack.c.l.b16 %v2035
        %v2044 = vunpack.c.l.b16 %v2036
        %v2045 = vunpack.c.l.b16 %v2037
        %v2046 = vpack.c.b16 %v2043, %v2042
        %v2047 = vpack.c.b16 %v2045, %v2044
        %v2051 = vsel %vm1533, %v2026, 0
        %v2054 = vsel %vm1533, %v2027, 0
        %v2057 = vsel %vm1533, %v2028, 0
        %v2060 = vsel %vm1533, %v2029, 0
        %v2063 = vsel %vm1533, %v2030, 0
        %v2066 = vsel %vm1533, %v2031, 0
        %v2069 = vsel %vm1533, %v2032, 0
        %v2072 = vsel %vm1533, %v2033, 0
        %2074 = vmatprep.subr.bf16.mxu0 0
        %2075 = vmatpush1.bf16.msra.mxu0 0
        %2076 = vmatprep.subr.bf16.mxu0 0
        %2077 = vmatpush1.bf16.msra.mxu0 0
        %2078 = vmatprep.subr.bf16.mxu0 0
        %2079 = vmatpush1.bf16.msra.mxu0 0
        %2080 = vmatprep.subr.bf16.mxu0 0
        %2081 = vmatpush1.bf16.msra.mxu0 0
        %2082 = vmatprep.subr.bf16.mxu0 0
        %2083 = vmatpush1.bf16.msra.mxu0 0
        %2084 = vmatprep.subr.bf16.mxu0 0
        %2085 = vmatpush1.bf16.msra.mxu0 0
        %2086 = vmatprep.subr.bf16.mxu0 0
        %2087 = vmatpush1.bf16.msra.mxu0 %v2047
        %2088 = vmatprep.subr.bf16.mxu0 0
        %2089 = vmatpush1.bf16.msra.mxu0 %v2046
        %2090 = vmatprep.subr.bf16.mxu0 0
        %2091 = vmatpush2.bf16.msra.mxu0 0
        %2092 = vmatprep.subr.bf16.mxu0 0
        %2093 = vmatpush2.bf16.msra.mxu0 0
        %2094 = vmatprep.subr.bf16.mxu0 0
        %2095 = vmatpush2.bf16.msra.mxu0 0
        %2096 = vmatprep.subr.bf16.mxu0 0
        %2097 = vmatpush2.bf16.msra.mxu0 0
        %2098 = vmatprep.subr.bf16.mxu0 0
        %2099 = vmatpush2.bf16.msra.mxu0 0
        %2100 = vmatprep.subr.bf16.mxu0 0
        %2101 = vmatpush2.bf16.msra.mxu0 0
        %2102 = vmatprep.subr.bf16.mxu0 0
        %2103 = vmatpush2.bf16.msra.mxu0 0
        %2104 = vmatprep.subr.bf16.mxu0 0
        %2105 = vmatpush2.bf16.msra.mxu0 0
        %2106 = vmatprep.mubr.bf16.mxu0 0
        %2107 = vmatmul.mubr.bf16.gmra.mxu0 %v2051
        %v2108 = vpop.f32.mrf.mxu0
        %v2109 = vadd.f32 0.0, %v2108
        %v2110 = vpop.f32.mrf.mxu0
        %v2111 = vpop.f32.mrf.mxu0
        %v2112 = vadd.f32 0.0, %v2111
        %v2113 = vpop.f32.mrf.mxu0
        %2114 = vmatprep.mubr.bf16.mxu0 0
        %2115 = vmatmul.mubr.bf16.gmra.mxu0 %v2054
        %v2116 = vpop.f32.mrf.mxu0
        %v2117 = vadd.f32 0.0, %v2116
        %v2118 = vpop.f32.mrf.mxu0
        %v2119 = vpop.f32.mrf.mxu0
        %v2120 = vadd.f32 0.0, %v2119
        %v2121 = vpop.f32.mrf.mxu0
        %2122 = vmatprep.mubr.bf16.mxu0 0
        %2123 = vmatmul.mubr.bf16.gmra.mxu0 %v2057
        %v2124 = vpop.f32.mrf.mxu0
        %v2125 = vadd.f32 0.0, %v2124
        %v2126 = vpop.f32.mrf.mxu0
        %v2127 = vpop.f32.mrf.mxu0
        %v2128 = vadd.f32 0.0, %v2127
        %v2129 = vpop.f32.mrf.mxu0
        %2130 = vmatprep.mubr.bf16.mxu0 0
        %2131 = vmatmul.mubr.bf16.gmra.mxu0 %v2060
        %v2132 = vpop.f32.mrf.mxu0
        %v2133 = vadd.f32 0.0, %v2132
        %v2134 = vpop.f32.mrf.mxu0
        %v2135 = vpop.f32.mrf.mxu0
        %v2136 = vadd.f32 0.0, %v2135
        %v2137 = vpop.f32.mrf.mxu0
        %2138 = vmatprep.mubr.bf16.mxu0 0
        %2139 = vmatmul.mubr.bf16.gmra.mxu0 %v2063
        %v2140 = vpop.f32.mrf.mxu0
        %v2141 = vadd.f32 0.0, %v2140
        %v2142 = vpop.f32.mrf.mxu0
        %v2143 = vpop.f32.mrf.mxu0
        %v2144 = vadd.f32 0.0, %v2143
        %v2145 = vpop.f32.mrf.mxu0
        %2146 = vmatprep.mubr.bf16.mxu0 0
        %2147 = vmatmul.mubr.bf16.gmra.mxu0 %v2066
        %v2148 = vpop.f32.mrf.mxu0
        %v2149 = vadd.f32 0.0, %v2148
        %v2150 = vpop.f32.mrf.mxu0
        %v2151 = vpop.f32.mrf.mxu0
        %v2152 = vadd.f32 0.0, %v2151
        %v2153 = vpop.f32.mrf.mxu0
        %2154 = vmatprep.mubr.bf16.mxu0 0
        %2155 = vmatmul.mubr.bf16.gmra.mxu0 %v2069
        %v2156 = vpop.f32.mrf.mxu0
        %v2157 = vadd.f32 0.0, %v2156
        %v2158 = vpop.f32.mrf.mxu0
        %v2159 = vpop.f32.mrf.mxu0
        %v2160 = vadd.f32 0.0, %v2159
        %v2161 = vpop.f32.mrf.mxu0
        %2162 = vmatprep.mubr.bf16.mxu0 0
        %2163 = vmatmul.mubr.bf16.gmra.mxu0 %v2072
        %v2164 = vpop.f32.mrf.mxu0
        %v2165 = vadd.f32 0.0, %v2164
        %v2166 = vpop.f32.mrf.mxu0
        %v2167 = vpop.f32.mrf.mxu0
        %v2168 = vadd.f32 0.0, %v2167
        %v2169 = vpop.f32.mrf.mxu0
        %2170 = vdwg.mxu0
        %2175 = vrot.lane.b32.xlu0 %v2109, 36
        %v2176 = vpop.permute.xlu0 %2175
        %2177 = vrot.lane.b32.xlu0 %v2112, 36
        %v2178 = vpop.permute.xlu0 %2177
        %2179 = vrot.lane.b32.xlu0 %v2117, 36
        %v2180 = vpop.permute.xlu0 %2179
        %2181 = vrot.lane.b32.xlu0 %v2120, 36
        %v2182 = vpop.permute.xlu0 %2181
        %v2187 = vadd.f32 %v1964, %v2176
        %v2188 = vadd.f32 %v1967, %v2178
        %v2189 = vadd.f32 %v1972, %v2180
        %v2190 = vadd.f32 %v1975, %v2182
        %2191 = vrot.lane.b32.xlu0 %v2109, 52
        %v2192 = vpop.permute.xlu0 %2191
        %2193 = vrot.lane.b32.xlu0 %v2112, 52
        %v2194 = vpop.permute.xlu0 %2193
        %2195 = vrot.lane.b32.xlu0 %v2117, 52
        %v2196 = vpop.permute.xlu0 %2195
        %2197 = vrot.lane.b32.xlu0 %v2120, 52
        %v2198 = vpop.permute.xlu0 %2197
        %v2203 = vadd.f32 %v1964, %v2192
        %v2204 = vadd.f32 %v1967, %v2194
        %v2205 = vadd.f32 %v1972, %v2196
        %v2206 = vadd.f32 %v1975, %v2198
        %2211 = vrot.lane.b32.xlu0 %v2125, 36
        %v2212 = vpop.permute.xlu0 %2211
        %2213 = vrot.lane.b32.xlu0 %v2128, 36
        %v2214 = vpop.permute.xlu0 %2213
        %2215 = vrot.lane.b32.xlu0 %v2133, 36
        %v2216 = vpop.permute.xlu0 %2215
        %2217 = vrot.lane.b32.xlu0 %v2136, 36
        %v2218 = vpop.permute.xlu0 %2217
        %v2223 = vadd.f32 %v1980, %v2212
        %v2224 = vadd.f32 %v1983, %v2214
        %v2225 = vadd.f32 %v1988, %v2216
        %v2226 = vadd.f32 %v1991, %v2218
        %2227 = vrot.lane.b32.xlu0 %v2125, 52
        %v2228 = vpop.permute.xlu0 %2227
        %2229 = vrot.lane.b32.xlu0 %v2128, 52
        %v2230 = vpop.permute.xlu0 %2229
        %2231 = vrot.lane.b32.xlu0 %v2133, 52
        %v2232 = vpop.permute.xlu0 %2231
        %2233 = vrot.lane.b32.xlu0 %v2136, 52
        %v2234 = vpop.permute.xlu0 %2233
        %v2239 = vadd.f32 %v1980, %v2228
        %v2240 = vadd.f32 %v1983, %v2230
        %v2241 = vadd.f32 %v1988, %v2232
        %v2242 = vadd.f32 %v1991, %v2234
        %2247 = vrot.lane.b32.xlu0 %v2141, 36
        %v2248 = vpop.permute.xlu0 %2247
        %2249 = vrot.lane.b32.xlu0 %v2144, 36
        %v2250 = vpop.permute.xlu0 %2249
        %2251 = vrot.lane.b32.xlu0 %v2149, 36
        %v2252 = vpop.permute.xlu0 %2251
        %2253 = vrot.lane.b32.xlu0 %v2152, 36
        %v2254 = vpop.permute.xlu0 %2253
        %v2259 = vadd.f32 %v1996, %v2248
        %v2260 = vadd.f32 %v1999, %v2250
        %v2261 = vadd.f32 %v2004, %v2252
        %v2262 = vadd.f32 %v2007, %v2254
        %2263 = vrot.lane.b32.xlu0 %v2141, 52
        %v2264 = vpop.permute.xlu0 %2263
        %2265 = vrot.lane.b32.xlu0 %v2144, 52
        %v2266 = vpop.permute.xlu0 %2265
        %2267 = vrot.lane.b32.xlu0 %v2149, 52
        %v2268 = vpop.permute.xlu0 %2267
        %2269 = vrot.lane.b32.xlu0 %v2152, 52
        %v2270 = vpop.permute.xlu0 %2269
        %v2275 = vadd.f32 %v1996, %v2264
        %v2276 = vadd.f32 %v1999, %v2266
        %v2277 = vadd.f32 %v2004, %v2268
        %v2278 = vadd.f32 %v2007, %v2270
        %2283 = vrot.lane.b32.xlu0 %v2157, 36
        %v2284 = vpop.permute.xlu0 %2283
        %2285 = vrot.lane.b32.xlu0 %v2160, 36
        %v2286 = vpop.permute.xlu0 %2285
        %2287 = vrot.lane.b32.xlu0 %v2165, 36
        %v2288 = vpop.permute.xlu0 %2287
        %2289 = vrot.lane.b32.xlu0 %v2168, 36
        %v2290 = vpop.permute.xlu0 %2289
        %v2295 = vadd.f32 %v2012, %v2284
        %v2296 = vadd.f32 %v2015, %v2286
        %v2297 = vadd.f32 %v2020, %v2288
        %v2298 = vadd.f32 %v2023, %v2290
        %2299 = vrot.lane.b32.xlu0 %v2157, 52
        %v2300 = vpop.permute.xlu0 %2299
        %2301 = vrot.lane.b32.xlu0 %v2160, 52
        %v2302 = vpop.permute.xlu0 %2301
        %2303 = vrot.lane.b32.xlu0 %v2165, 52
        %v2304 = vpop.permute.xlu0 %2303
        %2305 = vrot.lane.b32.xlu0 %v2168, 52
        %v2306 = vpop.permute.xlu0 %2305
        %v2311 = vadd.f32 %v2012, %v2300
        %v2312 = vadd.f32 %v2015, %v2302
        %v2313 = vadd.f32 %v2020, %v2304
        %v2314 = vadd.f32 %v2023, %v2306
        %2319 = vrot.lane.b32.xlu0 %v2203, 112
        %v2320 = vpop.permute.xlu0 %2319
        %2321 = vrot.lane.b32.xlu0 %v2204, 112
        %v2322 = vpop.permute.xlu0 %2321
        %2323 = vrot.lane.b32.xlu0 %v2205, 112
        %v2324 = vpop.permute.xlu0 %2323
        %2325 = vrot.lane.b32.xlu0 %v2206, 112
        %v2326 = vpop.permute.xlu0 %2325
        %2335 = vrot.lane.b32.xlu0 %v2239, 112
        %v2336 = vpop.permute.xlu0 %2335
        %2337 = vrot.lane.b32.xlu0 %v2240, 112
        %v2338 = vpop.permute.xlu0 %2337
        %2339 = vrot.lane.b32.xlu0 %v2241, 112
        %v2340 = vpop.permute.xlu0 %2339
        %2341 = vrot.lane.b32.xlu0 %v2242, 112
        %v2342 = vpop.permute.xlu0 %2341
        %2351 = vrot.lane.b32.xlu0 %v2275, 112
        %v2352 = vpop.permute.xlu0 %2351
        %2353 = vrot.lane.b32.xlu0 %v2276, 112
        %v2354 = vpop.permute.xlu0 %2353
        %2355 = vrot.lane.b32.xlu0 %v2277, 112
        %v2356 = vpop.permute.xlu0 %2355
        %2357 = vrot.lane.b32.xlu0 %v2278, 112
        %v2358 = vpop.permute.xlu0 %2357
        %2367 = vrot.lane.b32.xlu0 %v2311, 112
        %v2368 = vpop.permute.xlu0 %2367
        %2369 = vrot.lane.b32.xlu0 %v2312, 112
        %v2370 = vpop.permute.xlu0 %2369
        %2371 = vrot.lane.b32.xlu0 %v2313, 112
        %v2372 = vpop.permute.xlu0 %2371
        %2373 = vrot.lane.b32.xlu0 %v2314, 112
        %v2374 = vpop.permute.xlu0 %2373
        %v2379 = vld [vmem:[%s8] sm:$0x1]
        %v2381 = vlaneseq
        %v2382 = vshrl.u32 %v2381, 7
        %v2383 = vsub.s32 0, %v2382
        %v2384 = vrot.slane %v2379, %v2383
        %2385 = vrot.lane.b32.xlu0 %v2384, 36
        %v2386 = vpop.permute.xlu0 %2385
        %v2388 = vadd.f32 %v2187, %v2386
        %v2389 = vadd.f32 %v2188, %v2386
        %v2390 = vadd.f32 %v2189, %v2386
        %v2391 = vadd.f32 %v2190, %v2386
        %v2392 = vadd.f32 %v2320, %v2386
        %v2393 = vadd.f32 %v2322, %v2386
        %v2394 = vadd.f32 %v2324, %v2386
        %v2395 = vadd.f32 %v2326, %v2386
        %v2396 = vadd.f32 %v2223, %v2386
        %v2397 = vadd.f32 %v2224, %v2386
        %v2398 = vadd.f32 %v2225, %v2386
        %v2399 = vadd.f32 %v2226, %v2386
        %v2400 = vadd.f32 %v2336, %v2386
        %v2401 = vadd.f32 %v2338, %v2386
        %v2402 = vadd.f32 %v2340, %v2386
        %v2403 = vadd.f32 %v2342, %v2386
        %v2404 = vadd.f32 %v2259, %v2386
        %v2405 = vadd.f32 %v2260, %v2386
        %v2406 = vadd.f32 %v2261, %v2386
        %v2407 = vadd.f32 %v2262, %v2386
        %v2408 = vadd.f32 %v2352, %v2386
        %v2409 = vadd.f32 %v2354, %v2386
        %v2410 = vadd.f32 %v2356, %v2386
        %v2411 = vadd.f32 %v2358, %v2386
        %v2412 = vadd.f32 %v2295, %v2386
        %v2413 = vadd.f32 %v2296, %v2386
        %v2414 = vadd.f32 %v2297, %v2386
        %v2415 = vadd.f32 %v2298, %v2386
        %v2416 = vadd.f32 %v2368, %v2386
        %v2417 = vadd.f32 %v2370, %v2386
        %v2418 = vadd.f32 %v2372, %v2386
        %v2419 = vadd.f32 %v2374, %v2386
        %2452 = vrot.lane.b32.xlu0 %v2388, 92
        %v2453 = vpop.permute.xlu0 %2452
        %2454 = vrot.lane.b32.xlu0 %v2389, 92
        %v2455 = vpop.permute.xlu0 %2454
        %2456 = vrot.lane.b32.xlu0 %v2390, 92
        %v2457 = vpop.permute.xlu0 %2456
        %2458 = vrot.lane.b32.xlu0 %v2391, 92
        %v2459 = vpop.permute.xlu0 %2458
        %2460 = vrot.lane.b32.xlu0 %v2392, 92
        %v2461 = vpop.permute.xlu0 %2460
        %2462 = vrot.lane.b32.xlu0 %v2393, 92
        %v2463 = vpop.permute.xlu0 %2462
        %2464 = vrot.lane.b32.xlu0 %v2394, 92
        %v2465 = vpop.permute.xlu0 %2464
        %2466 = vrot.lane.b32.xlu0 %v2395, 92
        %v2467 = vpop.permute.xlu0 %2466
        %2468 = vrot.lane.b32.xlu0 %v2396, 92
        %v2469 = vpop.permute.xlu0 %2468
        %2470 = vrot.lane.b32.xlu0 %v2397, 92
        %v2471 = vpop.permute.xlu0 %2470
        %2472 = vrot.lane.b32.xlu0 %v2398, 92
        %v2473 = vpop.permute.xlu0 %2472
        %2474 = vrot.lane.b32.xlu0 %v2399, 92
        %v2475 = vpop.permute.xlu0 %2474
        %2476 = vrot.lane.b32.xlu0 %v2400, 92
        %v2477 = vpop.permute.xlu0 %2476
        %2478 = vrot.lane.b32.xlu0 %v2401, 92
        %v2479 = vpop.permute.xlu0 %2478
        %2480 = vrot.lane.b32.xlu0 %v2402, 92
        %v2481 = vpop.permute.xlu0 %2480
        %2482 = vrot.lane.b32.xlu0 %v2403, 92
        %v2483 = vpop.permute.xlu0 %2482
        %2484 = vrot.lane.b32.xlu0 %v2404, 92
        %v2485 = vpop.permute.xlu0 %2484
        %2486 = vrot.lane.b32.xlu0 %v2405, 92
        %v2487 = vpop.permute.xlu0 %2486
        %2488 = vrot.lane.b32.xlu0 %v2406, 92
        %v2489 = vpop.permute.xlu0 %2488
        %2490 = vrot.lane.b32.xlu0 %v2407, 92
        %v2491 = vpop.permute.xlu0 %2490
        %2492 = vrot.lane.b32.xlu0 %v2408, 92
        %v2493 = vpop.permute.xlu0 %2492
        %2494 = vrot.lane.b32.xlu0 %v2409, 92
        %v2495 = vpop.permute.xlu0 %2494
        %2496 = vrot.lane.b32.xlu0 %v2410, 92
        %v2497 = vpop.permute.xlu0 %2496
        %2498 = vrot.lane.b32.xlu0 %v2411, 92
        %v2499 = vpop.permute.xlu0 %2498
        %2500 = vrot.lane.b32.xlu0 %v2412, 92
        %v2501 = vpop.permute.xlu0 %2500
        %2502 = vrot.lane.b32.xlu0 %v2413, 92
        %v2503 = vpop.permute.xlu0 %2502
        %2504 = vrot.lane.b32.xlu0 %v2414, 92
        %v2505 = vpop.permute.xlu0 %2504
        %2506 = vrot.lane.b32.xlu0 %v2415, 92
        %v2507 = vpop.permute.xlu0 %2506
        %2508 = vrot.lane.b32.xlu0 %v2416, 92
        %v2509 = vpop.permute.xlu0 %2508
        %2510 = vrot.lane.b32.xlu0 %v2417, 92
        %v2511 = vpop.permute.xlu0 %2510
        %2512 = vrot.lane.b32.xlu0 %v2418, 92
        %v2513 = vpop.permute.xlu0 %2512
        %2514 = vrot.lane.b32.xlu0 %v2419, 92
        %v2515 = vpop.permute.xlu0 %2514
        %s2548 = scalar_lea.vmem %s528, 224 [#allocation4]
        %2549 = vst.msk [vmem:[%s2548] sm:$0xff] %vm660, %v2453
        %2550 = vst.msk [vmem:[%s2548 + $0x8] sm:$0xff] %vm660, %v2455
        %2551 = vst.msk [vmem:[%s2548 + $0x10] sm:$0xff] %vm660, %v2457
        %2552 = vst.msk [vmem:[%s2548 + $0x18] sm:$0xff] %vm660, %v2459
        %2553 = vst.msk [vmem:[%s2548 + $0x20] sm:$0xff] %vm660, %v2461
        %2554 = vst.msk [vmem:[%s2548 + $0x28] sm:$0xff] %vm660, %v2463
        %2555 = vst.msk [vmem:[%s2548 + $0x30] sm:$0xff] %vm660, %v2465
        %2556 = vst.msk [vmem:[%s2548 + $0x38] sm:$0xff] %vm660, %v2467
        %2557 = vst.msk [vmem:[%s2548 + $0x40] sm:$0xff] %vm660, %v2469
        %2558 = vst.msk [vmem:[%s2548 + $0x48] sm:$0xff] %vm660, %v2471
        %2559 = vst.msk [vmem:[%s2548 + $0x50] sm:$0xff] %vm660, %v2473
        %2560 = vst.msk [vmem:[%s2548 + $0x58] sm:$0xff] %vm660, %v2475
        %2561 = vst.msk [vmem:[%s2548 + $0x60] sm:$0xff] %vm660, %v2477
        %2562 = vst.msk [vmem:[%s2548 + $0x68] sm:$0xff] %vm660, %v2479
        %2563 = vst.msk [vmem:[%s2548 + $0x70] sm:$0xff] %vm660, %v2481
        %2564 = vst.msk [vmem:[%s2548 + $0x78] sm:$0xff] %vm660, %v2483
        %2565 = vst.msk [vmem:[%s2548 + $0x80] sm:$0xff] %vm660, %v2485
        %2566 = vst.msk [vmem:[%s2548 + $0x88] sm:$0xff] %vm660, %v2487
        %2567 = vst.msk [vmem:[%s2548 + $0x90] sm:$0xff] %vm660, %v2489
        %2568 = vst.msk [vmem:[%s2548 + $0x98] sm:$0xff] %vm660, %v2491
        %2569 = vst.msk [vmem:[%s2548 + $0xa0] sm:$0xff] %vm660, %v2493
        %2570 = vst.msk [vmem:[%s2548 + $0xa8] sm:$0xff] %vm660, %v2495
        %2571 = vst.msk [vmem:[%s2548 + $0xb0] sm:$0xff] %vm660, %v2497
        %2572 = vst.msk [vmem:[%s2548 + $0xb8] sm:$0xff] %vm660, %v2499
        %2573 = vst.msk [vmem:[%s2548 + $0xc0] sm:$0xff] %vm660, %v2501
        %2574 = vst.msk [vmem:[%s2548 + $0xc8] sm:$0xff] %vm660, %v2503
        %2575 = vst.msk [vmem:[%s2548 + $0xd0] sm:$0xff] %vm660, %v2505
        %2576 = vst.msk [vmem:[%s2548 + $0xd8] sm:$0xff] %vm660, %v2507
        %2577 = vst.msk [vmem:[%s2548 + $0xe0] sm:$0xff] %vm660, %v2509
        %2578 = vst.msk [vmem:[%s2548 + $0xe8] sm:$0xff] %vm660, %v2511
        %2579 = vst.msk [vmem:[%s2548 + $0xf0] sm:$0xff] %vm660, %v2513
        %2580 = vst.msk [vmem:[%s2548 + $0xf8] sm:$0xff] %vm660, %v2515
        %2597 = vrot.lane.b32.xlu0 %v1964, 96
        %v2598 = vpop.permute.xlu0 %2597
        %2599 = vrot.lane.b32.xlu0 %v1967, 96
        %v2600 = vpop.permute.xlu0 %2599
        %2601 = vrot.lane.b32.xlu0 %v1972, 96
        %v2602 = vpop.permute.xlu0 %2601
        %2603 = vrot.lane.b32.xlu0 %v1975, 96
        %v2604 = vpop.permute.xlu0 %2603
        %2605 = vrot.lane.b32.xlu0 %v1980, 96
        %v2606 = vpop.permute.xlu0 %2605
        %2607 = vrot.lane.b32.xlu0 %v1983, 96
        %v2608 = vpop.permute.xlu0 %2607
        %2609 = vrot.lane.b32.xlu0 %v1988, 96
        %v2610 = vpop.permute.xlu0 %2609
        %2611 = vrot.lane.b32.xlu0 %v1991, 96
        %v2612 = vpop.permute.xlu0 %2611
        %2613 = vrot.lane.b32.xlu0 %v1996, 96
        %v2614 = vpop.permute.xlu0 %2613
        %2615 = vrot.lane.b32.xlu0 %v1999, 96
        %v2616 = vpop.permute.xlu0 %2615
        %2617 = vrot.lane.b32.xlu0 %v2004, 96
        %v2618 = vpop.permute.xlu0 %2617
        %2619 = vrot.lane.b32.xlu0 %v2007, 96
        %v2620 = vpop.permute.xlu0 %2619
        %2621 = vrot.lane.b32.xlu0 %v2012, 96
        %v2622 = vpop.permute.xlu0 %2621
        %2623 = vrot.lane.b32.xlu0 %v2015, 96
        %v2624 = vpop.permute.xlu0 %2623
        %2625 = vrot.lane.b32.xlu0 %v2020, 96
        %v2626 = vpop.permute.xlu0 %2625
        %2627 = vrot.lane.b32.xlu0 %v2023, 96
        %v2628 = vpop.permute.xlu0 %2627
        %s2645 = scalar_lea.vmem %s522, 96 [#allocation3]
        %2646 = vst.msk [vmem:[%s2645] sm:$0xff] %vm1744, %v2598
        %2647 = vst.msk [vmem:[%s2645 + $0x8] sm:$0xff] %vm1744, %v2600
        %2648 = vst.msk [vmem:[%s2645 + $0x10] sm:$0xff] %vm1744, %v2602
        %2649 = vst.msk [vmem:[%s2645 + $0x18] sm:$0xff] %vm1744, %v2604
        %2650 = vst.msk [vmem:[%s2645 + $0x20] sm:$0xff] %vm1744, %v2606
        %2651 = vst.msk [vmem:[%s2645 + $0x28] sm:$0xff] %vm1744, %v2608
        %2652 = vst.msk [vmem:[%s2645 + $0x30] sm:$0xff] %vm1744, %v2610
        %2653 = vst.msk [vmem:[%s2645 + $0x38] sm:$0xff] %vm1744, %v2612
        %2654 = vst.msk [vmem:[%s2645 + $0x40] sm:$0xff] %vm1744, %v2614
        %2655 = vst.msk [vmem:[%s2645 + $0x48] sm:$0xff] %vm1744, %v2616
        %2656 = vst.msk [vmem:[%s2645 + $0x50] sm:$0xff] %vm1744, %v2618
        %2657 = vst.msk [vmem:[%s2645 + $0x58] sm:$0xff] %vm1744, %v2620
        %2658 = vst.msk [vmem:[%s2645 + $0x60] sm:$0xff] %vm1744, %v2622
        %2659 = vst.msk [vmem:[%s2645 + $0x68] sm:$0xff] %vm1744, %v2624
        %2660 = vst.msk [vmem:[%s2645 + $0x70] sm:$0xff] %vm1744, %v2626
        %2661 = vst.msk [vmem:[%s2645 + $0x78] sm:$0xff] %vm1744, %v2628
        %2662 = vrot.lane.b32.xlu0 %v1980, 32
        %v2663 = vpop.permute.xlu0 %2662
        %2664 = vrot.lane.b32.xlu0 %v1983, 32
        %v2665 = vpop.permute.xlu0 %2664
        %2666 = vrot.lane.b32.xlu0 %v1988, 32
        %v2667 = vpop.permute.xlu0 %2666
        %2668 = vrot.lane.b32.xlu0 %v1991, 32
        %v2669 = vpop.permute.xlu0 %2668
        %2670 = vrot.lane.b32.xlu0 %v2012, 32
        %v2671 = vpop.permute.xlu0 %2670
        %2672 = vrot.lane.b32.xlu0 %v2015, 32
        %v2673 = vpop.permute.xlu0 %2672
        %2674 = vrot.lane.b32.xlu0 %v2020, 32
        %v2675 = vpop.permute.xlu0 %2674
        %2676 = vrot.lane.b32.xlu0 %v2023, 32
        %v2677 = vpop.permute.xlu0 %2676
        %v2686 = vsel %vm1533, %v1964, %v2663
        %v2687 = vsel %vm1533, %v1967, %v2665
        %v2688 = vsel %vm1533, %v1972, %v2667
        %v2689 = vsel %vm1533, %v1975, %v2669
        %v2690 = vsel %vm1533, %v1996, %v2671
        %v2691 = vsel %vm1533, %v1999, %v2673
        %v2692 = vsel %vm1533, %v2004, %v2675
        %v2693 = vsel %vm1533, %v2007, %v2677
        %v2694 = vpack.c.bf16 %v2687, %v2686
        %v2695 = vpack.c.bf16 %v2689, %v2688
        %v2696 = vpack.c.bf16 %v2691, %v2690
        %v2697 = vpack.c.bf16 %v2693, %v2692
        %v2698 = vld [vmem:[%s5] sm:$0xf]
        %v2699 = vld [vmem:[%s5 + $0x4] sm:$0xf]
        %v2700 = vld [vmem:[%s5 + $0x8] sm:$0xf]
        %v2701 = vld [vmem:[%s5 + $0xc] sm:$0xf]
        %v2702 = vld [vmem:[%s5 + $0x10] sm:$0xf]
        %v2703 = vld [vmem:[%s5 + $0x14] sm:$0xf]
        %v2704 = vld [vmem:[%s5 + $0x18] sm:$0xf]
        %v2705 = vld [vmem:[%s5 + $0x1c] sm:$0xf]
        %v2706 = vld [vmem:[%s6] sm:$0x1]
        %v2708 = vlaneseq
        %v2709 = vshrl.u32 %v2708, 7
        %v2710 = vsub.s32 0, %v2709
        %v2711 = vrot.slane %v2706, %v2710
        %v2721 = vunpack.c.l.b16 %v2698
        %v2722 = vunpack.c.l.b16 %v2699
        %v2723 = vunpack.c.l.b16 %v2700
        %v2724 = vunpack.c.l.b16 %v2701
        %v2725 = vunpack.c.l.b16 %v2702
        %v2726 = vunpack.c.l.b16 %v2703
        %v2727 = vunpack.c.l.b16 %v2704
        %v2728 = vunpack.c.l.b16 %v2705
        %v2729 = vpack.c.b16 %v2722, %v2721
        %v2730 = vpack.c.b16 %v2724, %v2723
        %v2731 = vpack.c.b16 %v2726, %v2725
        %v2732 = vpack.c.b16 %v2728, %v2727
        %v2738 = vsel %vm1904, %v2694, 0
        %v2741 = vsel %vm1904, %v2695, 0
        %v2744 = vsel %vm1904, %v2696, 0
        %v2747 = vsel %vm1904, %v2697, 0
        %2749 = vmatprep.subr.bf16.mxu0 0
        %2750 = vmatpush1.bf16.msra.mxu0 0
        %2751 = vmatprep.subr.bf16.mxu0 0
        %2752 = vmatpush1.bf16.msra.mxu0 0
        %2753 = vmatprep.subr.bf16.mxu0 0
        %2754 = vmatpush1.bf16.msra.mxu0 0
        %2755 = vmatprep.subr.bf16.mxu0 0
        %2756 = vmatpush1.bf16.msra.mxu0 0
        %2757 = vmatprep.subr.bf16.mxu0 0
        %2758 = vmatpush1.bf16.msra.mxu0 %v2732
        %2759 = vmatprep.subr.bf16.mxu0 0
        %2760 = vmatpush1.bf16.msra.mxu0 %v2731
        %2761 = vmatprep.subr.bf16.mxu0 0
        %2762 = vmatpush1.bf16.msra.mxu0 %v2730
        %2763 = vmatprep.subr.bf16.mxu0 0
        %2764 = vmatpush1.bf16.msra.mxu0 %v2729
        %2765 = vmatprep.subr.bf16.mxu0 0
        %2766 = vmatpush2.bf16.msra.mxu0 0
        %2767 = vmatprep.subr.bf16.mxu0 0
        %2768 = vmatpush2.bf16.msra.mxu0 0
        %2769 = vmatprep.subr.bf16.mxu0 0
        %2770 = vmatpush2.bf16.msra.mxu0 0
        %2771 = vmatprep.subr.bf16.mxu0 0
        %2772 = vmatpush2.bf16.msra.mxu0 0
        %2773 = vmatprep.subr.bf16.mxu0 0
        %2774 = vmatpush2.bf16.msra.mxu0 0
        %2775 = vmatprep.subr.bf16.mxu0 0
        %2776 = vmatpush2.bf16.msra.mxu0 0
        %2777 = vmatprep.subr.bf16.mxu0 0
        %2778 = vmatpush2.bf16.msra.mxu0 0
        %2779 = vmatprep.subr.bf16.mxu0 0
        %2780 = vmatpush2.bf16.msra.mxu0 0
        %2781 = vmatprep.mubr.bf16.mxu0 0
        %2782 = vmatmul.mubr.bf16.gmra.mxu0 %v2738
        %v2783 = vpop.f32.mrf.mxu0
        %v2784 = vadd.f32 %v2711, %v2783
        %v2785 = vpop.f32.mrf.mxu0
        %v2786 = vpop.f32.mrf.mxu0
        %v2787 = vadd.f32 %v2711, %v2786
        %v2788 = vpop.f32.mrf.mxu0
        %2789 = vmatprep.mubr.bf16.mxu0 0
        %2790 = vmatmul.mubr.bf16.gmra.mxu0 %v2741
        %v2791 = vpop.f32.mrf.mxu0
        %v2792 = vadd.f32 %v2711, %v2791
        %v2793 = vpop.f32.mrf.mxu0
        %v2794 = vpop.f32.mrf.mxu0
        %v2795 = vadd.f32 %v2711, %v2794
        %v2796 = vpop.f32.mrf.mxu0
        %2797 = vmatprep.mubr.bf16.mxu0 0
        %2798 = vmatmul.mubr.bf16.gmra.mxu0 %v2744
        %v2799 = vpop.f32.mrf.mxu0
        %v2800 = vadd.f32 %v2711, %v2799
        %v2801 = vpop.f32.mrf.mxu0
        %v2802 = vpop.f32.mrf.mxu0
        %v2803 = vadd.f32 %v2711, %v2802
        %v2804 = vpop.f32.mrf.mxu0
        %2805 = vmatprep.mubr.bf16.mxu0 0
        %2806 = vmatmul.mubr.bf16.gmra.mxu0 %v2747
        %v2807 = vpop.f32.mrf.mxu0
        %v2808 = vadd.f32 %v2711, %v2807
        %v2809 = vpop.f32.mrf.mxu0
        %v2810 = vpop.f32.mrf.mxu0
        %v2811 = vadd.f32 %v2711, %v2810
        %v2812 = vpop.f32.mrf.mxu0
        %2813 = vdwg.mxu0
        %v2814 = vpack.c.bf16 %v2787, %v2784
        %v2815 = vpack.c.bf16 %v2795, %v2792
        %v2816 = vpack.c.bf16 %v2803, %v2800
        %v2817 = vpack.c.bf16 %v2811, %v2808
        %v2818 = vld [vmem:[%s7] sm:$0xf]
        %v2819 = vld [vmem:[%s7 + $0x4] sm:$0xf]
        %v2820 = vld [vmem:[%s7 + $0x8] sm:$0xf]
        %v2821 = vld [vmem:[%s7 + $0xc] sm:$0xf]
        %v2826 = vunpack.c.l.b16 %v2818
        %v2827 = vunpack.c.l.b16 %v2819
        %v2828 = vunpack.c.l.b16 %v2820
        %v2829 = vunpack.c.l.b16 %v2821
        %v2830 = vpack.c.b16 %v2827, %v2826
        %v2831 = vpack.c.b16 %v2829, %v2828
        %v2835 = vsel %vm1533, %v2814, 0
        %v2838 = vsel %vm1533, %v2815, 0
        %v2841 = vsel %vm1533, %v2816, 0
        %v2844 = vsel %vm1533, %v2817, 0
        %2846 = vmatprep.subr.bf16.mxu0 0
        %2847 = vmatpush1.bf16.msra.mxu0 0
        %2848 = vmatprep.subr.bf16.mxu0 0
        %2849 = vmatpush1.bf16.msra.mxu0 0
        %2850 = vmatprep.subr.bf16.mxu0 0
        %2851 = vmatpush1.bf16.msra.mxu0 0
        %2852 = vmatprep.subr.bf16.mxu0 0
        %2853 = vmatpush1.bf16.msra.mxu0 0
        %2854 = vmatprep.subr.bf16.mxu0 0
        %2855 = vmatpush1.bf16.msra.mxu0 0
        %2856 = vmatprep.subr.bf16.mxu0 0
        %2857 = vmatpush1.bf16.msra.mxu0 0
        %2858 = vmatprep.subr.bf16.mxu0 0
        %2859 = vmatpush1.bf16.msra.mxu0 %v2831
        %2860 = vmatprep.subr.bf16.mxu0 0
        %2861 = vmatpush1.bf16.msra.mxu0 %v2830
        %2862 = vmatprep.subr.bf16.mxu0 0
        %2863 = vmatpush2.bf16.msra.mxu0 0
        %2864 = vmatprep.subr.bf16.mxu0 0
        %2865 = vmatpush2.bf16.msra.mxu0 0
        %2866 = vmatprep.subr.bf16.mxu0 0
        %2867 = vmatpush2.bf16.msra.mxu0 0
        %2868 = vmatprep.subr.bf16.mxu0 0
        %2869 = vmatpush2.bf16.msra.mxu0 0
        %2870 = vmatprep.subr.bf16.mxu0 0
        %2871 = vmatpush2.bf16.msra.mxu0 0
        %2872 = vmatprep.subr.bf16.mxu0 0
        %2873 = vmatpush2.bf16.msra.mxu0 0
        %2874 = vmatprep.subr.bf16.mxu0 0
        %2875 = vmatpush2.bf16.msra.mxu0 0
        %2876 = vmatprep.subr.bf16.mxu0 0
        %2877 = vmatpush2.bf16.msra.mxu0 0
        %2878 = vmatprep.mubr.bf16.mxu0 0
        %2879 = vmatmul.mubr.bf16.gmra.mxu0 %v2835
        %v2880 = vpop.f32.mrf.mxu0
        %v2881 = vadd.f32 0.0, %v2880
        %v2882 = vpop.f32.mrf.mxu0
        %v2883 = vpop.f32.mrf.mxu0
        %v2884 = vadd.f32 0.0, %v2883
        %v2885 = vpop.f32.mrf.mxu0
        %2886 = vmatprep.mubr.bf16.mxu0 0
        %2887 = vmatmul.mubr.bf16.gmra.mxu0 %v2838
        %v2888 = vpop.f32.mrf.mxu0
        %v2889 = vadd.f32 0.0, %v2888
        %v2890 = vpop.f32.mrf.mxu0
        %v2891 = vpop.f32.mrf.mxu0
        %v2892 = vadd.f32 0.0, %v2891
        %v2893 = vpop.f32.mrf.mxu0
        %2894 = vmatprep.mubr.bf16.mxu0 0
        %2895 = vmatmul.mubr.bf16.gmra.mxu0 %v2841
        %v2896 = vpop.f32.mrf.mxu0
        %v2897 = vadd.f32 0.0, %v2896
        %v2898 = vpop.f32.mrf.mxu0
        %v2899 = vpop.f32.mrf.mxu0
        %v2900 = vadd.f32 0.0, %v2899
        %v2901 = vpop.f32.mrf.mxu0
        %2902 = vmatprep.mubr.bf16.mxu0 0
        %2903 = vmatmul.mubr.bf16.gmra.mxu0 %v2844
        %v2904 = vpop.f32.mrf.mxu0
        %v2905 = vadd.f32 0.0, %v2904
        %v2906 = vpop.f32.mrf.mxu0
        %v2907 = vpop.f32.mrf.mxu0
        %v2908 = vadd.f32 0.0, %v2907
        %v2909 = vpop.f32.mrf.mxu0
        %2910 = vdwg.mxu0
        %2915 = vrot.lane.b32.xlu0 %v2881, 36
        %v2916 = vpop.permute.xlu0 %2915
        %2917 = vrot.lane.b32.xlu0 %v2884, 36
        %v2918 = vpop.permute.xlu0 %2917
        %2919 = vrot.lane.b32.xlu0 %v2889, 36
        %v2920 = vpop.permute.xlu0 %2919
        %2921 = vrot.lane.b32.xlu0 %v2892, 36
        %v2922 = vpop.permute.xlu0 %2921
        %v2927 = vadd.f32 %v2784, %v2916
        %v2928 = vadd.f32 %v2787, %v2918
        %v2929 = vadd.f32 %v2792, %v2920
        %v2930 = vadd.f32 %v2795, %v2922
        %2931 = vrot.lane.b32.xlu0 %v2881, 52
        %v2932 = vpop.permute.xlu0 %2931
        %2933 = vrot.lane.b32.xlu0 %v2884, 52
        %v2934 = vpop.permute.xlu0 %2933
        %2935 = vrot.lane.b32.xlu0 %v2889, 52
        %v2936 = vpop.permute.xlu0 %2935
        %2937 = vrot.lane.b32.xlu0 %v2892, 52
        %v2938 = vpop.permute.xlu0 %2937
        %v2943 = vadd.f32 %v2784, %v2932
        %v2944 = vadd.f32 %v2787, %v2934
        %v2945 = vadd.f32 %v2792, %v2936
        %v2946 = vadd.f32 %v2795, %v2938
        %2951 = vrot.lane.b32.xlu0 %v2897, 36
        %v2952 = vpop.permute.xlu0 %2951
        %2953 = vrot.lane.b32.xlu0 %v2900, 36
        %v2954 = vpop.permute.xlu0 %2953
        %2955 = vrot.lane.b32.xlu0 %v2905, 36
        %v2956 = vpop.permute.xlu0 %2955
        %2957 = vrot.lane.b32.xlu0 %v2908, 36
        %v2958 = vpop.permute.xlu0 %2957
        %v2963 = vadd.f32 %v2800, %v2952
        %v2964 = vadd.f32 %v2803, %v2954
        %v2965 = vadd.f32 %v2808, %v2956
        %v2966 = vadd.f32 %v2811, %v2958
        %2967 = vrot.lane.b32.xlu0 %v2897, 52
        %v2968 = vpop.permute.xlu0 %2967
        %2969 = vrot.lane.b32.xlu0 %v2900, 52
        %v2970 = vpop.permute.xlu0 %2969
        %2971 = vrot.lane.b32.xlu0 %v2905, 52
        %v2972 = vpop.permute.xlu0 %2971
        %2973 = vrot.lane.b32.xlu0 %v2908, 52
        %v2974 = vpop.permute.xlu0 %2973
        %v2979 = vadd.f32 %v2800, %v2968
        %v2980 = vadd.f32 %v2803, %v2970
        %v2981 = vadd.f32 %v2808, %v2972
        %v2982 = vadd.f32 %v2811, %v2974
        %2987 = vrot.lane.b32.xlu0 %v2943, 112
        %v2988 = vpop.permute.xlu0 %2987
        %2989 = vrot.lane.b32.xlu0 %v2944, 112
        %v2990 = vpop.permute.xlu0 %2989
        %2991 = vrot.lane.b32.xlu0 %v2945, 112
        %v2992 = vpop.permute.xlu0 %2991
        %2993 = vrot.lane.b32.xlu0 %v2946, 112
        %v2994 = vpop.permute.xlu0 %2993
        %3003 = vrot.lane.b32.xlu0 %v2979, 112
        %v3004 = vpop.permute.xlu0 %3003
        %3005 = vrot.lane.b32.xlu0 %v2980, 112
        %v3006 = vpop.permute.xlu0 %3005
        %3007 = vrot.lane.b32.xlu0 %v2981, 112
        %v3008 = vpop.permute.xlu0 %3007
        %3009 = vrot.lane.b32.xlu0 %v2982, 112
        %v3010 = vpop.permute.xlu0 %3009
        %v3015 = vld [vmem:[%s8] sm:$0x1]
        %v3017 = vlaneseq
        %v3018 = vshrl.u32 %v3017, 7
        %v3019 = vsub.s32 0, %v3018
        %v3020 = vrot.slane %v3015, %v3019
        %3021 = vrot.lane.b32.xlu0 %v3020, 36
        %v3022 = vpop.permute.xlu0 %3021
        %v3024 = vadd.f32 %v2927, %v3022
        %v3025 = vadd.f32 %v2928, %v3022
        %v3026 = vadd.f32 %v2929, %v3022
        %v3027 = vadd.f32 %v2930, %v3022
        %v3028 = vadd.f32 %v2988, %v3022
        %v3029 = vadd.f32 %v2990, %v3022
        %v3030 = vadd.f32 %v2992, %v3022
        %v3031 = vadd.f32 %v2994, %v3022
        %v3032 = vadd.f32 %v2963, %v3022
        %v3033 = vadd.f32 %v2964, %v3022
        %v3034 = vadd.f32 %v2965, %v3022
        %v3035 = vadd.f32 %v2966, %v3022
        %v3036 = vadd.f32 %v3004, %v3022
        %v3037 = vadd.f32 %v3006, %v3022
        %v3038 = vadd.f32 %v3008, %v3022
        %v3039 = vadd.f32 %v3010, %v3022
        %3056 = vrot.lane.b32.xlu0 %v3024, 92
        %v3057 = vpop.permute.xlu0 %3056
        %3058 = vrot.lane.b32.xlu0 %v3025, 92
        %v3059 = vpop.permute.xlu0 %3058
        %3060 = vrot.lane.b32.xlu0 %v3026, 92
        %v3061 = vpop.permute.xlu0 %3060
        %3062 = vrot.lane.b32.xlu0 %v3027, 92
        %v3063 = vpop.permute.xlu0 %3062
        %3064 = vrot.lane.b32.xlu0 %v3028, 92
        %v3065 = vpop.permute.xlu0 %3064
        %3066 = vrot.lane.b32.xlu0 %v3029, 92
        %v3067 = vpop.permute.xlu0 %3066
        %3068 = vrot.lane.b32.xlu0 %v3030, 92
        %v3069 = vpop.permute.xlu0 %3068
        %3070 = vrot.lane.b32.xlu0 %v3031, 92
        %v3071 = vpop.permute.xlu0 %3070
        %3072 = vrot.lane.b32.xlu0 %v3032, 92
        %v3073 = vpop.permute.xlu0 %3072
        %3074 = vrot.lane.b32.xlu0 %v3033, 92
        %v3075 = vpop.permute.xlu0 %3074
        %3076 = vrot.lane.b32.xlu0 %v3034, 92
        %v3077 = vpop.permute.xlu0 %3076
        %3078 = vrot.lane.b32.xlu0 %v3035, 92
        %v3079 = vpop.permute.xlu0 %3078
        %3080 = vrot.lane.b32.xlu0 %v3036, 92
        %v3081 = vpop.permute.xlu0 %3080
        %3082 = vrot.lane.b32.xlu0 %v3037, 92
        %v3083 = vpop.permute.xlu0 %3082
        %3084 = vrot.lane.b32.xlu0 %v3038, 92
        %v3085 = vpop.permute.xlu0 %3084
        %3086 = vrot.lane.b32.xlu0 %v3039, 92
        %v3087 = vpop.permute.xlu0 %3086
        %s3104 = scalar_lea.vmem %s528, 96 [#allocation4]
        %3105 = vst.msk [vmem:[%s3104] sm:$0xff] %vm660, %v3057
        %3106 = vst.msk [vmem:[%s3104 + $0x8] sm:$0xff] %vm660, %v3059
        %3107 = vst.msk [vmem:[%s3104 + $0x10] sm:$0xff] %vm660, %v3061
        %3108 = vst.msk [vmem:[%s3104 + $0x18] sm:$0xff] %vm660, %v3063
        %3109 = vst.msk [vmem:[%s3104 + $0x20] sm:$0xff] %vm660, %v3065
        %3110 = vst.msk [vmem:[%s3104 + $0x28] sm:$0xff] %vm660, %v3067
        %3111 = vst.msk [vmem:[%s3104 + $0x30] sm:$0xff] %vm660, %v3069
        %3112 = vst.msk [vmem:[%s3104 + $0x38] sm:$0xff] %vm660, %v3071
        %3113 = vst.msk [vmem:[%s3104 + $0x40] sm:$0xff] %vm660, %v3073
        %3114 = vst.msk [vmem:[%s3104 + $0x48] sm:$0xff] %vm660, %v3075
        %3115 = vst.msk [vmem:[%s3104 + $0x50] sm:$0xff] %vm660, %v3077
        %3116 = vst.msk [vmem:[%s3104 + $0x58] sm:$0xff] %vm660, %v3079
        %3117 = vst.msk [vmem:[%s3104 + $0x60] sm:$0xff] %vm660, %v3081
        %3118 = vst.msk [vmem:[%s3104 + $0x68] sm:$0xff] %vm660, %v3083
        %3119 = vst.msk [vmem:[%s3104 + $0x70] sm:$0xff] %vm660, %v3085
        %3120 = vst.msk [vmem:[%s3104 + $0x78] sm:$0xff] %vm660, %v3087
        %3129 = vrot.lane.b32.xlu0 %v2784, 96
        %v3130 = vpop.permute.xlu0 %3129
        %3131 = vrot.lane.b32.xlu0 %v2787, 96
        %v3132 = vpop.permute.xlu0 %3131
        %3133 = vrot.lane.b32.xlu0 %v2792, 96
        %v3134 = vpop.permute.xlu0 %3133
        %3135 = vrot.lane.b32.xlu0 %v2795, 96
        %v3136 = vpop.permute.xlu0 %3135
        %3137 = vrot.lane.b32.xlu0 %v2800, 96
        %v3138 = vpop.permute.xlu0 %3137
        %3139 = vrot.lane.b32.xlu0 %v2803, 96
        %v3140 = vpop.permute.xlu0 %3139
        %3141 = vrot.lane.b32.xlu0 %v2808, 96
        %v3142 = vpop.permute.xlu0 %3141
        %3143 = vrot.lane.b32.xlu0 %v2811, 96
        %v3144 = vpop.permute.xlu0 %3143
        %s3153 = scalar_lea.vmem %s522, 32 [#allocation3]
        %3154 = vst.msk [vmem:[%s3153] sm:$0xff] %vm1744, %v3130
        %3155 = vst.msk [vmem:[%s3153 + $0x8] sm:$0xff] %vm1744, %v3132
        %3156 = vst.msk [vmem:[%s3153 + $0x10] sm:$0xff] %vm1744, %v3134
        %3157 = vst.msk [vmem:[%s3153 + $0x18] sm:$0xff] %vm1744, %v3136
        %3158 = vst.msk [vmem:[%s3153 + $0x20] sm:$0xff] %vm1744, %v3138
        %3159 = vst.msk [vmem:[%s3153 + $0x28] sm:$0xff] %vm1744, %v3140
        %3160 = vst.msk [vmem:[%s3153 + $0x30] sm:$0xff] %vm1744, %v3142
        %3161 = vst.msk [vmem:[%s3153 + $0x38] sm:$0xff] %vm1744, %v3144
        %3162 = vrot.lane.b32.xlu0 %v2800, 32
        %v3163 = vpop.permute.xlu0 %3162
        %3164 = vrot.lane.b32.xlu0 %v2803, 32
        %v3165 = vpop.permute.xlu0 %3164
        %3166 = vrot.lane.b32.xlu0 %v2808, 32
        %v3167 = vpop.permute.xlu0 %3166
        %3168 = vrot.lane.b32.xlu0 %v2811, 32
        %v3169 = vpop.permute.xlu0 %3168
        %v3174 = vsel %vm1533, %v2784, %v3163
        %v3175 = vsel %vm1533, %v2787, %v3165
        %v3176 = vsel %vm1533, %v2792, %v3167
        %v3177 = vsel %vm1533, %v2795, %v3169
        %v3178 = vpack.c.bf16 %v3175, %v3174
        %v3179 = vpack.c.bf16 %v3177, %v3176
        %v3180 = vld [vmem:[%s5] sm:$0xf]
        %v3181 = vld [vmem:[%s5 + $0x4] sm:$0xf]
        %v3182 = vld [vmem:[%s5 + $0x8] sm:$0xf]
        %v3183 = vld [vmem:[%s5 + $0xc] sm:$0xf]
        %v3184 = vld [vmem:[%s5 + $0x10] sm:$0xf]
        %v3185 = vld [vmem:[%s5 + $0x14] sm:$0xf]
        %v3186 = vld [vmem:[%s5 + $0x18] sm:$0xf]
        %v3187 = vld [vmem:[%s5 + $0x1c] sm:$0xf]
        %v3188 = vld [vmem:[%s6] sm:$0x1]
        %v3190 = vlaneseq
        %v3191 = vshrl.u32 %v3190, 7
        %v3192 = vsub.s32 0, %v3191
        %v3193 = vrot.slane %v3188, %v3192
        %v3203 = vunpack.c.l.b16 %v3180
        %v3204 = vunpack.c.l.b16 %v3181
        %v3205 = vunpack.c.l.b16 %v3182
        %v3206 = vunpack.c.l.b16 %v3183
        %v3207 = vunpack.c.l.b16 %v3184
        %v3208 = vunpack.c.l.b16 %v3185
        %v3209 = vunpack.c.l.b16 %v3186
        %v3210 = vunpack.c.l.b16 %v3187
        %v3211 = vpack.c.b16 %v3204, %v3203
        %v3212 = vpack.c.b16 %v3206, %v3205
        %v3213 = vpack.c.b16 %v3208, %v3207
        %v3214 = vpack.c.b16 %v3210, %v3209
        %v3220 = vsel %vm1904, %v3178, 0
        %v3223 = vsel %vm1904, %v3179, 0
        %3225 = vmatprep.subr.bf16.mxu0 0
        %3226 = vmatpush1.bf16.msra.mxu0 0
        %3227 = vmatprep.subr.bf16.mxu0 0
        %3228 = vmatpush1.bf16.msra.mxu0 0
        %3229 = vmatprep.subr.bf16.mxu0 0
        %3230 = vmatpush1.bf16.msra.mxu0 0
        %3231 = vmatprep.subr.bf16.mxu0 0
        %3232 = vmatpush1.bf16.msra.mxu0 0
        %3233 = vmatprep.subr.bf16.mxu0 0
        %3234 = vmatpush1.bf16.msra.mxu0 %v3214
        %3235 = vmatprep.subr.bf16.mxu0 0
        %3236 = vmatpush1.bf16.msra.mxu0 %v3213
        %3237 = vmatprep.subr.bf16.mxu0 0
        %3238 = vmatpush1.bf16.msra.mxu0 %v3212
        %3239 = vmatprep.subr.bf16.mxu0 0
        %3240 = vmatpush1.bf16.msra.mxu0 %v3211
        %3241 = vmatprep.subr.bf16.mxu0 0
        %3242 = vmatpush2.bf16.msra.mxu0 0
        %3243 = vmatprep.subr.bf16.mxu0 0
        %3244 = vmatpush2.bf16.msra.mxu0 0
        %3245 = vmatprep.subr.bf16.mxu0 0
        %3246 = vmatpush2.bf16.msra.mxu0 0
        %3247 = vmatprep.subr.bf16.mxu0 0
        %3248 = vmatpush2.bf16.msra.mxu0 0
        %3249 = vmatprep.subr.bf16.mxu0 0
        %3250 = vmatpush2.bf16.msra.mxu0 0
        %3251 = vmatprep.subr.bf16.mxu0 0
        %3252 = vmatpush2.bf16.msra.mxu0 0
        %3253 = vmatprep.subr.bf16.mxu0 0
        %3254 = vmatpush2.bf16.msra.mxu0 0
        %3255 = vmatprep.subr.bf16.mxu0 0
        %3256 = vmatpush2.bf16.msra.mxu0 0
        %3257 = vmatprep.mubr.bf16.mxu0 0
        %3258 = vmatmul.mubr.bf16.gmra.mxu0 %v3220
        %v3259 = vpop.f32.mrf.mxu0
        %v3260 = vadd.f32 %v3193, %v3259
        %v3261 = vpop.f32.mrf.mxu0
        %v3262 = vpop.f32.mrf.mxu0
        %v3263 = vadd.f32 %v3193, %v3262
        %v3264 = vpop.f32.mrf.mxu0
        %3265 = vmatprep.mubr.bf16.mxu0 0
        %3266 = vmatmul.mubr.bf16.gmra.mxu0 %v3223
        %v3267 = vpop.f32.mrf.mxu0
        %v3268 = vadd.f32 %v3193, %v3267
        %v3269 = vpop.f32.mrf.mxu0
        %v3270 = vpop.f32.mrf.mxu0
        %v3271 = vadd.f32 %v3193, %v3270
        %v3272 = vpop.f32.mrf.mxu0
        %3273 = vdwg.mxu0
        %v3274 = vpack.c.bf16 %v3263, %v3260
        %v3275 = vpack.c.bf16 %v3271, %v3268
        %v3276 = vld [vmem:[%s7] sm:$0xf]
        %v3277 = vld [vmem:[%s7 + $0x4] sm:$0xf]
        %v3278 = vld [vmem:[%s7 + $0x8] sm:$0xf]
        %v3279 = vld [vmem:[%s7 + $0xc] sm:$0xf]
        %v3284 = vunpack.c.l.b16 %v3276
        %v3285 = vunpack.c.l.b16 %v3277
        %v3286 = vunpack.c.l.b16 %v3278
        %v3287 = vunpack.c.l.b16 %v3279
        %v3288 = vpack.c.b16 %v3285, %v3284
        %v3289 = vpack.c.b16 %v3287, %v3286
        %v3293 = vsel %vm1533, %v3274, 0
        %v3296 = vsel %vm1533, %v3275, 0
        %3298 = vmatprep.subr.bf16.mxu0 0
        %3299 = vmatpush1.bf16.msra.mxu0 0
        %3300 = vmatprep.subr.bf16.mxu0 0
        %3301 = vmatpush1.bf16.msra.mxu0 0
        %3302 = vmatprep.subr.bf16.mxu0 0
        %3303 = vmatpush1.bf16.msra.mxu0 0
        %3304 = vmatprep.subr.bf16.mxu0 0
        %3305 = vmatpush1.bf16.msra.mxu0 0
        %3306 = vmatprep.subr.bf16.mxu0 0
        %3307 = vmatpush1.bf16.msra.mxu0 0
        %3308 = vmatprep.subr.bf16.mxu0 0
        %3309 = vmatpush1.bf16.msra.mxu0 0
        %3310 = vmatprep.subr.bf16.mxu0 0
        %3311 = vmatpush1.bf16.msra.mxu0 %v3289
        %3312 = vmatprep.subr.bf16.mxu0 0
        %3313 = vmatpush1.bf16.msra.mxu0 %v3288
        %3314 = vmatprep.subr.bf16.mxu0 0
        %3315 = vmatpush2.bf16.msra.mxu0 0
        %3316 = vmatprep.subr.bf16.mxu0 0
        %3317 = vmatpush2.bf16.msra.mxu0 0
        %3318 = vmatprep.subr.bf16.mxu0 0
        %3319 = vmatpush2.bf16.msra.mxu0 0
        %3320 = vmatprep.subr.bf16.mxu0 0
        %3321 = vmatpush2.bf16.msra.mxu0 0
        %3322 = vmatprep.subr.bf16.mxu0 0
        %3323 = vmatpush2.bf16.msra.mxu0 0
        %3324 = vmatprep.subr.bf16.mxu0 0
        %3325 = vmatpush2.bf16.msra.mxu0 0
        %3326 = vmatprep.subr.bf16.mxu0 0
        %3327 = vmatpush2.bf16.msra.mxu0 0
        %3328 = vmatprep.subr.bf16.mxu0 0
        %3329 = vmatpush2.bf16.msra.mxu0 0
        %3330 = vmatprep.mubr.bf16.mxu0 0
        %3331 = vmatmul.mubr.bf16.gmra.mxu0 %v3293
        %v3332 = vpop.f32.mrf.mxu0
        %v3333 = vadd.f32 0.0, %v3332
        %v3334 = vpop.f32.mrf.mxu0
        %v3335 = vpop.f32.mrf.mxu0
        %v3336 = vadd.f32 0.0, %v3335
        %v3337 = vpop.f32.mrf.mxu0
        %3338 = vmatprep.mubr.bf16.mxu0 0
        %3339 = vmatmul.mubr.bf16.gmra.mxu0 %v3296
        %v3340 = vpop.f32.mrf.mxu0
        %v3341 = vadd.f32 0.0, %v3340
        %v3342 = vpop.f32.mrf.mxu0
        %v3343 = vpop.f32.mrf.mxu0
        %v3344 = vadd.f32 0.0, %v3343
        %v3345 = vpop.f32.mrf.mxu0
        %3346 = vdwg.mxu0
        %3351 = vrot.lane.b32.xlu0 %v3333, 36
        %v3352 = vpop.permute.xlu0 %3351
        %3353 = vrot.lane.b32.xlu0 %v3336, 36
        %v3354 = vpop.permute.xlu0 %3353
        %3355 = vrot.lane.b32.xlu0 %v3341, 36
        %v3356 = vpop.permute.xlu0 %3355
        %3357 = vrot.lane.b32.xlu0 %v3344, 36
        %v3358 = vpop.permute.xlu0 %3357
        %v3363 = vadd.f32 %v3260, %v3352
        %v3364 = vadd.f32 %v3263, %v3354
        %v3365 = vadd.f32 %v3268, %v3356
        %v3366 = vadd.f32 %v3271, %v3358
        %3367 = vrot.lane.b32.xlu0 %v3333, 52
        %v3368 = vpop.permute.xlu0 %3367
        %3369 = vrot.lane.b32.xlu0 %v3336, 52
        %v3370 = vpop.permute.xlu0 %3369
        %3371 = vrot.lane.b32.xlu0 %v3341, 52
        %v3372 = vpop.permute.xlu0 %3371
        %3373 = vrot.lane.b32.xlu0 %v3344, 52
        %v3374 = vpop.permute.xlu0 %3373
        %v3379 = vadd.f32 %v3260, %v3368
        %v3380 = vadd.f32 %v3263, %v3370
        %v3381 = vadd.f32 %v3268, %v3372
        %v3382 = vadd.f32 %v3271, %v3374
        %3387 = vrot.lane.b32.xlu0 %v3379, 112
        %v3388 = vpop.permute.xlu0 %3387
        %3389 = vrot.lane.b32.xlu0 %v3380, 112
        %v3390 = vpop.permute.xlu0 %3389
        %3391 = vrot.lane.b32.xlu0 %v3381, 112
        %v3392 = vpop.permute.xlu0 %3391
        %3393 = vrot.lane.b32.xlu0 %v3382, 112
        %v3394 = vpop.permute.xlu0 %3393
        %v3399 = vld [vmem:[%s8] sm:$0x1]
        %v3401 = vlaneseq
        %v3402 = vshrl.u32 %v3401, 7
        %v3403 = vsub.s32 0, %v3402
        %v3404 = vrot.slane %v3399, %v3403
        %3405 = vrot.lane.b32.xlu0 %v3404, 36
        %v3406 = vpop.permute.xlu0 %3405
        %v3408 = vadd.f32 %v3363, %v3406
        %v3409 = vadd.f32 %v3364, %v3406
        %v3410 = vadd.f32 %v3365, %v3406
        %v3411 = vadd.f32 %v3366, %v3406
        %v3412 = vadd.f32 %v3388, %v3406
        %v3413 = vadd.f32 %v3390, %v3406
        %v3414 = vadd.f32 %v3392, %v3406
        %v3415 = vadd.f32 %v3394, %v3406
        %3424 = vrot.lane.b32.xlu0 %v3408, 92
        %v3425 = vpop.permute.xlu0 %3424
        %3426 = vrot.lane.b32.xlu0 %v3409, 92
        %v3427 = vpop.permute.xlu0 %3426
        %3428 = vrot.lane.b32.xlu0 %v3410, 92
        %v3429 = vpop.permute.xlu0 %3428
        %3430 = vrot.lane.b32.xlu0 %v3411, 92
        %v3431 = vpop.permute.xlu0 %3430
        %3432 = vrot.lane.b32.xlu0 %v3412, 92
        %v3433 = vpop.permute.xlu0 %3432
        %3434 = vrot.lane.b32.xlu0 %v3413, 92
        %v3435 = vpop.permute.xlu0 %3434
        %3436 = vrot.lane.b32.xlu0 %v3414, 92
        %v3437 = vpop.permute.xlu0 %3436
        %3438 = vrot.lane.b32.xlu0 %v3415, 92
        %v3439 = vpop.permute.xlu0 %3438
        %s3448 = scalar_lea.vmem %s528, 32 [#allocation4]
        %3449 = vst.msk [vmem:[%s3448] sm:$0xff] %vm660, %v3425
        %3450 = vst.msk [vmem:[%s3448 + $0x8] sm:$0xff] %vm660, %v3427
        %3451 = vst.msk [vmem:[%s3448 + $0x10] sm:$0xff] %vm660, %v3429
        %3452 = vst.msk [vmem:[%s3448 + $0x18] sm:$0xff] %vm660, %v3431
        %3453 = vst.msk [vmem:[%s3448 + $0x20] sm:$0xff] %vm660, %v3433
        %3454 = vst.msk [vmem:[%s3448 + $0x28] sm:$0xff] %vm660, %v3435
        %3455 = vst.msk [vmem:[%s3448 + $0x30] sm:$0xff] %vm660, %v3437
        %3456 = vst.msk [vmem:[%s3448 + $0x38] sm:$0xff] %vm660, %v3439
        %3461 = vrot.lane.b32.xlu0 %v3260, 96
        %v3462 = vpop.permute.xlu0 %3461
        %3463 = vrot.lane.b32.xlu0 %v3263, 96
        %v3464 = vpop.permute.xlu0 %3463
        %3465 = vrot.lane.b32.xlu0 %v3268, 96
        %v3466 = vpop.permute.xlu0 %3465
        %3467 = vrot.lane.b32.xlu0 %v3271, 96
        %v3468 = vpop.permute.xlu0 %3467
        %3473 = vst.msk [vmem:[%s522] sm:$0xff] %vm1744, %v3462
        %3474 = vst.msk [vmem:[%s522 + $0x8] sm:$0xff] %vm1744, %v3464
        %3475 = vst.msk [vmem:[%s522 + $0x10] sm:$0xff] %vm1744, %v3466
        %3476 = vst.msk [vmem:[%s522 + $0x18] sm:$0xff] %vm1744, %v3468
        %3477 = vst.msk [vmem:[%s528] sm:$0xff] %vm660, 1.0
        %3478 = vst.msk [vmem:[%s528 + $0x8] sm:$0xff] %vm660, 1.0
        %3479 = vst.msk [vmem:[%s528 + $0x10] sm:$0xff] %vm660, 1.0
        %3480 = vst.msk [vmem:[%s528 + $0x18] sm:$0xff] %vm660, 1.0
        %s3481 = sand.u32 %s224, 1
        %s3482 = sand.u32 %s224, 1
        %s3483 = smul.addr %s3482, 480
        %s3484 = scalar_lea.vmem [#allocation3], %s3483
        %s3485 = sand.u32 %s250, 1
        %s3486 = sand.u32 %s250, 1
        %s3487 = smul.addr %s3486, 480
        %s3488 = scalar_lea.vmem [#allocation4], %s3487
        // Predicated region
        $region98: #{tpu_custom_call.1} parent=92 // pred_check
          %p3489 = pneg %p234
        $region99: #{tpu_custom_call.1} parent=92 // pred_check_branch
          %3491 = sbr.rel (%p3489) target = $region101
        $region100: #{tpu_custom_call.1} parent=92 // pred_region
          %s3492 = smul.u32 4, %s22
          %s3493 = smul.addr %s3492, 8
          %s3494 = scalar_lea.vmem %s9, %s3493
          // Predicated region
          $region102: #{tpu_custom_call.1} parent=100 // pred_check
            _
          $region103: #{tpu_custom_call.1} parent=100 // pred_check_branch
            %3496 = sbr.rel (0) target = $region105
          $region104: #{tpu_custom_call.1} parent=100 // pred_region
            // Predicated region
            $region106: #{tpu_custom_call.1} parent=104 // pred_check
              _
            $region107: #{tpu_custom_call.1} parent=104 // pred_check_branch
              %3498 = sbr.rel (0) target = $region109
            $region108: #{tpu_custom_call.1} parent=104 // pred_region
              // Predicated region
              $region121: #{tpu_custom_call.1} parent=108 // pred_check
                _
              $region122: #{tpu_custom_call.1} parent=108 // pred_check_branch
                %3632 = sbr.rel (0) target = $region124
              $region123: #{tpu_custom_call.1} parent=108 // pred_region
                loop: start=0, step=1, limit=1
                $region125: #{tpu_custom_call.1} parent=123 // loop_pre_header
                  _
                $region126: #{tpu_custom_call.1} parent=123 // loop_header
                  %s3634 = sphi 0, %s3638
                  %p3635 = scmp.ge.s32.totalorder %s3634, 1
                  %s3639 = sphi %s3484, %s3484
                  %s3640 = sphi %s3494, %s3494
                $region127: #{tpu_custom_call.1} parent=123 // loop_header_branch
                  %3637 = sbr.rel (%p3635) target = $region131
                $region128: #{tpu_custom_call.1} parent=123 // loop_body
                  %v3641 = vld [vmem:[%s3639] sm:$0xff]
                  %3642 = vst [vmem:[%s3640] sm:$0xff] %v3641
                  %v3643 = vld [vmem:[%s3639 + $0x8] sm:$0xff]
                  %3644 = vst [vmem:[%s3640 + $0x8] sm:$0xff] %v3643
                  %v3645 = vld [vmem:[%s3639 + $0x10] sm:$0xff]
                  %3646 = vst [vmem:[%s3640 + $0x10] sm:$0xff] %v3645
                  %v3647 = vld [vmem:[%s3639 + $0x18] sm:$0xff]
                  %3648 = vst [vmem:[%s3640 + $0x18] sm:$0xff] %v3647
                  %v3649 = vld [vmem:[%s3639 + $0x20] sm:$0xff]
                  %3650 = vst [vmem:[%s3640 + $0x40] sm:$0xff] %v3649
                  %v3651 = vld [vmem:[%s3639 + $0x28] sm:$0xff]
                  %3652 = vst [vmem:[%s3640 + $0x48] sm:$0xff] %v3651
                  %v3653 = vld [vmem:[%s3639 + $0x30] sm:$0xff]
                  %3654 = vst [vmem:[%s3640 + $0x50] sm:$0xff] %v3653
                  %v3655 = vld [vmem:[%s3639 + $0x38] sm:$0xff]
                  %3656 = vst [vmem:[%s3640 + $0x58] sm:$0xff] %v3655
                  %v3657 = vld [vmem:[%s3639 + $0x40] sm:$0xff]
                  %3658 = vst [vmem:[%s3640 + $0x80] sm:$0xff] %v3657
                  %v3659 = vld [vmem:[%s3639 + $0x48] sm:$0xff]
                  %3660 = vst [vmem:[%s3640 + $0x88] sm:$0xff] %v3659
                  %v3661 = vld [vmem:[%s3639 + $0x50] sm:$0xff]
                  %3662 = vst [vmem:[%s3640 + $0x90] sm:$0xff] %v3661
                  %v3663 = vld [vmem:[%s3639 + $0x58] sm:$0xff]
                  %3664 = vst [vmem:[%s3640 + $0x98] sm:$0xff] %v3663
                  %v3665 = vld [vmem:[%s3639 + $0x60] sm:$0xff]
                  %3666 = vst [vmem:[%s3640 + $0xc0] sm:$0xff] %v3665
                  %v3667 = vld [vmem:[%s3639 + $0x68] sm:$0xff]
                  %3668 = vst [vmem:[%s3640 + $0xc8] sm:$0xff] %v3667
                  %v3669 = vld [vmem:[%s3639 + $0x70] sm:$0xff]
                  %3670 = vst [vmem:[%s3640 + $0xd0] sm:$0xff] %v3669
                  %v3671 = vld [vmem:[%s3639 + $0x78] sm:$0xff]
                  %3672 = vst [vmem:[%s3640 + $0xd8] sm:$0xff] %v3671
                  %v3673 = vld [vmem:[%s3639 + $0x80] sm:$0xff]
                  %3674 = vst [vmem:[%s3640 + $0x100] sm:$0xff] %v3673
                  %v3675 = vld [vmem:[%s3639 + $0x88] sm:$0xff]
                  %3676 = vst [vmem:[%s3640 + $0x108] sm:$0xff] %v3675
                  %v3677 = vld [vmem:[%s3639 + $0x90] sm:$0xff]
                  %3678 = vst [vmem:[%s3640 + $0x110] sm:$0xff] %v3677
                  %v3679 = vld [vmem:[%s3639 + $0x98] sm:$0xff]
                  %3680 = vst [vmem:[%s3640 + $0x118] sm:$0xff] %v3679
                  %v3681 = vld [vmem:[%s3639 + $0xa0] sm:$0xff]
                  %3682 = vst [vmem:[%s3640 + $0x140] sm:$0xff] %v3681
                  %v3683 = vld [vmem:[%s3639 + $0xa8] sm:$0xff]
                  %3684 = vst [vmem:[%s3640 + $0x148] sm:$0xff] %v3683
                  %v3685 = vld [vmem:[%s3639 + $0xb0] sm:$0xff]
                  %3686 = vst [vmem:[%s3640 + $0x150] sm:$0xff] %v3685
                  %v3687 = vld [vmem:[%s3639 + $0xb8] sm:$0xff]
                  %3688 = vst [vmem:[%s3640 + $0x158] sm:$0xff] %v3687
                  %v3689 = vld [vmem:[%s3639 + $0xc0] sm:$0xff]
                  %3690 = vst [vmem:[%s3640 + $0x180] sm:$0xff] %v3689
                  %v3691 = vld [vmem:[%s3639 + $0xc8] sm:$0xff]
                  %3692 = vst [vmem:[%s3640 + $0x188] sm:$0xff] %v3691
                  %v3693 = vld [vmem:[%s3639 + $0xd0] sm:$0xff]
                  %3694 = vst [vmem:[%s3640 + $0x190] sm:$0xff] %v3693
                  %v3695 = vld [vmem:[%s3639 + $0xd8] sm:$0xff]
                  %3696 = vst [vmem:[%s3640 + $0x198] sm:$0xff] %v3695
                  %v3697 = vld [vmem:[%s3639 + $0xe0] sm:$0xff]
                  %3698 = vst [vmem:[%s3640 + $0x1c0] sm:$0xff] %v3697
                  %v3699 = vld [vmem:[%s3639 + $0xe8] sm:$0xff]
                  %3700 = vst [vmem:[%s3640 + $0x1c8] sm:$0xff] %v3699
                  %v3701 = vld [vmem:[%s3639 + $0xf0] sm:$0xff]
                  %3702 = vst [vmem:[%s3640 + $0x1d0] sm:$0xff] %v3701
                  %v3703 = vld [vmem:[%s3639 + $0xf8] sm:$0xff]
                  %3704 = vst [vmem:[%s3640 + $0x1d8] sm:$0xff] %v3703
                  %v3705 = vld [vmem:[%s3639 + $0x100] sm:$0xff]
                  %3706 = vst [vmem:[%s3640 + $0x200] sm:$0xff] %v3705
                  %v3707 = vld [vmem:[%s3639 + $0x108] sm:$0xff]
                  %3708 = vst [vmem:[%s3640 + $0x208] sm:$0xff] %v3707
                  %v3709 = vld [vmem:[%s3639 + $0x110] sm:$0xff]
                  %3710 = vst [vmem:[%s3640 + $0x210] sm:$0xff] %v3709
                  %v3711 = vld [vmem:[%s3639 + $0x118] sm:$0xff]
                  %3712 = vst [vmem:[%s3640 + $0x218] sm:$0xff] %v3711
                  %v3713 = vld [vmem:[%s3639 + $0x120] sm:$0xff]
                  %3714 = vst [vmem:[%s3640 + $0x240] sm:$0xff] %v3713
                  %v3715 = vld [vmem:[%s3639 + $0x128] sm:$0xff]
                  %3716 = vst [vmem:[%s3640 + $0x248] sm:$0xff] %v3715
                  %v3717 = vld [vmem:[%s3639 + $0x130] sm:$0xff]
                  %3718 = vst [vmem:[%s3640 + $0x250] sm:$0xff] %v3717
                  %v3719 = vld [vmem:[%s3639 + $0x138] sm:$0xff]
                  %3720 = vst [vmem:[%s3640 + $0x258] sm:$0xff] %v3719
                  %v3721 = vld [vmem:[%s3639 + $0x140] sm:$0xff]
                  %3722 = vst [vmem:[%s3640 + $0x280] sm:$0xff] %v3721
                  %v3723 = vld [vmem:[%s3639 + $0x148] sm:$0xff]
                  %3724 = vst [vmem:[%s3640 + $0x288] sm:$0xff] %v3723
                  %v3725 = vld [vmem:[%s3639 + $0x150] sm:$0xff]
                  %3726 = vst [vmem:[%s3640 + $0x290] sm:$0xff] %v3725
                  %v3727 = vld [vmem:[%s3639 + $0x158] sm:$0xff]
                  %3728 = vst [vmem:[%s3640 + $0x298] sm:$0xff] %v3727
                  %v3729 = vld [vmem:[%s3639 + $0x160] sm:$0xff]
                  %3730 = vst [vmem:[%s3640 + $0x2c0] sm:$0xff] %v3729
                  %v3731 = vld [vmem:[%s3639 + $0x168] sm:$0xff]
                  %3732 = vst [vmem:[%s3640 + $0x2c8] sm:$0xff] %v3731
                  %v3733 = vld [vmem:[%s3639 + $0x170] sm:$0xff]
                  %3734 = vst [vmem:[%s3640 + $0x2d0] sm:$0xff] %v3733
                  %v3735 = vld [vmem:[%s3639 + $0x178] sm:$0xff]
                  %3736 = vst [vmem:[%s3640 + $0x2d8] sm:$0xff] %v3735
                  %v3737 = vld [vmem:[%s3639 + $0x180] sm:$0xff]
                  %3738 = vst [vmem:[%s3640 + $0x300] sm:$0xff] %v3737
                  %v3739 = vld [vmem:[%s3639 + $0x188] sm:$0xff]
                  %3740 = vst [vmem:[%s3640 + $0x308] sm:$0xff] %v3739
                  %v3741 = vld [vmem:[%s3639 + $0x190] sm:$0xff]
                  %3742 = vst [vmem:[%s3640 + $0x310] sm:$0xff] %v3741
                  %v3743 = vld [vmem:[%s3639 + $0x198] sm:$0xff]
                  %3744 = vst [vmem:[%s3640 + $0x318] sm:$0xff] %v3743
                  %v3745 = vld [vmem:[%s3639 + $0x1a0] sm:$0xff]
                  %3746 = vst [vmem:[%s3640 + $0x340] sm:$0xff] %v3745
                  %v3747 = vld [vmem:[%s3639 + $0x1a8] sm:$0xff]
                  %3748 = vst [vmem:[%s3640 + $0x348] sm:$0xff] %v3747
                  %v3749 = vld [vmem:[%s3639 + $0x1b0] sm:$0xff]
                  %3750 = vst [vmem:[%s3640 + $0x350] sm:$0xff] %v3749
                  %v3751 = vld [vmem:[%s3639 + $0x1b8] sm:$0xff]
                  %3752 = vst [vmem:[%s3640 + $0x358] sm:$0xff] %v3751
                  %v3753 = vld [vmem:[%s3639 + $0x1c0] sm:$0xff]
                  %3754 = vst [vmem:[%s3640 + $0x380] sm:$0xff] %v3753
                  %v3755 = vld [vmem:[%s3639 + $0x1c8] sm:$0xff]
                  %3756 = vst [vmem:[%s3640 + $0x388] sm:$0xff] %v3755
                  %v3757 = vld [vmem:[%s3639 + $0x1d0] sm:$0xff]
                  %3758 = vst [vmem:[%s3640 + $0x390] sm:$0xff] %v3757
                  %v3759 = vld [vmem:[%s3639 + $0x1d8] sm:$0xff]
                  %3760 = vst [vmem:[%s3640 + $0x398] sm:$0xff] %v3759
                $region129: #{tpu_custom_call.1} parent=123 // loop_footer
                  %s3638 = sadd.s32 1, %s3634
                $region130: #{tpu_custom_call.1} parent=123 // loop_footer_branch
                  %3633 = sbr.rel target = $region126
                $region131: #{tpu_custom_call.1} parent=123 // loop_exit
                  _
              $region124: #{tpu_custom_call.1} parent=108 // pred_fallthru
                _
              // Predicated region
              $region132: #{tpu_custom_call.1} parent=108 // pred_check
                _
              $region133: #{tpu_custom_call.1} parent=108 // pred_check_branch
                %3762 = sbr.rel target = $region135
              $region134: #{tpu_custom_call.1} parent=108 // pred_region
                _
              $region135: #{tpu_custom_call.1} parent=108 // pred_fallthru
                _
            $region109: #{tpu_custom_call.1} parent=104 // pred_fallthru
              _
            // Predicated region
            $region110: #{tpu_custom_call.1} parent=104 // pred_check
              _
            $region111: #{tpu_custom_call.1} parent=104 // pred_check_branch
              %3500 = sbr.rel target = $region113
            $region112: #{tpu_custom_call.1} parent=104 // pred_region
              %s3502 = ssub.s32 256, 1
              loop: start=0, step=1, limit=1
              $region114: #{tpu_custom_call.1} parent=112 // loop_pre_header
                _
              $region115: #{tpu_custom_call.1} parent=112 // loop_header
                %s3504 = sphi 0, %s3508
                %p3505 = scmp.ge.s32.totalorder %s3504, 1
                %s3509 = sphi %s3484, %s3484
                %s3510 = sphi %s3494, %s3494
              $region116: #{tpu_custom_call.1} parent=112 // loop_header_branch
                %3507 = sbr.rel (%p3505) target = $region120
              $region117: #{tpu_custom_call.1} parent=112 // loop_body
                %v3511 = vld [vmem:[%s3509] sm:%s3502]
                %3512 = vst [vmem:[%s3510] sm:%s3502] %v3511
                %v3513 = vld [vmem:[%s3509 + $0x8] sm:%s3502]
                %3514 = vst [vmem:[%s3510 + $0x8] sm:%s3502] %v3513
                %v3515 = vld [vmem:[%s3509 + $0x10] sm:%s3502]
                %3516 = vst [vmem:[%s3510 + $0x10] sm:%s3502] %v3515
                %v3517 = vld [vmem:[%s3509 + $0x18] sm:%s3502]
                %3518 = vst [vmem:[%s3510 + $0x18] sm:%s3502] %v3517
                %v3519 = vld [vmem:[%s3509 + $0x20] sm:%s3502]
                %3520 = vst [vmem:[%s3510 + $0x40] sm:%s3502] %v3519
                %v3521 = vld [vmem:[%s3509 + $0x28] sm:%s3502]
                %3522 = vst [vmem:[%s3510 + $0x48] sm:%s3502] %v3521
                %v3523 = vld [vmem:[%s3509 + $0x30] sm:%s3502]
                %3524 = vst [vmem:[%s3510 + $0x50] sm:%s3502] %v3523
                %v3525 = vld [vmem:[%s3509 + $0x38] sm:%s3502]
                %3526 = vst [vmem:[%s3510 + $0x58] sm:%s3502] %v3525
                %v3527 = vld [vmem:[%s3509 + $0x40] sm:%s3502]
                %3528 = vst [vmem:[%s3510 + $0x80] sm:%s3502] %v3527
                %v3529 = vld [vmem:[%s3509 + $0x48] sm:%s3502]
                %3530 = vst [vmem:[%s3510 + $0x88] sm:%s3502] %v3529
                %v3531 = vld [vmem:[%s3509 + $0x50] sm:%s3502]
                %3532 = vst [vmem:[%s3510 + $0x90] sm:%s3502] %v3531
                %v3533 = vld [vmem:[%s3509 + $0x58] sm:%s3502]
                %3534 = vst [vmem:[%s3510 + $0x98] sm:%s3502] %v3533
                %v3535 = vld [vmem:[%s3509 + $0x60] sm:%s3502]
                %3536 = vst [vmem:[%s3510 + $0xc0] sm:%s3502] %v3535
                %v3537 = vld [vmem:[%s3509 + $0x68] sm:%s3502]
                %3538 = vst [vmem:[%s3510 + $0xc8] sm:%s3502] %v3537
                %v3539 = vld [vmem:[%s3509 + $0x70] sm:%s3502]
                %3540 = vst [vmem:[%s3510 + $0xd0] sm:%s3502] %v3539
                %v3541 = vld [vmem:[%s3509 + $0x78] sm:%s3502]
                %3542 = vst [vmem:[%s3510 + $0xd8] sm:%s3502] %v3541
                %v3543 = vld [vmem:[%s3509 + $0x80] sm:%s3502]
                %3544 = vst [vmem:[%s3510 + $0x100] sm:%s3502] %v3543
                %v3545 = vld [vmem:[%s3509 + $0x88] sm:%s3502]
                %3546 = vst [vmem:[%s3510 + $0x108] sm:%s3502] %v3545
                %v3547 = vld [vmem:[%s3509 + $0x90] sm:%s3502]
                %3548 = vst [vmem:[%s3510 + $0x110] sm:%s3502] %v3547
                %v3549 = vld [vmem:[%s3509 + $0x98] sm:%s3502]
                %3550 = vst [vmem:[%s3510 + $0x118] sm:%s3502] %v3549
                %v3551 = vld [vmem:[%s3509 + $0xa0] sm:%s3502]
                %3552 = vst [vmem:[%s3510 + $0x140] sm:%s3502] %v3551
                %v3553 = vld [vmem:[%s3509 + $0xa8] sm:%s3502]
                %3554 = vst [vmem:[%s3510 + $0x148] sm:%s3502] %v3553
                %v3555 = vld [vmem:[%s3509 + $0xb0] sm:%s3502]
                %3556 = vst [vmem:[%s3510 + $0x150] sm:%s3502] %v3555
                %v3557 = vld [vmem:[%s3509 + $0xb8] sm:%s3502]
                %3558 = vst [vmem:[%s3510 + $0x158] sm:%s3502] %v3557
                %v3559 = vld [vmem:[%s3509 + $0xc0] sm:%s3502]
                %3560 = vst [vmem:[%s3510 + $0x180] sm:%s3502] %v3559
                %v3561 = vld [vmem:[%s3509 + $0xc8] sm:%s3502]
                %3562 = vst [vmem:[%s3510 + $0x188] sm:%s3502] %v3561
                %v3563 = vld [vmem:[%s3509 + $0xd0] sm:%s3502]
                %3564 = vst [vmem:[%s3510 + $0x190] sm:%s3502] %v3563
                %v3565 = vld [vmem:[%s3509 + $0xd8] sm:%s3502]
                %3566 = vst [vmem:[%s3510 + $0x198] sm:%s3502] %v3565
                %v3567 = vld [vmem:[%s3509 + $0xe0] sm:%s3502]
                %3568 = vst [vmem:[%s3510 + $0x1c0] sm:%s3502] %v3567
                %v3569 = vld [vmem:[%s3509 + $0xe8] sm:%s3502]
                %3570 = vst [vmem:[%s3510 + $0x1c8] sm:%s3502] %v3569
                %v3571 = vld [vmem:[%s3509 + $0xf0] sm:%s3502]
                %3572 = vst [vmem:[%s3510 + $0x1d0] sm:%s3502] %v3571
                %v3573 = vld [vmem:[%s3509 + $0xf8] sm:%s3502]
                %3574 = vst [vmem:[%s3510 + $0x1d8] sm:%s3502] %v3573
                %v3575 = vld [vmem:[%s3509 + $0x100] sm:%s3502]
                %3576 = vst [vmem:[%s3510 + $0x200] sm:%s3502] %v3575
                %v3577 = vld [vmem:[%s3509 + $0x108] sm:%s3502]
                %3578 = vst [vmem:[%s3510 + $0x208] sm:%s3502] %v3577
                %v3579 = vld [vmem:[%s3509 + $0x110] sm:%s3502]
                %3580 = vst [vmem:[%s3510 + $0x210] sm:%s3502] %v3579
                %v3581 = vld [vmem:[%s3509 + $0x118] sm:%s3502]
                %3582 = vst [vmem:[%s3510 + $0x218] sm:%s3502] %v3581
                %v3583 = vld [vmem:[%s3509 + $0x120] sm:%s3502]
                %3584 = vst [vmem:[%s3510 + $0x240] sm:%s3502] %v3583
                %v3585 = vld [vmem:[%s3509 + $0x128] sm:%s3502]
                %3586 = vst [vmem:[%s3510 + $0x248] sm:%s3502] %v3585
                %v3587 = vld [vmem:[%s3509 + $0x130] sm:%s3502]
                %3588 = vst [vmem:[%s3510 + $0x250] sm:%s3502] %v3587
                %v3589 = vld [vmem:[%s3509 + $0x138] sm:%s3502]
                %3590 = vst [vmem:[%s3510 + $0x258] sm:%s3502] %v3589
                %v3591 = vld [vmem:[%s3509 + $0x140] sm:%s3502]
                %3592 = vst [vmem:[%s3510 + $0x280] sm:%s3502] %v3591
                %v3593 = vld [vmem:[%s3509 + $0x148] sm:%s3502]
                %3594 = vst [vmem:[%s3510 + $0x288] sm:%s3502] %v3593
                %v3595 = vld [vmem:[%s3509 + $0x150] sm:%s3502]
                %3596 = vst [vmem:[%s3510 + $0x290] sm:%s3502] %v3595
                %v3597 = vld [vmem:[%s3509 + $0x158] sm:%s3502]
                %3598 = vst [vmem:[%s3510 + $0x298] sm:%s3502] %v3597
                %v3599 = vld [vmem:[%s3509 + $0x160] sm:%s3502]
                %3600 = vst [vmem:[%s3510 + $0x2c0] sm:%s3502] %v3599
                %v3601 = vld [vmem:[%s3509 + $0x168] sm:%s3502]
                %3602 = vst [vmem:[%s3510 + $0x2c8] sm:%s3502] %v3601
                %v3603 = vld [vmem:[%s3509 + $0x170] sm:%s3502]
                %3604 = vst [vmem:[%s3510 + $0x2d0] sm:%s3502] %v3603
                %v3605 = vld [vmem:[%s3509 + $0x178] sm:%s3502]
                %3606 = vst [vmem:[%s3510 + $0x2d8] sm:%s3502] %v3605
                %v3607 = vld [vmem:[%s3509 + $0x180] sm:%s3502]
                %3608 = vst [vmem:[%s3510 + $0x300] sm:%s3502] %v3607
                %v3609 = vld [vmem:[%s3509 + $0x188] sm:%s3502]
                %3610 = vst [vmem:[%s3510 + $0x308] sm:%s3502] %v3609
                %v3611 = vld [vmem:[%s3509 + $0x190] sm:%s3502]
                %3612 = vst [vmem:[%s3510 + $0x310] sm:%s3502] %v3611
                %v3613 = vld [vmem:[%s3509 + $0x198] sm:%s3502]
                %3614 = vst [vmem:[%s3510 + $0x318] sm:%s3502] %v3613
                %v3615 = vld [vmem:[%s3509 + $0x1a0] sm:%s3502]
                %3616 = vst [vmem:[%s3510 + $0x340] sm:%s3502] %v3615
                %v3617 = vld [vmem:[%s3509 + $0x1a8] sm:%s3502]
                %3618 = vst [vmem:[%s3510 + $0x348] sm:%s3502] %v3617
                %v3619 = vld [vmem:[%s3509 + $0x1b0] sm:%s3502]
                %3620 = vst [vmem:[%s3510 + $0x350] sm:%s3502] %v3619
                %v3621 = vld [vmem:[%s3509 + $0x1b8] sm:%s3502]
                %3622 = vst [vmem:[%s3510 + $0x358] sm:%s3502] %v3621
                %v3623 = vld [vmem:[%s3509 + $0x1c0] sm:%s3502]
                %3624 = vst [vmem:[%s3510 + $0x380] sm:%s3502] %v3623
                %v3625 = vld [vmem:[%s3509 + $0x1c8] sm:%s3502]
                %3626 = vst [vmem:[%s3510 + $0x388] sm:%s3502] %v3625
                %v3627 = vld [vmem:[%s3509 + $0x1d0] sm:%s3502]
                %3628 = vst [vmem:[%s3510 + $0x390] sm:%s3502] %v3627
                %v3629 = vld [vmem:[%s3509 + $0x1d8] sm:%s3502]
                %3630 = vst [vmem:[%s3510 + $0x398] sm:%s3502] %v3629
              $region118: #{tpu_custom_call.1} parent=112 // loop_footer
                %s3508 = sadd.s32 1, %s3504
              $region119: #{tpu_custom_call.1} parent=112 // loop_footer_branch
                %3503 = sbr.rel target = $region115
              $region120: #{tpu_custom_call.1} parent=112 // loop_exit
                _
            $region113: #{tpu_custom_call.1} parent=104 // pred_fallthru
              _
          $region105: #{tpu_custom_call.1} parent=100 // pred_fallthru
            _
          %3763 = vnop
        $region101: #{tpu_custom_call.1} parent=92 // pred_fallthru
          _
        // Predicated region
        $region136: #{tpu_custom_call.1} parent=92 // pred_check
          %p3764 = pneg %p260
        $region137: #{tpu_custom_call.1} parent=92 // pred_check_branch
          %3766 = sbr.rel (%p3764) target = $region139
        $region138: #{tpu_custom_call.1} parent=92 // pred_region
          %s3767 = smul.u32 4, %s22
          %s3768 = smul.addr %s3767, 8
          %s3769 = scalar_lea.vmem %s10, %s3768
          // Predicated region
          $region140: #{tpu_custom_call.1} parent=138 // pred_check
            _
          $region141: #{tpu_custom_call.1} parent=138 // pred_check_branch
            %3771 = sbr.rel (0) target = $region143
          $region142: #{tpu_custom_call.1} parent=138 // pred_region
            // Predicated region
            $region144: #{tpu_custom_call.1} parent=142 // pred_check
              _
            $region145: #{tpu_custom_call.1} parent=142 // pred_check_branch
              %3773 = sbr.rel (0) target = $region147
            $region146: #{tpu_custom_call.1} parent=142 // pred_region
              // Predicated region
              $region159: #{tpu_custom_call.1} parent=146 // pred_check
                _
              $region160: #{tpu_custom_call.1} parent=146 // pred_check_branch
                %3907 = sbr.rel (0) target = $region162
              $region161: #{tpu_custom_call.1} parent=146 // pred_region
                loop: start=0, step=1, limit=1
                $region163: #{tpu_custom_call.1} parent=161 // loop_pre_header
                  _
                $region164: #{tpu_custom_call.1} parent=161 // loop_header
                  %s3909 = sphi 0, %s3913
                  %p3910 = scmp.ge.s32.totalorder %s3909, 1
                  %s3914 = sphi %s3488, %s3488
                  %s3915 = sphi %s3769, %s3769
                $region165: #{tpu_custom_call.1} parent=161 // loop_header_branch
                  %3912 = sbr.rel (%p3910) target = $region169
                $region166: #{tpu_custom_call.1} parent=161 // loop_body
                  %v3916 = vld [vmem:[%s3914] sm:$0xff]
                  %3917 = vst [vmem:[%s3915] sm:$0xff] %v3916
                  %v3918 = vld [vmem:[%s3914 + $0x8] sm:$0xff]
                  %3919 = vst [vmem:[%s3915 + $0x8] sm:$0xff] %v3918
                  %v3920 = vld [vmem:[%s3914 + $0x10] sm:$0xff]
                  %3921 = vst [vmem:[%s3915 + $0x10] sm:$0xff] %v3920
                  %v3922 = vld [vmem:[%s3914 + $0x18] sm:$0xff]
                  %3923 = vst [vmem:[%s3915 + $0x18] sm:$0xff] %v3922
                  %v3924 = vld [vmem:[%s3914 + $0x20] sm:$0xff]
                  %3925 = vst [vmem:[%s3915 + $0x40] sm:$0xff] %v3924
                  %v3926 = vld [vmem:[%s3914 + $0x28] sm:$0xff]
                  %3927 = vst [vmem:[%s3915 + $0x48] sm:$0xff] %v3926
                  %v3928 = vld [vmem:[%s3914 + $0x30] sm:$0xff]
                  %3929 = vst [vmem:[%s3915 + $0x50] sm:$0xff] %v3928
                  %v3930 = vld [vmem:[%s3914 + $0x38] sm:$0xff]
                  %3931 = vst [vmem:[%s3915 + $0x58] sm:$0xff] %v3930
                  %v3932 = vld [vmem:[%s3914 + $0x40] sm:$0xff]
                  %3933 = vst [vmem:[%s3915 + $0x80] sm:$0xff] %v3932
                  %v3934 = vld [vmem:[%s3914 + $0x48] sm:$0xff]
                  %3935 = vst [vmem:[%s3915 + $0x88] sm:$0xff] %v3934
                  %v3936 = vld [vmem:[%s3914 + $0x50] sm:$0xff]
                  %3937 = vst [vmem:[%s3915 + $0x90] sm:$0xff] %v3936
                  %v3938 = vld [vmem:[%s3914 + $0x58] sm:$0xff]
                  %3939 = vst [vmem:[%s3915 + $0x98] sm:$0xff] %v3938
                  %v3940 = vld [vmem:[%s3914 + $0x60] sm:$0xff]
                  %3941 = vst [vmem:[%s3915 + $0xc0] sm:$0xff] %v3940
                  %v3942 = vld [vmem:[%s3914 + $0x68] sm:$0xff]
                  %3943 = vst [vmem:[%s3915 + $0xc8] sm:$0xff] %v3942
                  %v3944 = vld [vmem:[%s3914 + $0x70] sm:$0xff]
                  %3945 = vst [vmem:[%s3915 + $0xd0] sm:$0xff] %v3944
                  %v3946 = vld [vmem:[%s3914 + $0x78] sm:$0xff]
                  %3947 = vst [vmem:[%s3915 + $0xd8] sm:$0xff] %v3946
                  %v3948 = vld [vmem:[%s3914 + $0x80] sm:$0xff]
                  %3949 = vst [vmem:[%s3915 + $0x100] sm:$0xff] %v3948
                  %v3950 = vld [vmem:[%s3914 + $0x88] sm:$0xff]
                  %3951 = vst [vmem:[%s3915 + $0x108] sm:$0xff] %v3950
                  %v3952 = vld [vmem:[%s3914 + $0x90] sm:$0xff]
                  %3953 = vst [vmem:[%s3915 + $0x110] sm:$0xff] %v3952
                  %v3954 = vld [vmem:[%s3914 + $0x98] sm:$0xff]
                  %3955 = vst [vmem:[%s3915 + $0x118] sm:$0xff] %v3954
                  %v3956 = vld [vmem:[%s3914 + $0xa0] sm:$0xff]
                  %3957 = vst [vmem:[%s3915 + $0x140] sm:$0xff] %v3956
                  %v3958 = vld [vmem:[%s3914 + $0xa8] sm:$0xff]
                  %3959 = vst [vmem:[%s3915 + $0x148] sm:$0xff] %v3958
                  %v3960 = vld [vmem:[%s3914 + $0xb0] sm:$0xff]
                  %3961 = vst [vmem:[%s3915 + $0x150] sm:$0xff] %v3960
                  %v3962 = vld [vmem:[%s3914 + $0xb8] sm:$0xff]
                  %3963 = vst [vmem:[%s3915 + $0x158] sm:$0xff] %v3962
                  %v3964 = vld [vmem:[%s3914 + $0xc0] sm:$0xff]
                  %3965 = vst [vmem:[%s3915 + $0x180] sm:$0xff] %v3964
                  %v3966 = vld [vmem:[%s3914 + $0xc8] sm:$0xff]
                  %3967 = vst [vmem:[%s3915 + $0x188] sm:$0xff] %v3966
                  %v3968 = vld [vmem:[%s3914 + $0xd0] sm:$0xff]
                  %3969 = vst [vmem:[%s3915 + $0x190] sm:$0xff] %v3968
                  %v3970 = vld [vmem:[%s3914 + $0xd8] sm:$0xff]
                  %3971 = vst [vmem:[%s3915 + $0x198] sm:$0xff] %v3970
                  %v3972 = vld [vmem:[%s3914 + $0xe0] sm:$0xff]
                  %3973 = vst [vmem:[%s3915 + $0x1c0] sm:$0xff] %v3972
                  %v3974 = vld [vmem:[%s3914 + $0xe8] sm:$0xff]
                  %3975 = vst [vmem:[%s3915 + $0x1c8] sm:$0xff] %v3974
                  %v3976 = vld [vmem:[%s3914 + $0xf0] sm:$0xff]
                  %3977 = vst [vmem:[%s3915 + $0x1d0] sm:$0xff] %v3976
                  %v3978 = vld [vmem:[%s3914 + $0xf8] sm:$0xff]
                  %3979 = vst [vmem:[%s3915 + $0x1d8] sm:$0xff] %v3978
                  %v3980 = vld [vmem:[%s3914 + $0x100] sm:$0xff]
                  %3981 = vst [vmem:[%s3915 + $0x200] sm:$0xff] %v3980
                  %v3982 = vld [vmem:[%s3914 + $0x108] sm:$0xff]
                  %3983 = vst [vmem:[%s3915 + $0x208] sm:$0xff] %v3982
                  %v3984 = vld [vmem:[%s3914 + $0x110] sm:$0xff]
                  %3985 = vst [vmem:[%s3915 + $0x210] sm:$0xff] %v3984
                  %v3986 = vld [vmem:[%s3914 + $0x118] sm:$0xff]
                  %3987 = vst [vmem:[%s3915 + $0x218] sm:$0xff] %v3986
                  %v3988 = vld [vmem:[%s3914 + $0x120] sm:$0xff]
                  %3989 = vst [vmem:[%s3915 + $0x240] sm:$0xff] %v3988
                  %v3990 = vld [vmem:[%s3914 + $0x128] sm:$0xff]
                  %3991 = vst [vmem:[%s3915 + $0x248] sm:$0xff] %v3990
                  %v3992 = vld [vmem:[%s3914 + $0x130] sm:$0xff]
                  %3993 = vst [vmem:[%s3915 + $0x250] sm:$0xff] %v3992
                  %v3994 = vld [vmem:[%s3914 + $0x138] sm:$0xff]
                  %3995 = vst [vmem:[%s3915 + $0x258] sm:$0xff] %v3994
                  %v3996 = vld [vmem:[%s3914 + $0x140] sm:$0xff]
                  %3997 = vst [vmem:[%s3915 + $0x280] sm:$0xff] %v3996
                  %v3998 = vld [vmem:[%s3914 + $0x148] sm:$0xff]
                  %3999 = vst [vmem:[%s3915 + $0x288] sm:$0xff] %v3998
                  %v4000 = vld [vmem:[%s3914 + $0x150] sm:$0xff]
                  %4001 = vst [vmem:[%s3915 + $0x290] sm:$0xff] %v4000
                  %v4002 = vld [vmem:[%s3914 + $0x158] sm:$0xff]
                  %4003 = vst [vmem:[%s3915 + $0x298] sm:$0xff] %v4002
                  %v4004 = vld [vmem:[%s3914 + $0x160] sm:$0xff]
                  %4005 = vst [vmem:[%s3915 + $0x2c0] sm:$0xff] %v4004
                  %v4006 = vld [vmem:[%s3914 + $0x168] sm:$0xff]
                  %4007 = vst [vmem:[%s3915 + $0x2c8] sm:$0xff] %v4006
                  %v4008 = vld [vmem:[%s3914 + $0x170] sm:$0xff]
                  %4009 = vst [vmem:[%s3915 + $0x2d0] sm:$0xff] %v4008
                  %v4010 = vld [vmem:[%s3914 + $0x178] sm:$0xff]
                  %4011 = vst [vmem:[%s3915 + $0x2d8] sm:$0xff] %v4010
                  %v4012 = vld [vmem:[%s3914 + $0x180] sm:$0xff]
                  %4013 = vst [vmem:[%s3915 + $0x300] sm:$0xff] %v4012
                  %v4014 = vld [vmem:[%s3914 + $0x188] sm:$0xff]
                  %4015 = vst [vmem:[%s3915 + $0x308] sm:$0xff] %v4014
                  %v4016 = vld [vmem:[%s3914 + $0x190] sm:$0xff]
                  %4017 = vst [vmem:[%s3915 + $0x310] sm:$0xff] %v4016
                  %v4018 = vld [vmem:[%s3914 + $0x198] sm:$0xff]
                  %4019 = vst [vmem:[%s3915 + $0x318] sm:$0xff] %v4018
                  %v4020 = vld [vmem:[%s3914 + $0x1a0] sm:$0xff]
                  %4021 = vst [vmem:[%s3915 + $0x340] sm:$0xff] %v4020
                  %v4022 = vld [vmem:[%s3914 + $0x1a8] sm:$0xff]
                  %4023 = vst [vmem:[%s3915 + $0x348] sm:$0xff] %v4022
                  %v4024 = vld [vmem:[%s3914 + $0x1b0] sm:$0xff]
                  %4025 = vst [vmem:[%s3915 + $0x350] sm:$0xff] %v4024
                  %v4026 = vld [vmem:[%s3914 + $0x1b8] sm:$0xff]
                  %4027 = vst [vmem:[%s3915 + $0x358] sm:$0xff] %v4026
                  %v4028 = vld [vmem:[%s3914 + $0x1c0] sm:$0xff]
                  %4029 = vst [vmem:[%s3915 + $0x380] sm:$0xff] %v4028
                  %v4030 = vld [vmem:[%s3914 + $0x1c8] sm:$0xff]
                  %4031 = vst [vmem:[%s3915 + $0x388] sm:$0xff] %v4030
                  %v4032 = vld [vmem:[%s3914 + $0x1d0] sm:$0xff]
                  %4033 = vst [vmem:[%s3915 + $0x390] sm:$0xff] %v4032
                  %v4034 = vld [vmem:[%s3914 + $0x1d8] sm:$0xff]
                  %4035 = vst [vmem:[%s3915 + $0x398] sm:$0xff] %v4034
                $region167: #{tpu_custom_call.1} parent=161 // loop_footer
                  %s3913 = sadd.s32 1, %s3909
                $region168: #{tpu_custom_call.1} parent=161 // loop_footer_branch
                  %3908 = sbr.rel target = $region164
                $region169: #{tpu_custom_call.1} parent=161 // loop_exit
                  _
              $region162: #{tpu_custom_call.1} parent=146 // pred_fallthru
                _
              // Predicated region
              $region170: #{tpu_custom_call.1} parent=146 // pred_check
                _
              $region171: #{tpu_custom_call.1} parent=146 // pred_check_branch
                %4037 = sbr.rel target = $region173
              $region172: #{tpu_custom_call.1} parent=146 // pred_region
                _
              $region173: #{tpu_custom_call.1} parent=146 // pred_fallthru
                _
            $region147: #{tpu_custom_call.1} parent=142 // pred_fallthru
              _
            // Predicated region
            $region148: #{tpu_custom_call.1} parent=142 // pred_check
              _
            $region149: #{tpu_custom_call.1} parent=142 // pred_check_branch
              %3775 = sbr.rel target = $region151
            $region150: #{tpu_custom_call.1} parent=142 // pred_region
              %s3777 = ssub.s32 256, 1
              loop: start=0, step=1, limit=1
              $region152: #{tpu_custom_call.1} parent=150 // loop_pre_header
                _
              $region153: #{tpu_custom_call.1} parent=150 // loop_header
                %s3779 = sphi 0, %s3783
                %p3780 = scmp.ge.s32.totalorder %s3779, 1
                %s3784 = sphi %s3488, %s3488
                %s3785 = sphi %s3769, %s3769
              $region154: #{tpu_custom_call.1} parent=150 // loop_header_branch
                %3782 = sbr.rel (%p3780) target = $region158
              $region155: #{tpu_custom_call.1} parent=150 // loop_body
                %v3786 = vld [vmem:[%s3784] sm:%s3777]
                %3787 = vst [vmem:[%s3785] sm:%s3777] %v3786
                %v3788 = vld [vmem:[%s3784 + $0x8] sm:%s3777]
                %3789 = vst [vmem:[%s3785 + $0x8] sm:%s3777] %v3788
                %v3790 = vld [vmem:[%s3784 + $0x10] sm:%s3777]
                %3791 = vst [vmem:[%s3785 + $0x10] sm:%s3777] %v3790
                %v3792 = vld [vmem:[%s3784 + $0x18] sm:%s3777]
                %3793 = vst [vmem:[%s3785 + $0x18] sm:%s3777] %v3792
                %v3794 = vld [vmem:[%s3784 + $0x20] sm:%s3777]
                %3795 = vst [vmem:[%s3785 + $0x40] sm:%s3777] %v3794
                %v3796 = vld [vmem:[%s3784 + $0x28] sm:%s3777]
                %3797 = vst [vmem:[%s3785 + $0x48] sm:%s3777] %v3796
                %v3798 = vld [vmem:[%s3784 + $0x30] sm:%s3777]
                %3799 = vst [vmem:[%s3785 + $0x50] sm:%s3777] %v3798
                %v3800 = vld [vmem:[%s3784 + $0x38] sm:%s3777]
                %3801 = vst [vmem:[%s3785 + $0x58] sm:%s3777] %v3800
                %v3802 = vld [vmem:[%s3784 + $0x40] sm:%s3777]
                %3803 = vst [vmem:[%s3785 + $0x80] sm:%s3777] %v3802
                %v3804 = vld [vmem:[%s3784 + $0x48] sm:%s3777]
                %3805 = vst [vmem:[%s3785 + $0x88] sm:%s3777] %v3804
                %v3806 = vld [vmem:[%s3784 + $0x50] sm:%s3777]
                %3807 = vst [vmem:[%s3785 + $0x90] sm:%s3777] %v3806
                %v3808 = vld [vmem:[%s3784 + $0x58] sm:%s3777]
                %3809 = vst [vmem:[%s3785 + $0x98] sm:%s3777] %v3808
                %v3810 = vld [vmem:[%s3784 + $0x60] sm:%s3777]
                %3811 = vst [vmem:[%s3785 + $0xc0] sm:%s3777] %v3810
                %v3812 = vld [vmem:[%s3784 + $0x68] sm:%s3777]
                %3813 = vst [vmem:[%s3785 + $0xc8] sm:%s3777] %v3812
                %v3814 = vld [vmem:[%s3784 + $0x70] sm:%s3777]
                %3815 = vst [vmem:[%s3785 + $0xd0] sm:%s3777] %v3814
                %v3816 = vld [vmem:[%s3784 + $0x78] sm:%s3777]
                %3817 = vst [vmem:[%s3785 + $0xd8] sm:%s3777] %v3816
                %v3818 = vld [vmem:[%s3784 + $0x80] sm:%s3777]
                %3819 = vst [vmem:[%s3785 + $0x100] sm:%s3777] %v3818
                %v3820 = vld [vmem:[%s3784 + $0x88] sm:%s3777]
                %3821 = vst [vmem:[%s3785 + $0x108] sm:%s3777] %v3820
                %v3822 = vld [vmem:[%s3784 + $0x90] sm:%s3777]
                %3823 = vst [vmem:[%s3785 + $0x110] sm:%s3777] %v3822
                %v3824 = vld [vmem:[%s3784 + $0x98] sm:%s3777]
                %3825 = vst [vmem:[%s3785 + $0x118] sm:%s3777] %v3824
                %v3826 = vld [vmem:[%s3784 + $0xa0] sm:%s3777]
                %3827 = vst [vmem:[%s3785 + $0x140] sm:%s3777] %v3826
                %v3828 = vld [vmem:[%s3784 + $0xa8] sm:%s3777]
                %3829 = vst [vmem:[%s3785 + $0x148] sm:%s3777] %v3828
                %v3830 = vld [vmem:[%s3784 + $0xb0] sm:%s3777]
                %3831 = vst [vmem:[%s3785 + $0x150] sm:%s3777] %v3830
                %v3832 = vld [vmem:[%s3784 + $0xb8] sm:%s3777]
                %3833 = vst [vmem:[%s3785 + $0x158] sm:%s3777] %v3832
                %v3834 = vld [vmem:[%s3784 + $0xc0] sm:%s3777]
                %3835 = vst [vmem:[%s3785 + $0x180] sm:%s3777] %v3834
                %v3836 = vld [vmem:[%s3784 + $0xc8] sm:%s3777]
                %3837 = vst [vmem:[%s3785 + $0x188] sm:%s3777] %v3836
                %v3838 = vld [vmem:[%s3784 + $0xd0] sm:%s3777]
                %3839 = vst [vmem:[%s3785 + $0x190] sm:%s3777] %v3838
                %v3840 = vld [vmem:[%s3784 + $0xd8] sm:%s3777]
                %3841 = vst [vmem:[%s3785 + $0x198] sm:%s3777] %v3840
                %v3842 = vld [vmem:[%s3784 + $0xe0] sm:%s3777]
                %3843 = vst [vmem:[%s3785 + $0x1c0] sm:%s3777] %v3842
                %v3844 = vld [vmem:[%s3784 + $0xe8] sm:%s3777]
                %3845 = vst [vmem:[%s3785 + $0x1c8] sm:%s3777] %v3844
                %v3846 = vld [vmem:[%s3784 + $0xf0] sm:%s3777]
                %3847 = vst [vmem:[%s3785 + $0x1d0] sm:%s3777] %v3846
                %v3848 = vld [vmem:[%s3784 + $0xf8] sm:%s3777]
                %3849 = vst [vmem:[%s3785 + $0x1d8] sm:%s3777] %v3848
                %v3850 = vld [vmem:[%s3784 + $0x100] sm:%s3777]
                %3851 = vst [vmem:[%s3785 + $0x200] sm:%s3777] %v3850
                %v3852 = vld [vmem:[%s3784 + $0x108] sm:%s3777]
                %3853 = vst [vmem:[%s3785 + $0x208] sm:%s3777] %v3852
                %v3854 = vld [vmem:[%s3784 + $0x110] sm:%s3777]
                %3855 = vst [vmem:[%s3785 + $0x210] sm:%s3777] %v3854
                %v3856 = vld [vmem:[%s3784 + $0x118] sm:%s3777]
                %3857 = vst [vmem:[%s3785 + $0x218] sm:%s3777] %v3856
                %v3858 = vld [vmem:[%s3784 + $0x120] sm:%s3777]
                %3859 = vst [vmem:[%s3785 + $0x240] sm:%s3777] %v3858
                %v3860 = vld [vmem:[%s3784 + $0x128] sm:%s3777]
                %3861 = vst [vmem:[%s3785 + $0x248] sm:%s3777] %v3860
                %v3862 = vld [vmem:[%s3784 + $0x130] sm:%s3777]
                %3863 = vst [vmem:[%s3785 + $0x250] sm:%s3777] %v3862
                %v3864 = vld [vmem:[%s3784 + $0x138] sm:%s3777]
                %3865 = vst [vmem:[%s3785 + $0x258] sm:%s3777] %v3864
                %v3866 = vld [vmem:[%s3784 + $0x140] sm:%s3777]
                %3867 = vst [vmem:[%s3785 + $0x280] sm:%s3777] %v3866
                %v3868 = vld [vmem:[%s3784 + $0x148] sm:%s3777]
                %3869 = vst [vmem:[%s3785 + $0x288] sm:%s3777] %v3868
                %v3870 = vld [vmem:[%s3784 + $0x150] sm:%s3777]
                %3871 = vst [vmem:[%s3785 + $0x290] sm:%s3777] %v3870
                %v3872 = vld [vmem:[%s3784 + $0x158] sm:%s3777]
                %3873 = vst [vmem:[%s3785 + $0x298] sm:%s3777] %v3872
                %v3874 = vld [vmem:[%s3784 + $0x160] sm:%s3777]
                %3875 = vst [vmem:[%s3785 + $0x2c0] sm:%s3777] %v3874
                %v3876 = vld [vmem:[%s3784 + $0x168] sm:%s3777]
                %3877 = vst [vmem:[%s3785 + $0x2c8] sm:%s3777] %v3876
                %v3878 = vld [vmem:[%s3784 + $0x170] sm:%s3777]
                %3879 = vst [vmem:[%s3785 + $0x2d0] sm:%s3777] %v3878
                %v3880 = vld [vmem:[%s3784 + $0x178] sm:%s3777]
                %3881 = vst [vmem:[%s3785 + $0x2d8] sm:%s3777] %v3880
                %v3882 = vld [vmem:[%s3784 + $0x180] sm:%s3777]
                %3883 = vst [vmem:[%s3785 + $0x300] sm:%s3777] %v3882
                %v3884 = vld [vmem:[%s3784 + $0x188] sm:%s3777]
                %3885 = vst [vmem:[%s3785 + $0x308] sm:%s3777] %v3884
                %v3886 = vld [vmem:[%s3784 + $0x190] sm:%s3777]
                %3887 = vst [vmem:[%s3785 + $0x310] sm:%s3777] %v3886
                %v3888 = vld [vmem:[%s3784 + $0x198] sm:%s3777]
                %3889 = vst [vmem:[%s3785 + $0x318] sm:%s3777] %v3888
                %v3890 = vld [vmem:[%s3784 + $0x1a0] sm:%s3777]
                %3891 = vst [vmem:[%s3785 + $0x340] sm:%s3777] %v3890
                %v3892 = vld [vmem:[%s3784 + $0x1a8] sm:%s3777]
                %3893 = vst [vmem:[%s3785 + $0x348] sm:%s3777] %v3892
                %v3894 = vld [vmem:[%s3784 + $0x1b0] sm:%s3777]
                %3895 = vst [vmem:[%s3785 + $0x350] sm:%s3777] %v3894
                %v3896 = vld [vmem:[%s3784 + $0x1b8] sm:%s3777]
                %3897 = vst [vmem:[%s3785 + $0x358] sm:%s3777] %v3896
                %v3898 = vld [vmem:[%s3784 + $0x1c0] sm:%s3777]
                %3899 = vst [vmem:[%s3785 + $0x380] sm:%s3777] %v3898
                %v3900 = vld [vmem:[%s3784 + $0x1c8] sm:%s3777]
                %3901 = vst [vmem:[%s3785 + $0x388] sm:%s3777] %v3900
                %v3902 = vld [vmem:[%s3784 + $0x1d0] sm:%s3777]
                %3903 = vst [vmem:[%s3785 + $0x390] sm:%s3777] %v3902
                %v3904 = vld [vmem:[%s3784 + $0x1d8] sm:%s3777]
                %3905 = vst [vmem:[%s3785 + $0x398] sm:%s3777] %v3904
              $region156: #{tpu_custom_call.1} parent=150 // loop_footer
                %s3783 = sadd.s32 1, %s3779
              $region157: #{tpu_custom_call.1} parent=150 // loop_footer_branch
                %3778 = sbr.rel target = $region153
              $region158: #{tpu_custom_call.1} parent=150 // loop_exit
                _
            $region151: #{tpu_custom_call.1} parent=142 // pred_fallthru
              _
          $region143: #{tpu_custom_call.1} parent=138 // pred_fallthru
            _
          %4038 = vnop
        $region139: #{tpu_custom_call.1} parent=92 // pred_fallthru
          _
      $region93: #{tpu_custom_call.1} parent=5 // pred_fallthru
        _
      %p4039 = scmp.le.s32.totalorder 2, %s17
      // Predicated region
      $region174: #{tpu_custom_call.1} parent=5 // pred_check
        %p4040 = pneg %p4039
      $region175: #{tpu_custom_call.1} parent=5 // pred_check_branch
        %4042 = sbr.rel (%p4040) target = $region177
      $region176: #{tpu_custom_call.1} parent=5 // pred_region
        %s4043 = ssub.s32 %s17, 2
        // Predicated region
        $region178: #{tpu_custom_call.1} parent=176 // pred_check
          %p4044 = pneg %p240
        $region179: #{tpu_custom_call.1} parent=176 // pred_check_branch
          %4046 = sbr.rel (%p4044) target = $region181
        $region180: #{tpu_custom_call.1} parent=176 // pred_region
          %s4047 = sand.u32 %s225, 1
          %s4048 = sand.u32 %s225, 1
          %s4049 = smul.addr %s4048, 480
          %s4050 = scalar_lea.vmem [#allocation3], %s4049
        $region181: #{tpu_custom_call.1} parent=176 // pred_fallthru
          _
        // Predicated region
        $region182: #{tpu_custom_call.1} parent=176 // pred_check
          %p4051 = pneg %p266
        $region183: #{tpu_custom_call.1} parent=176 // pred_check_branch
          %4053 = sbr.rel (%p4051) target = $region185
        $region184: #{tpu_custom_call.1} parent=176 // pred_region
          %s4054 = sand.u32 %s251, 1
          %s4055 = sand.u32 %s251, 1
          %s4056 = smul.addr %s4055, 480
          %s4057 = scalar_lea.vmem [#allocation4], %s4056
        $region185: #{tpu_custom_call.1} parent=176 // pred_fallthru
          _
      $region177: #{tpu_custom_call.1} parent=5 // pred_fallthru
        _
    $region6: #{tpu_custom_call.1} parent=1 // loop_footer
      %s21 = sadd.s32 1, %s17
    $region7: #{tpu_custom_call.1} parent=1 // loop_footer_branch
      %16 = sbr.rel target = $region3
    $region8: #{tpu_custom_call.1} parent=1 // loop_exit
      _

</llo_original>
